<compile_context>
chip_gen: v5e
topology: v5e:2x2
jax: 0.10.0
libtpu: 0.0.40
codegen_flags: <defaults>
</compile_context>

<pallas_src>
import jax
import jax.numpy as jnp
from jax import lax
from jax.experimental import pallas as pl
from jax.experimental.pallas import tpu as pltpu


_LANE = 128      # vreg lane count: feature dims padded to multiples of this
_SUBLANE = 8     # vreg sublane count: batch dim padded to multiples of this


def _round_up(x, m):
    return ((x + m - 1) // m) * m


def _make_kernel(T, BP, HP, CP, L):
    """Fused multi-layer LSTM + Linear head kernel (static, padded sizes)."""

    def kernel(*refs):
        # refs: x(T*BP, IN_pad), then per layer (w_ih^T, w_hh^T, bias(1,4HP)),
        #       then w_fc^T(HP,CP), b_fc(1,CP), then out(T*BP,CP),
        #       then VMEM scratch seq(T*BP,HP) and gx(T*BP,4HP).
        x_ref = refs[0]
        pos = 1
        layers = []
        for _ in range(L):
            layers.append((refs[pos], refs[pos + 1], refs[pos + 2]))
            pos += 3
        wfc_ref, bfc_ref = refs[pos], refs[pos + 1]
        out_ref = refs[pos + 2]        # (T*BP, CP)  lane-dense logits
        seq_ref = refs[pos + 3]        # (T*BP, HP)  current layer's h_t slab
        gx_ref = refs[pos + 4]         # (T*BP, 4HP) hoisted input projection

        for l, (wih_ref, whh_ref, b_ref) in enumerate(layers):
            # ---- hoisted batched input projection: one big MXU matmul, bias
            # folded here so there is no per-step broadcast/add of (1, 4HP).
            inp = x_ref[...] if l == 0 else seq_ref[...]
            gx_ref[...] = (
                jnp.dot(inp, wih_ref[...], preferred_element_type=jnp.float32)
                + b_ref[...]
            )
            w_hh = whh_ref[...]        # (HP, 4HP), resident across the loop
            # TODO(synk): for large H, cast w_hh / h to bfloat16 for the MXU
            # (keep f32 accumulation + f32 cell state); kept f32 here to match
            # the PyTorch f32 forward exactly at these toy sizes.

            # ---- serial recurrence: only h @ W_hh remains on the critical path.
            def step(t, carry, _w_hh=w_hh):
                h, c = carry           # (BP, HP) each == whole f32 vreg tiles
                row = pl.multiple_of(t * BP, BP)
                gates = gx_ref[pl.ds(row, BP), :] + jnp.dot(
                    h, _w_hh, preferred_element_type=jnp.float32)
                # HP is a multiple of 128 -> gate slices are lane-aligned.
                i_g = jax.nn.sigmoid(gates[:, 0 * HP:1 * HP])
                f_g = jax.nn.sigmoid(gates[:, 1 * HP:2 * HP])
                g_g = jnp.tanh(gates[:, 2 * HP:3 * HP])
                o_g = jax.nn.sigmoid(gates[:, 3 * HP:4 * HP])
                c_new = f_g * c + i_g * g_g
                h_new = o_g * jnp.tanh(c_new)
                seq_ref[pl.ds(row, BP), :] = h_new
                return h_new, c_new

            h0 = jnp.zeros((BP, HP), jnp.float32)
            c0 = jnp.zeros((BP, HP), jnp.float32)
            lax.fori_loop(0, T, step, (h0, c0), unroll=True)

        # ---- Linear head over the whole hidden sequence: one lane-dense
        # matmul reading the contiguous 2D scratch slab, lane-dense store.
        out_ref[...] = (
            jnp.dot(seq_ref[...], wfc_ref[...], preferred_element_type=jnp.float32)
            + bfc_ref[...]
        )

    return kernel


def _pad_gate_mat(w, H, HP, in_dim, in_pad):
    """(4H, in_dim) gate-blocked weight -> transposed, padded (in_pad, 4*HP)."""
    w4 = w.reshape(4, H, in_dim).astype(jnp.float32)
    w4 = jnp.pad(w4, ((0, 0), (0, HP - H), (0, in_pad - in_dim)))
    return jnp.transpose(w4.reshape(4 * HP, in_pad))


def _pad_gate_bias(b, H, HP):
    """(4H,) gate-blocked bias -> (1, 4*HP); padded gate lanes get bias 0."""
    b4 = b.reshape(4, H).astype(jnp.float32)
    b4 = jnp.pad(b4, ((0, 0), (0, HP - H)))
    return b4.reshape(1, 4 * HP)


def init_params(key, input_size, hidden_size, num_layers, num_classes):
    """Deterministic synthetic parameters (PyTorch-style uniform init)."""
    H = hidden_size
    k = 1.0 / jnp.sqrt(jnp.float32(H))
    params = {"lstm": [], "fc": None}
    for l in range(num_layers):
        in_l = input_size if l == 0 else H
        key, k1, k2, k3, k4 = jax.random.split(key, 5)
        w_ih = jax.random.uniform(k1, (4 * H, in_l), jnp.float32, -k, k)
        w_hh = jax.random.uniform(k2, (4 * H, H), jnp.float32, -k, k)
        b_ih = jax.random.uniform(k3, (4 * H,), jnp.float32, -k, k)
        b_hh = jax.random.uniform(k4, (4 * H,), jnp.float32, -k, k)
        params["lstm"].append((w_ih, w_hh, b_ih, b_hh))
    key, k5, k6 = jax.random.split(key, 3)
    w_fc = jax.random.uniform(k5, (num_classes, H), jnp.float32, -k, k)
    b_fc = jax.random.uniform(k6, (num_classes,), jnp.float32, -k, k)
    params["fc"] = (w_fc, b_fc)
    return params


def pitch_seq_model(x, params):
    """x: (B, T, input_size) float32, batch_first — same as the PyTorch module."""
    B, T, IN = x.shape
    w_fc, b_fc = params["fc"]
    C, H = w_fc.shape
    L = len(params["lstm"])

    BP = _round_up(max(B, _SUBLANE), _SUBLANE)
    INP = _round_up(IN, _LANE)
    HP = _round_up(H, _LANE)
    CP = _round_up(C, _LANE)

    # Sequence-major, batch padded to sublanes, features padded to lanes,
    # flattened into a lane-dense 2D slab (T*BP, INP).
    x_tbf = jnp.transpose(x, (1, 0, 2)).astype(jnp.float32)          # (T, B, IN)
    x_pad = jnp.pad(x_tbf, ((0, 0), (0, BP - B), (0, INP - IN)))
    x_pad = x_pad.reshape(T * BP, INP)

    args = [x_pad]
    for l, (w_ih, w_hh, b_ih, b_hh) in enumerate(params["lstm"]):
        in_l = IN if l == 0 else H
        in_pad = INP if l == 0 else HP
        args.append(_pad_gate_mat(w_ih, H, HP, in_l, in_pad))        # (in_pad, 4HP)
        args.append(_pad_gate_mat(w_hh, H, HP, H, HP))               # (HP, 4HP)
        args.append(_pad_gate_bias(b_ih + b_hh, H, HP))              # (1, 4HP)
    w_fc_p = jnp.pad(w_fc.astype(jnp.float32), ((0, CP - C), (0, HP - H)))
    args.append(jnp.transpose(w_fc_p))                               # (HP, CP)
    args.append(jnp.pad(b_fc.astype(jnp.float32), (0, CP - C)).reshape(1, CP))

    kernel = _make_kernel(T, BP, HP, CP, L)
    vmem_spec = pl.BlockSpec(memory_space=pltpu.MemorySpace.VMEM)

    # Explicit VMEM budget (inputs + output + two scratch slabs, f32, 2x margin).
    n_elems = (sum(int(a.size) for a in args)
               + T * BP * CP + T * BP * HP + T * BP * 4 * HP)
    vmem_limit = int(min(max(8 * n_elems, 16 * 1024 * 1024), 64 * 1024 * 1024))
    # TODO(synk): for large H/T/B (resident weights + sequence scratch > ~48 MiB,
    # notably on v7x's 64 MiB VMEM) stream x and the hidden-sequence scratch
    # through a grid over T-chunks instead of keeping everything resident.

    out_flat = pl.pallas_call(
        kernel,
        out_shape=jax.ShapeDtypeStruct((T * BP, CP), jnp.float32),
        in_specs=[vmem_spec] * len(args),
        out_specs=vmem_spec,
        scratch_shapes=[
            pltpu.VMEM((T * BP, HP), jnp.float32),        # hidden-sequence slab
            pltpu.VMEM((T * BP, 4 * HP), jnp.float32),    # hoisted input gates
        ],
        compiler_params=pltpu.CompilerParams(vmem_limit_bytes=vmem_limit),
    )(*args)

    out = out_flat.reshape(T, BP, CP)[:, :B, :C]          # strip padding
    return jnp.transpose(out, (1, 0, 2))                  # (B, T, C)


def _reference(x, params):
    """Pure-JAX reference matching torch: out = fc(lstm(x)[0])."""
    B, T, _ = x.shape
    h_seq = x.astype(jnp.float32)
    for (w_ih, w_hh, b_ih, b_hh) in params["lstm"]:
        H = w_hh.shape[1]
        h = jnp.zeros((B, H), jnp.float32)
        c = jnp.zeros((B, H), jnp.float32)
        outs = []
        for t in range(T):
            g = h_seq[:, t, :] @ w_ih.T + b_ih + h @ w_hh.T + b_hh
            i = jax.nn.sigmoid(g[:, 0 * H:1 * H])
            f = jax.nn.sigmoid(g[:, 1 * H:2 * H])
            gg = jnp.tanh(g[:, 2 * H:3 * H])
            o = jax.nn.sigmoid(g[:, 3 * H:4 * H])
            c = f * c + i * gg
            h = o * jnp.tanh(c)
            outs.append(h)
        h_seq = jnp.stack(outs, axis=1)
    w_fc, b_fc = params["fc"]
    return h_seq @ w_fc.T + b_fc


if __name__ == "__main__":
    # Small shapes consistent with the module's forward pass.
    B, T = 2, 8
    input_size, hidden_size, num_layers, num_classes = 4, 32, 2, 6

    key = jax.random.PRNGKey(0)
    kx, kp = jax.random.split(key)
    x = jax.random.normal(kx, (B, T, input_size), jnp.float32)
    params = init_params(kp, input_size, hidden_size, num_layers, num_classes)

    out = pitch_seq_model(x, params)
    jax.block_until_ready(out)
    assert out.shape == (B, T, num_classes)

    ref = _reference(x, params)
    err = float(jnp.max(jnp.abs(out - ref)))
    assert err < 1e-3, f"mismatch vs reference: max abs err {err}"
    print("KERNEL_OK")
</pallas_src>

<mosaic_0001>
module attributes {stable_mosaic.version = 11 : i64} {
  func.func @kernel(%arg0: memref<64x128xf32, #tpu.memory_space<vmem>>, %arg1: memref<128x512xf32, #tpu.memory_space<vmem>>, %arg2: memref<128x512xf32, #tpu.memory_space<vmem>>, %arg3: memref<1x512xf32, #tpu.memory_space<vmem>>, %arg4: memref<128x512xf32, #tpu.memory_space<vmem>>, %arg5: memref<128x512xf32, #tpu.memory_space<vmem>>, %arg6: memref<1x512xf32, #tpu.memory_space<vmem>>, %arg7: memref<128x128xf32, #tpu.memory_space<vmem>>, %arg8: memref<1x128xf32, #tpu.memory_space<vmem>>, %arg9: memref<64x128xf32, #tpu.memory_space<vmem>>, %arg10: memref<64x128xf32, #tpu.memory_space<vmem>>, %arg11: memref<64x512xf32, #tpu.memory_space<vmem>>) attributes {dimension_semantics = [], scalar_prefetch = 0 : i64, scratch_operands = 2 : i64, tpu.core_type = #tpu.core_type<tc>} {
    %c0 = arith.constant 0 : index
    %c0_0 = arith.constant 0 : index
    %0 = vector.load %arg0[%c0, %c0_0] : memref<64x128xf32, #tpu.memory_space<vmem>>, vector<64x128xf32>
    %c0_1 = arith.constant 0 : index
    %c0_2 = arith.constant 0 : index
    %1 = vector.load %arg1[%c0_1, %c0_2] : memref<128x512xf32, #tpu.memory_space<vmem>>, vector<128x512xf32>
    %cst = arith.constant dense<0.000000e+00> : vector<64x512xf32>
    %2 = tpu.matmul %0, %1, %cst {dimension_numbers = #tpu.dot_dimension_numbers<[1], [0], [0], [1], [0, 0, 1, 1], [], []>} : vector<64x128xf32>, vector<128x512xf32>, vector<64x512xf32> -> vector<64x512xf32>
    %c0_3 = arith.constant 0 : index
    %c0_4 = arith.constant 0 : index
    %3 = vector.load %arg3[%c0_3, %c0_4] : memref<1x512xf32, #tpu.memory_space<vmem>>, vector<1x512xf32>
    %4 = vector.broadcast %3 : vector<1x512xf32> to vector<64x512xf32>
    %5 = arith.addf %2, %4 : vector<64x512xf32>
    %c0_5 = arith.constant 0 : index
    %c0_6 = arith.constant 0 : index
    %6 = vector.load %arg11[%c0_5, %c0_6] : memref<64x512xf32, #tpu.memory_space<vmem>>, vector<64x512xf32>
    tpu.vector_store %arg11[%c0_5, %c0_6], %5 {strides = array<i32>} : memref<64x512xf32, #tpu.memory_space<vmem>>, vector<64x512xf32>,
    %c0_7 = arith.constant 0 : index
    %c0_8 = arith.constant 0 : index
    %7 = vector.load %arg2[%c0_7, %c0_8] : memref<128x512xf32, #tpu.memory_space<vmem>>, vector<128x512xf32>
    %cst_9 = arith.constant 0.000000e+00 : f32
    %8 = vector.broadcast %cst_9 : f32 to vector<8x128xf32>
    %cst_10 = arith.constant 0.000000e+00 : f32
    %9 = vector.broadcast %cst_10 : f32 to vector<8x128xf32>
    %c0_i32 = arith.constant 0 : i32
    %c8_i32 = arith.constant 8 : i32
    %10 = arith.muli %c0_i32, %c8_i32 : i32
    %11 = tpu.assume_multiple %10, 8 : i32
    %12 = arith.index_cast %11 : i32 to index
    %c0_11 = arith.constant 0 : index
    %13 = vector.load %arg11[%12, %c0_11] : memref<64x512xf32, #tpu.memory_space<vmem>>, vector<8x512xf32>
    %cst_12 = arith.constant dense<0.000000e+00> : vector<8x512xf32>
    %14 = tpu.matmul %8, %7, %cst_12 {dimension_numbers = #tpu.dot_dimension_numbers<[1], [0], [0], [1], [0, 0, 1, 1], [], []>} : vector<8x128xf32>, vector<128x512xf32>, vector<8x512xf32> -> vector<8x512xf32>
    %15 = arith.addf %13, %14 : vector<8x512xf32>
    %16 = vector.extract_strided_slice %15 {offsets = [0, 0], sizes = [8, 128], strides = [1, 1]} : vector<8x512xf32> to vector<8x128xf32>
    %17 = arith.negf %16 : vector<8x128xf32>
    %18 = math.exp %17 : vector<8x128xf32>
    %cst_13 = arith.constant 1.000000e+00 : f32
    %19 = vector.broadcast %cst_13 : f32 to vector<8x128xf32>
    %20 = arith.addf %19, %18 : vector<8x128xf32>
    %21 = arith.divf %19, %20 : vector<8x128xf32>
    %22 = vector.extract_strided_slice %15 {offsets = [0, 128], sizes = [8, 128], strides = [1, 1]} : vector<8x512xf32> to vector<8x128xf32>
    %23 = arith.negf %22 : vector<8x128xf32>
    %24 = math.exp %23 : vector<8x128xf32>
    %cst_14 = arith.constant 1.000000e+00 : f32
    %25 = vector.broadcast %cst_14 : f32 to vector<8x128xf32>
    %26 = arith.addf %25, %24 : vector<8x128xf32>
    %27 = arith.divf %25, %26 : vector<8x128xf32>
    %28 = vector.extract_strided_slice %15 {offsets = [0, 256], sizes = [8, 128], strides = [1, 1]} : vector<8x512xf32> to vector<8x128xf32>
    %29 = math.tanh %28 : vector<8x128xf32>
    %30 = vector.extract_strided_slice %15 {offsets = [0, 384], sizes = [8, 128], strides = [1, 1]} : vector<8x512xf32> to vector<8x128xf32>
    %31 = arith.negf %30 : vector<8x128xf32>
    %32 = math.exp %31 : vector<8x128xf32>
    %cst_15 = arith.constant 1.000000e+00 : f32
    %33 = vector.broadcast %cst_15 : f32 to vector<8x128xf32>
    %34 = arith.addf %33, %32 : vector<8x128xf32>
    %35 = arith.divf %33, %34 : vector<8x128xf32>
    %36 = arith.mulf %27, %9 : vector<8x128xf32>
    %37 = arith.mulf %21, %29 : vector<8x128xf32>
    %38 = arith.addf %36, %37 : vector<8x128xf32>
    %39 = math.tanh %38 : vector<8x128xf32>
    %40 = arith.mulf %35, %39 : vector<8x128xf32>
    %41 = arith.index_cast %11 : i32 to index
    %c0_16 = arith.constant 0 : index
    %42 = vector.load %arg10[%41, %c0_16] : memref<64x128xf32, #tpu.memory_space<vmem>>, vector<8x128xf32>
    tpu.vector_store %arg10[%41, %c0_16], %40 {strides = array<i32>} : memref<64x128xf32, #tpu.memory_space<vmem>>, vector<8x128xf32>,
    %c1_i32 = arith.constant 1 : i32
    %c8_i32_17 = arith.constant 8 : i32
    %43 = arith.muli %c1_i32, %c8_i32_17 : i32
    %44 = tpu.assume_multiple %43, 8 : i32
    %45 = arith.index_cast %44 : i32 to index
    %c0_18 = arith.constant 0 : index
    %46 = vector.load %arg11[%45, %c0_18] : memref<64x512xf32, #tpu.memory_space<vmem>>, vector<8x512xf32>
    %cst_19 = arith.constant dense<0.000000e+00> : vector<8x512xf32>
    %47 = tpu.matmul %40, %7, %cst_19 {dimension_numbers = #tpu.dot_dimension_numbers<[1], [0], [0], [1], [0, 0, 1, 1], [], []>} : vector<8x128xf32>, vector<128x512xf32>, vector<8x512xf32> -> vector<8x512xf32>
    %48 = arith.addf %46, %47 : vector<8x512xf32>
    %49 = vector.extract_strided_slice %48 {offsets = [0, 0], sizes = [8, 128], strides = [1, 1]} : vector<8x512xf32> to vector<8x128xf32>
    %50 = arith.negf %49 : vector<8x128xf32>
    %51 = math.exp %50 : vector<8x128xf32>
    %cst_20 = arith.constant 1.000000e+00 : f32
    %52 = vector.broadcast %cst_20 : f32 to vector<8x128xf32>
    %53 = arith.addf %52, %51 : vector<8x128xf32>
    %54 = arith.divf %52, %53 : vector<8x128xf32>
    %55 = vector.extract_strided_slice %48 {offsets = [0, 128], sizes = [8, 128], strides = [1, 1]} : vector<8x512xf32> to vector<8x128xf32>
    %56 = arith.negf %55 : vector<8x128xf32>
    %57 = math.exp %56 : vector<8x128xf32>
    %cst_21 = arith.constant 1.000000e+00 : f32
    %58 = vector.broadcast %cst_21 : f32 to vector<8x128xf32>
    %59 = arith.addf %58, %57 : vector<8x128xf32>
    %60 = arith.divf %58, %59 : vector<8x128xf32>
    %61 = vector.extract_strided_slice %48 {offsets = [0, 256], sizes = [8, 128], strides = [1, 1]} : vector<8x512xf32> to vector<8x128xf32>
    %62 = math.tanh %61 : vector<8x128xf32>
    %63 = vector.extract_strided_slice %48 {offsets = [0, 384], sizes = [8, 128], strides = [1, 1]} : vector<8x512xf32> to vector<8x128xf32>
    %64 = arith.negf %63 : vector<8x128xf32>
    %65 = math.exp %64 : vector<8x128xf32>
    %cst_22 = arith.constant 1.000000e+00 : f32
    %66 = vector.broadcast %cst_22 : f32 to vector<8x128xf32>
    %67 = arith.addf %66, %65 : vector<8x128xf32>
    %68 = arith.divf %66, %67 : vector<8x128xf32>
    %69 = arith.mulf %60, %38 : vector<8x128xf32>
    %70 = arith.mulf %54, %62 : vector<8x128xf32>
    %71 = arith.addf %69, %70 : vector<8x128xf32>
    %72 = math.tanh %71 : vector<8x128xf32>
    %73 = arith.mulf %68, %72 : vector<8x128xf32>
    %74 = arith.index_cast %44 : i32 to index
    %c0_23 = arith.constant 0 : index
    %75 = vector.load %arg10[%74, %c0_23] : memref<64x128xf32, #tpu.memory_space<vmem>>, vector<8x128xf32>
    tpu.vector_store %arg10[%74, %c0_23], %73 {strides = array<i32>} : memref<64x128xf32, #tpu.memory_space<vmem>>, vector<8x128xf32>,
    %c2_i32 = arith.constant 2 : i32
    %c8_i32_24 = arith.constant 8 : i32
    %76 = arith.muli %c2_i32, %c8_i32_24 : i32
    %77 = tpu.assume_multiple %76, 8 : i32
    %78 = arith.index_cast %77 : i32 to index
    %c0_25 = arith.constant 0 : index
    %79 = vector.load %arg11[%78, %c0_25] : memref<64x512xf32, #tpu.memory_space<vmem>>, vector<8x512xf32>
    %cst_26 = arith.constant dense<0.000000e+00> : vector<8x512xf32>
    %80 = tpu.matmul %73, %7, %cst_26 {dimension_numbers = #tpu.dot_dimension_numbers<[1], [0], [0], [1], [0, 0, 1, 1], [], []>} : vector<8x128xf32>, vector<128x512xf32>, vector<8x512xf32> -> vector<8x512xf32>
    %81 = arith.addf %79, %80 : vector<8x512xf32>
    %82 = vector.extract_strided_slice %81 {offsets = [0, 0], sizes = [8, 128], strides = [1, 1]} : vector<8x512xf32> to vector<8x128xf32>
    %83 = arith.negf %82 : vector<8x128xf32>
    %84 = math.exp %83 : vector<8x128xf32>
    %cst_27 = arith.constant 1.000000e+00 : f32
    %85 = vector.broadcast %cst_27 : f32 to vector<8x128xf32>
    %86 = arith.addf %85, %84 : vector<8x128xf32>
    %87 = arith.divf %85, %86 : vector<8x128xf32>
    %88 = vector.extract_strided_slice %81 {offsets = [0, 128], sizes = [8, 128], strides = [1, 1]} : vector<8x512xf32> to vector<8x128xf32>
    %89 = arith.negf %88 : vector<8x128xf32>
    %90 = math.exp %89 : vector<8x128xf32>
    %cst_28 = arith.constant 1.000000e+00 : f32
    %91 = vector.broadcast %cst_28 : f32 to vector<8x128xf32>
    %92 = arith.addf %91, %90 : vector<8x128xf32>
    %93 = arith.divf %91, %92 : vector<8x128xf32>
    %94 = vector.extract_strided_slice %81 {offsets = [0, 256], sizes = [8, 128], strides = [1, 1]} : vector<8x512xf32> to vector<8x128xf32>
    %95 = math.tanh %94 : vector<8x128xf32>
    %96 = vector.extract_strided_slice %81 {offsets = [0, 384], sizes = [8, 128], strides = [1, 1]} : vector<8x512xf32> to vector<8x128xf32>
    %97 = arith.negf %96 : vector<8x128xf32>
    %98 = math.exp %97 : vector<8x128xf32>
    %cst_29 = arith.constant 1.000000e+00 : f32
    %99 = vector.broadcast %cst_29 : f32 to vector<8x128xf32>
    %100 = arith.addf %99, %98 : vector<8x128xf32>
    %101 = arith.divf %99, %100 : vector<8x128xf32>
    %102 = arith.mulf %93, %71 : vector<8x128xf32>
    %103 = arith.mulf %87, %95 : vector<8x128xf32>
    %104 = arith.addf %102, %103 : vector<8x128xf32>
    %105 = math.tanh %104 : vector<8x128xf32>
    %106 = arith.mulf %101, %105 : vector<8x128xf32>
    %107 = arith.index_cast %77 : i32 to index
    %c0_30 = arith.constant 0 : index
    %108 = vector.load %arg10[%107, %c0_30] : memref<64x128xf32, #tpu.memory_space<vmem>>, vector<8x128xf32>
    tpu.vector_store %arg10[%107, %c0_30], %106 {strides = array<i32>} : memref<64x128xf32, #tpu.memory_space<vmem>>, vector<8x128xf32>,
    %c3_i32 = arith.constant 3 : i32
    %c8_i32_31 = arith.constant 8 : i32
    %109 = arith.muli %c3_i32, %c8_i32_31 : i32
    %110 = tpu.assume_multiple %109, 8 : i32
    %111 = arith.index_cast %110 : i32 to index
    %c0_32 = arith.constant 0 : index
    %112 = vector.load %arg11[%111, %c0_32] : memref<64x512xf32, #tpu.memory_space<vmem>>, vector<8x512xf32>
    %cst_33 = arith.constant dense<0.000000e+00> : vector<8x512xf32>
    %113 = tpu.matmul %106, %7, %cst_33 {dimension_numbers = #tpu.dot_dimension_numbers<[1], [0], [0], [1], [0, 0, 1, 1], [], []>} : vector<8x128xf32>, vector<128x512xf32>, vector<8x512xf32> -> vector<8x512xf32>
    %114 = arith.addf %112, %113 : vector<8x512xf32>
    %115 = vector.extract_strided_slice %114 {offsets = [0, 0], sizes = [8, 128], strides = [1, 1]} : vector<8x512xf32> to vector<8x128xf32>
    %116 = arith.negf %115 : vector<8x128xf32>
    %117 = math.exp %116 : vector<8x128xf32>
    %cst_34 = arith.constant 1.000000e+00 : f32
    %118 = vector.broadcast %cst_34 : f32 to vector<8x128xf32>
    %119 = arith.addf %118, %117 : vector<8x128xf32>
    %120 = arith.divf %118, %119 : vector<8x128xf32>
    %121 = vector.extract_strided_slice %114 {offsets = [0, 128], sizes = [8, 128], strides = [1, 1]} : vector<8x512xf32> to vector<8x128xf32>
    %122 = arith.negf %121 : vector<8x128xf32>
    %123 = math.exp %122 : vector<8x128xf32>
    %cst_35 = arith.constant 1.000000e+00 : f32
    %124 = vector.broadcast %cst_35 : f32 to vector<8x128xf32>
    %125 = arith.addf %124, %123 : vector<8x128xf32>
    %126 = arith.divf %124, %125 : vector<8x128xf32>
    %127 = vector.extract_strided_slice %114 {offsets = [0, 256], sizes = [8, 128], strides = [1, 1]} : vector<8x512xf32> to vector<8x128xf32>
    %128 = math.tanh %127 : vector<8x128xf32>
    %129 = vector.extract_strided_slice %114 {offsets = [0, 384], sizes = [8, 128], strides = [1, 1]} : vector<8x512xf32> to vector<8x128xf32>
    %130 = arith.negf %129 : vector<8x128xf32>
    %131 = math.exp %130 : vector<8x128xf32>
    %cst_36 = arith.constant 1.000000e+00 : f32
    %132 = vector.broadcast %cst_36 : f32 to vector<8x128xf32>
    %133 = arith.addf %132, %131 : vector<8x128xf32>
    %134 = arith.divf %132, %133 : vector<8x128xf32>
    %135 = arith.mulf %126, %104 : vector<8x128xf32>
    %136 = arith.mulf %120, %128 : vector<8x128xf32>
    %137 = arith.addf %135, %136 : vector<8x128xf32>
    %138 = math.tanh %137 : vector<8x128xf32>
    %139 = arith.mulf %134, %138 : vector<8x128xf32>
    %140 = arith.index_cast %110 : i32 to index
    %c0_37 = arith.constant 0 : index
    %141 = vector.load %arg10[%140, %c0_37] : memref<64x128xf32, #tpu.memory_space<vmem>>, vector<8x128xf32>
    tpu.vector_store %arg10[%140, %c0_37], %139 {strides = array<i32>} : memref<64x128xf32, #tpu.memory_space<vmem>>, vector<8x128xf32>,
    %c4_i32 = arith.constant 4 : i32
    %c8_i32_38 = arith.constant 8 : i32
    %142 = arith.muli %c4_i32, %c8_i32_38 : i32
    %143 = tpu.assume_multiple %142, 8 : i32
    %144 = arith.index_cast %143 : i32 to index
    %c0_39 = arith.constant 0 : index
    %145 = vector.load %arg11[%144, %c0_39] : memref<64x512xf32, #tpu.memory_space<vmem>>, vector<8x512xf32>
    %cst_40 = arith.constant dense<0.000000e+00> : vector<8x512xf32>
    %146 = tpu.matmul %139, %7, %cst_40 {dimension_numbers = #tpu.dot_dimension_numbers<[1], [0], [0], [1], [0, 0, 1, 1], [], []>} : vector<8x128xf32>, vector<128x512xf32>, vector<8x512xf32> -> vector<8x512xf32>
    %147 = arith.addf %145, %146 : vector<8x512xf32>
    %148 = vector.extract_strided_slice %147 {offsets = [0, 0], sizes = [8, 128], strides = [1, 1]} : vector<8x512xf32> to vector<8x128xf32>
    %149 = arith.negf %148 : vector<8x128xf32>
    %150 = math.exp %149 : vector<8x128xf32>
    %cst_41 = arith.constant 1.000000e+00 : f32
    %151 = vector.broadcast %cst_41 : f32 to vector<8x128xf32>
    %152 = arith.addf %151, %150 : vector<8x128xf32>
    %153 = arith.divf %151, %152 : vector<8x128xf32>
    %154 = vector.extract_strided_slice %147 {offsets = [0, 128], sizes = [8, 128], strides = [1, 1]} : vector<8x512xf32> to vector<8x128xf32>
    %155 = arith.negf %154 : vector<8x128xf32>
    %156 = math.exp %155 : vector<8x128xf32>
    %cst_42 = arith.constant 1.000000e+00 : f32
    %157 = vector.broadcast %cst_42 : f32 to vector<8x128xf32>
    %158 = arith.addf %157, %156 : vector<8x128xf32>
    %159 = arith.divf %157, %158 : vector<8x128xf32>
    %160 = vector.extract_strided_slice %147 {offsets = [0, 256], sizes = [8, 128], strides = [1, 1]} : vector<8x512xf32> to vector<8x128xf32>
    %161 = math.tanh %160 : vector<8x128xf32>
    %162 = vector.extract_strided_slice %147 {offsets = [0, 384], sizes = [8, 128], strides = [1, 1]} : vector<8x512xf32> to vector<8x128xf32>
    %163 = arith.negf %162 : vector<8x128xf32>
    %164 = math.exp %163 : vector<8x128xf32>
    %cst_43 = arith.constant 1.000000e+00 : f32
    %165 = vector.broadcast %cst_43 : f32 to vector<8x128xf32>
    %166 = arith.addf %165, %164 : vector<8x128xf32>
    %167 = arith.divf %165, %166 : vector<8x128xf32>
    %168 = arith.mulf %159, %137 : vector<8x128xf32>
    %169 = arith.mulf %153, %161 : vector<8x128xf32>
    %170 = arith.addf %168, %169 : vector<8x128xf32>
    %171 = math.tanh %170 : vector<8x128xf32>
    %172 = arith.mulf %167, %171 : vector<8x128xf32>
    %173 = arith.index_cast %143 : i32 to index
    %c0_44 = arith.constant 0 : index
    %174 = vector.load %arg10[%173, %c0_44] : memref<64x128xf32, #tpu.memory_space<vmem>>, vector<8x128xf32>
    tpu.vector_store %arg10[%173, %c0_44], %172 {strides = array<i32>} : memref<64x128xf32, #tpu.memory_space<vmem>>, vector<8x128xf32>,
    %c5_i32 = arith.constant 5 : i32
    %c8_i32_45 = arith.constant 8 : i32
    %175 = arith.muli %c5_i32, %c8_i32_45 : i32
    %176 = tpu.assume_multiple %175, 8 : i32
    %177 = arith.index_cast %176 : i32 to index
    %c0_46 = arith.constant 0 : index
    %178 = vector.load %arg11[%177, %c0_46] : memref<64x512xf32, #tpu.memory_space<vmem>>, vector<8x512xf32>
    %cst_47 = arith.constant dense<0.000000e+00> : vector<8x512xf32>
    %179 = tpu.matmul %172, %7, %cst_47 {dimension_numbers = #tpu.dot_dimension_numbers<[1], [0], [0], [1], [0, 0, 1, 1], [], []>} : vector<8x128xf32>, vector<128x512xf32>, vector<8x512xf32> -> vector<8x512xf32>
    %180 = arith.addf %178, %179 : vector<8x512xf32>
    %181 = vector.extract_strided_slice %180 {offsets = [0, 0], sizes = [8, 128], strides = [1, 1]} : vector<8x512xf32> to vector<8x128xf32>
    %182 = arith.negf %181 : vector<8x128xf32>
    %183 = math.exp %182 : vector<8x128xf32>
    %cst_48 = arith.constant 1.000000e+00 : f32
    %184 = vector.broadcast %cst_48 : f32 to vector<8x128xf32>
    %185 = arith.addf %184, %183 : vector<8x128xf32>
    %186 = arith.divf %184, %185 : vector<8x128xf32>
    %187 = vector.extract_strided_slice %180 {offsets = [0, 128], sizes = [8, 128], strides = [1, 1]} : vector<8x512xf32> to vector<8x128xf32>
    %188 = arith.negf %187 : vector<8x128xf32>
    %189 = math.exp %188 : vector<8x128xf32>
    %cst_49 = arith.constant 1.000000e+00 : f32
    %190 = vector.broadcast %cst_49 : f32 to vector<8x128xf32>
    %191 = arith.addf %190, %189 : vector<8x128xf32>
    %192 = arith.divf %190, %191 : vector<8x128xf32>
    %193 = vector.extract_strided_slice %180 {offsets = [0, 256], sizes = [8, 128], strides = [1, 1]} : vector<8x512xf32> to vector<8x128xf32>
    %194 = math.tanh %193 : vector<8x128xf32>
    %195 = vector.extract_strided_slice %180 {offsets = [0, 384], sizes = [8, 128], strides = [1, 1]} : vector<8x512xf32> to vector<8x128xf32>
    %196 = arith.negf %195 : vector<8x128xf32>
    %197 = math.exp %196 : vector<8x128xf32>
    %cst_50 = arith.constant 1.000000e+00 : f32
    %198 = vector.broadcast %cst_50 : f32 to vector<8x128xf32>
    %199 = arith.addf %198, %197 : vector<8x128xf32>
    %200 = arith.divf %198, %199 : vector<8x128xf32>
    %201 = arith.mulf %192, %170 : vector<8x128xf32>
    %202 = arith.mulf %186, %194 : vector<8x128xf32>
    %203 = arith.addf %201, %202 : vector<8x128xf32>
    %204 = math.tanh %203 : vector<8x128xf32>
    %205 = arith.mulf %200, %204 : vector<8x128xf32>
    %206 = arith.index_cast %176 : i32 to index
    %c0_51 = arith.constant 0 : index
    %207 = vector.load %arg10[%206, %c0_51] : memref<64x128xf32, #tpu.memory_space<vmem>>, vector<8x128xf32>
    tpu.vector_store %arg10[%206, %c0_51], %205 {strides = array<i32>} : memref<64x128xf32, #tpu.memory_space<vmem>>, vector<8x128xf32>,
    %c6_i32 = arith.constant 6 : i32
    %c8_i32_52 = arith.constant 8 : i32
    %208 = arith.muli %c6_i32, %c8_i32_52 : i32
    %209 = tpu.assume_multiple %208, 8 : i32
    %210 = arith.index_cast %209 : i32 to index
    %c0_53 = arith.constant 0 : index
    %211 = vector.load %arg11[%210, %c0_53] : memref<64x512xf32, #tpu.memory_space<vmem>>, vector<8x512xf32>
    %cst_54 = arith.constant dense<0.000000e+00> : vector<8x512xf32>
    %212 = tpu.matmul %205, %7, %cst_54 {dimension_numbers = #tpu.dot_dimension_numbers<[1], [0], [0], [1], [0, 0, 1, 1], [], []>} : vector<8x128xf32>, vector<128x512xf32>, vector<8x512xf32> -> vector<8x512xf32>
    %213 = arith.addf %211, %212 : vector<8x512xf32>
    %214 = vector.extract_strided_slice %213 {offsets = [0, 0], sizes = [8, 128], strides = [1, 1]} : vector<8x512xf32> to vector<8x128xf32>
    %215 = arith.negf %214 : vector<8x128xf32>
    %216 = math.exp %215 : vector<8x128xf32>
    %cst_55 = arith.constant 1.000000e+00 : f32
    %217 = vector.broadcast %cst_55 : f32 to vector<8x128xf32>
    %218 = arith.addf %217, %216 : vector<8x128xf32>
    %219 = arith.divf %217, %218 : vector<8x128xf32>
    %220 = vector.extract_strided_slice %213 {offsets = [0, 128], sizes = [8, 128], strides = [1, 1]} : vector<8x512xf32> to vector<8x128xf32>
    %221 = arith.negf %220 : vector<8x128xf32>
    %222 = math.exp %221 : vector<8x128xf32>
    %cst_56 = arith.constant 1.000000e+00 : f32
    %223 = vector.broadcast %cst_56 : f32 to vector<8x128xf32>
    %224 = arith.addf %223, %222 : vector<8x128xf32>
    %225 = arith.divf %223, %224 : vector<8x128xf32>
    %226 = vector.extract_strided_slice %213 {offsets = [0, 256], sizes = [8, 128], strides = [1, 1]} : vector<8x512xf32> to vector<8x128xf32>
    %227 = math.tanh %226 : vector<8x128xf32>
    %228 = vector.extract_strided_slice %213 {offsets = [0, 384], sizes = [8, 128], strides = [1, 1]} : vector<8x512xf32> to vector<8x128xf32>
    %229 = arith.negf %228 : vector<8x128xf32>
    %230 = math.exp %229 : vector<8x128xf32>
    %cst_57 = arith.constant 1.000000e+00 : f32
    %231 = vector.broadcast %cst_57 : f32 to vector<8x128xf32>
    %232 = arith.addf %231, %230 : vector<8x128xf32>
    %233 = arith.divf %231, %232 : vector<8x128xf32>
    %234 = arith.mulf %225, %203 : vector<8x128xf32>
    %235 = arith.mulf %219, %227 : vector<8x128xf32>
    %236 = arith.addf %234, %235 : vector<8x128xf32>
    %237 = math.tanh %236 : vector<8x128xf32>
    %238 = arith.mulf %233, %237 : vector<8x128xf32>
    %239 = arith.index_cast %209 : i32 to index
    %c0_58 = arith.constant 0 : index
    %240 = vector.load %arg10[%239, %c0_58] : memref<64x128xf32, #tpu.memory_space<vmem>>, vector<8x128xf32>
    tpu.vector_store %arg10[%239, %c0_58], %238 {strides = array<i32>} : memref<64x128xf32, #tpu.memory_space<vmem>>, vector<8x128xf32>,
    %c7_i32 = arith.constant 7 : i32
    %c8_i32_59 = arith.constant 8 : i32
    %241 = arith.muli %c7_i32, %c8_i32_59 : i32
    %242 = tpu.assume_multiple %241, 8 : i32
    %243 = arith.index_cast %242 : i32 to index
    %c0_60 = arith.constant 0 : index
    %244 = vector.load %arg11[%243, %c0_60] : memref<64x512xf32, #tpu.memory_space<vmem>>, vector<8x512xf32>
    %cst_61 = arith.constant dense<0.000000e+00> : vector<8x512xf32>
    %245 = tpu.matmul %238, %7, %cst_61 {dimension_numbers = #tpu.dot_dimension_numbers<[1], [0], [0], [1], [0, 0, 1, 1], [], []>} : vector<8x128xf32>, vector<128x512xf32>, vector<8x512xf32> -> vector<8x512xf32>
    %246 = arith.addf %244, %245 : vector<8x512xf32>
    %247 = vector.extract_strided_slice %246 {offsets = [0, 0], sizes = [8, 128], strides = [1, 1]} : vector<8x512xf32> to vector<8x128xf32>
    %248 = arith.negf %247 : vector<8x128xf32>
    %249 = math.exp %248 : vector<8x128xf32>
    %cst_62 = arith.constant 1.000000e+00 : f32
    %250 = vector.broadcast %cst_62 : f32 to vector<8x128xf32>
    %251 = arith.addf %250, %249 : vector<8x128xf32>
    %252 = arith.divf %250, %251 : vector<8x128xf32>
    %253 = vector.extract_strided_slice %246 {offsets = [0, 128], sizes = [8, 128], strides = [1, 1]} : vector<8x512xf32> to vector<8x128xf32>
    %254 = arith.negf %253 : vector<8x128xf32>
    %255 = math.exp %254 : vector<8x128xf32>
    %cst_63 = arith.constant 1.000000e+00 : f32
    %256 = vector.broadcast %cst_63 : f32 to vector<8x128xf32>
    %257 = arith.addf %256, %255 : vector<8x128xf32>
    %258 = arith.divf %256, %257 : vector<8x128xf32>
    %259 = vector.extract_strided_slice %246 {offsets = [0, 256], sizes = [8, 128], strides = [1, 1]} : vector<8x512xf32> to vector<8x128xf32>
    %260 = math.tanh %259 : vector<8x128xf32>
    %261 = vector.extract_strided_slice %246 {offsets = [0, 384], sizes = [8, 128], strides = [1, 1]} : vector<8x512xf32> to vector<8x128xf32>
    %262 = arith.negf %261 : vector<8x128xf32>
    %263 = math.exp %262 : vector<8x128xf32>
    %cst_64 = arith.constant 1.000000e+00 : f32
    %264 = vector.broadcast %cst_64 : f32 to vector<8x128xf32>
    %265 = arith.addf %264, %263 : vector<8x128xf32>
    %266 = arith.divf %264, %265 : vector<8x128xf32>
    %267 = arith.mulf %258, %236 : vector<8x128xf32>
    %268 = arith.mulf %252, %260 : vector<8x128xf32>
    %269 = arith.addf %267, %268 : vector<8x128xf32>
    %270 = math.tanh %269 : vector<8x128xf32>
    %271 = arith.mulf %266, %270 : vector<8x128xf32>
    %272 = arith.index_cast %242 : i32 to index
    %c0_65 = arith.constant 0 : index
    %273 = vector.load %arg10[%272, %c0_65] : memref<64x128xf32, #tpu.memory_space<vmem>>, vector<8x128xf32>
    tpu.vector_store %arg10[%272, %c0_65], %271 {strides = array<i32>} : memref<64x128xf32, #tpu.memory_space<vmem>>, vector<8x128xf32>,
    %c8_i32_66 = arith.constant 8 : i32
    %c0_67 = arith.constant 0 : index
    %c0_68 = arith.constant 0 : index
    %274 = vector.load %arg10[%c0_67, %c0_68] : memref<64x128xf32, #tpu.memory_space<vmem>>, vector<64x128xf32>
    %c0_69 = arith.constant 0 : index
    %c0_70 = arith.constant 0 : index
    %275 = vector.load %arg4[%c0_69, %c0_70] : memref<128x512xf32, #tpu.memory_space<vmem>>, vector<128x512xf32>
    %cst_71 = arith.constant dense<0.000000e+00> : vector<64x512xf32>
    %276 = tpu.matmul %274, %275, %cst_71 {dimension_numbers = #tpu.dot_dimension_numbers<[1], [0], [0], [1], [0, 0, 1, 1], [], []>} : vector<64x128xf32>, vector<128x512xf32>, vector<64x512xf32> -> vector<64x512xf32>
    %c0_72 = arith.constant 0 : index
    %c0_73 = arith.constant 0 : index
    %277 = vector.load %arg6[%c0_72, %c0_73] : memref<1x512xf32, #tpu.memory_space<vmem>>, vector<1x512xf32>
    %278 = vector.broadcast %277 : vector<1x512xf32> to vector<64x512xf32>
    %279 = arith.addf %276, %278 : vector<64x512xf32>
    %c0_74 = arith.constant 0 : index
    %c0_75 = arith.constant 0 : index
    %280 = vector.load %arg11[%c0_74, %c0_75] : memref<64x512xf32, #tpu.memory_space<vmem>>, vector<64x512xf32>
    tpu.vector_store %arg11[%c0_74, %c0_75], %279 {strides = array<i32>} : memref<64x512xf32, #tpu.memory_space<vmem>>, vector<64x512xf32>,
    %c0_76 = arith.constant 0 : index
    %c0_77 = arith.constant 0 : index
    %281 = vector.load %arg5[%c0_76, %c0_77] : memref<128x512xf32, #tpu.memory_space<vmem>>, vector<128x512xf32>
    %cst_78 = arith.constant 0.000000e+00 : f32
    %282 = vector.broadcast %cst_78 : f32 to vector<8x128xf32>
    %cst_79 = arith.constant 0.000000e+00 : f32
    %283 = vector.broadcast %cst_79 : f32 to vector<8x128xf32>
    %c0_i32_80 = arith.constant 0 : i32
    %c8_i32_81 = arith.constant 8 : i32
    %284 = arith.muli %c0_i32_80, %c8_i32_81 : i32
    %285 = tpu.assume_multiple %284, 8 : i32
    %286 = arith.index_cast %285 : i32 to index
    %c0_82 = arith.constant 0 : index
    %287 = vector.load %arg11[%286, %c0_82] : memref<64x512xf32, #tpu.memory_space<vmem>>, vector<8x512xf32>
    %cst_83 = arith.constant dense<0.000000e+00> : vector<8x512xf32>
    %288 = tpu.matmul %282, %281, %cst_83 {dimension_numbers = #tpu.dot_dimension_numbers<[1], [0], [0], [1], [0, 0, 1, 1], [], []>} : vector<8x128xf32>, vector<128x512xf32>, vector<8x512xf32> -> vector<8x512xf32>
    %289 = arith.addf %287, %288 : vector<8x512xf32>
    %290 = vector.extract_strided_slice %289 {offsets = [0, 0], sizes = [8, 128], strides = [1, 1]} : vector<8x512xf32> to vector<8x128xf32>
    %291 = arith.negf %290 : vector<8x128xf32>
    %292 = math.exp %291 : vector<8x128xf32>
    %cst_84 = arith.constant 1.000000e+00 : f32
    %293 = vector.broadcast %cst_84 : f32 to vector<8x128xf32>
    %294 = arith.addf %293, %292 : vector<8x128xf32>
    %295 = arith.divf %293, %294 : vector<8x128xf32>
    %296 = vector.extract_strided_slice %289 {offsets = [0, 128], sizes = [8, 128], strides = [1, 1]} : vector<8x512xf32> to vector<8x128xf32>
    %297 = arith.negf %296 : vector<8x128xf32>
    %298 = math.exp %297 : vector<8x128xf32>
    %cst_85 = arith.constant 1.000000e+00 : f32
    %299 = vector.broadcast %cst_85 : f32 to vector<8x128xf32>
    %300 = arith.addf %299, %298 : vector<8x128xf32>
    %301 = arith.divf %299, %300 : vector<8x128xf32>
    %302 = vector.extract_strided_slice %289 {offsets = [0, 256], sizes = [8, 128], strides = [1, 1]} : vector<8x512xf32> to vector<8x128xf32>
    %303 = math.tanh %302 : vector<8x128xf32>
    %304 = vector.extract_strided_slice %289 {offsets = [0, 384], sizes = [8, 128], strides = [1, 1]} : vector<8x512xf32> to vector<8x128xf32>
    %305 = arith.negf %304 : vector<8x128xf32>
    %306 = math.exp %305 : vector<8x128xf32>
    %cst_86 = arith.constant 1.000000e+00 : f32
    %307 = vector.broadcast %cst_86 : f32 to vector<8x128xf32>
    %308 = arith.addf %307, %306 : vector<8x128xf32>
    %309 = arith.divf %307, %308 : vector<8x128xf32>
    %310 = arith.mulf %301, %283 : vector<8x128xf32>
    %311 = arith.mulf %295, %303 : vector<8x128xf32>
    %312 = arith.addf %310, %311 : vector<8x128xf32>
    %313 = math.tanh %312 : vector<8x128xf32>
    %314 = arith.mulf %309, %313 : vector<8x128xf32>
    %315 = arith.index_cast %285 : i32 to index
    %c0_87 = arith.constant 0 : index
    %316 = vector.load %arg10[%315, %c0_87] : memref<64x128xf32, #tpu.memory_space<vmem>>, vector<8x128xf32>
    tpu.vector_store %arg10[%315, %c0_87], %314 {strides = array<i32>} : memref<64x128xf32, #tpu.memory_space<vmem>>, vector<8x128xf32>,
    %c1_i32_88 = arith.constant 1 : i32
    %c8_i32_89 = arith.constant 8 : i32
    %317 = arith.muli %c1_i32_88, %c8_i32_89 : i32
    %318 = tpu.assume_multiple %317, 8 : i32
    %319 = arith.index_cast %318 : i32 to index
    %c0_90 = arith.constant 0 : index
    %320 = vector.load %arg11[%319, %c0_90] : memref<64x512xf32, #tpu.memory_space<vmem>>, vector<8x512xf32>
    %cst_91 = arith.constant dense<0.000000e+00> : vector<8x512xf32>
    %321 = tpu.matmul %314, %281, %cst_91 {dimension_numbers = #tpu.dot_dimension_numbers<[1], [0], [0], [1], [0, 0, 1, 1], [], []>} : vector<8x128xf32>, vector<128x512xf32>, vector<8x512xf32> -> vector<8x512xf32>
    %322 = arith.addf %320, %321 : vector<8x512xf32>
    %323 = vector.extract_strided_slice %322 {offsets = [0, 0], sizes = [8, 128], strides = [1, 1]} : vector<8x512xf32> to vector<8x128xf32>
    %324 = arith.negf %323 : vector<8x128xf32>
    %325 = math.exp %324 : vector<8x128xf32>
    %cst_92 = arith.constant 1.000000e+00 : f32
    %326 = vector.broadcast %cst_92 : f32 to vector<8x128xf32>
    %327 = arith.addf %326, %325 : vector<8x128xf32>
    %328 = arith.divf %326, %327 : vector<8x128xf32>
    %329 = vector.extract_strided_slice %322 {offsets = [0, 128], sizes = [8, 128], strides = [1, 1]} : vector<8x512xf32> to vector<8x128xf32>
    %330 = arith.negf %329 : vector<8x128xf32>
    %331 = math.exp %330 : vector<8x128xf32>
    %cst_93 = arith.constant 1.000000e+00 : f32
    %332 = vector.broadcast %cst_93 : f32 to vector<8x128xf32>
    %333 = arith.addf %332, %331 : vector<8x128xf32>
    %334 = arith.divf %332, %333 : vector<8x128xf32>
    %335 = vector.extract_strided_slice %322 {offsets = [0, 256], sizes = [8, 128], strides = [1, 1]} : vector<8x512xf32> to vector<8x128xf32>
    %336 = math.tanh %335 : vector<8x128xf32>
    %337 = vector.extract_strided_slice %322 {offsets = [0, 384], sizes = [8, 128], strides = [1, 1]} : vector<8x512xf32> to vector<8x128xf32>
    %338 = arith.negf %337 : vector<8x128xf32>
    %339 = math.exp %338 : vector<8x128xf32>
    %cst_94 = arith.constant 1.000000e+00 : f32
    %340 = vector.broadcast %cst_94 : f32 to vector<8x128xf32>
    %341 = arith.addf %340, %339 : vector<8x128xf32>
    %342 = arith.divf %340, %341 : vector<8x128xf32>
    %343 = arith.mulf %334, %312 : vector<8x128xf32>
    %344 = arith.mulf %328, %336 : vector<8x128xf32>
    %345 = arith.addf %343, %344 : vector<8x128xf32>
    %346 = math.tanh %345 : vector<8x128xf32>
    %347 = arith.mulf %342, %346 : vector<8x128xf32>
    %348 = arith.index_cast %318 : i32 to index
    %c0_95 = arith.constant 0 : index
    %349 = vector.load %arg10[%348, %c0_95] : memref<64x128xf32, #tpu.memory_space<vmem>>, vector<8x128xf32>
    tpu.vector_store %arg10[%348, %c0_95], %347 {strides = array<i32>} : memref<64x128xf32, #tpu.memory_space<vmem>>, vector<8x128xf32>,
    %c2_i32_96 = arith.constant 2 : i32
    %c8_i32_97 = arith.constant 8 : i32
    %350 = arith.muli %c2_i32_96, %c8_i32_97 : i32
    %351 = tpu.assume_multiple %350, 8 : i32
    %352 = arith.index_cast %351 : i32 to index
    %c0_98 = arith.constant 0 : index
    %353 = vector.load %arg11[%352, %c0_98] : memref<64x512xf32, #tpu.memory_space<vmem>>, vector<8x512xf32>
    %cst_99 = arith.constant dense<0.000000e+00> : vector<8x512xf32>
    %354 = tpu.matmul %347, %281, %cst_99 {dimension_numbers = #tpu.dot_dimension_numbers<[1], [0], [0], [1], [0, 0, 1, 1], [], []>} : vector<8x128xf32>, vector<128x512xf32>, vector<8x512xf32> -> vector<8x512xf32>
    %355 = arith.addf %353, %354 : vector<8x512xf32>
    %356 = vector.extract_strided_slice %355 {offsets = [0, 0], sizes = [8, 128], strides = [1, 1]} : vector<8x512xf32> to vector<8x128xf32>
    %357 = arith.negf %356 : vector<8x128xf32>
    %358 = math.exp %357 : vector<8x128xf32>
    %cst_100 = arith.constant 1.000000e+00 : f32
    %359 = vector.broadcast %cst_100 : f32 to vector<8x128xf32>
    %360 = arith.addf %359, %358 : vector<8x128xf32>
    %361 = arith.divf %359, %360 : vector<8x128xf32>
    %362 = vector.extract_strided_slice %355 {offsets = [0, 128], sizes = [8, 128], strides = [1, 1]} : vector<8x512xf32> to vector<8x128xf32>
    %363 = arith.negf %362 : vector<8x128xf32>
    %364 = math.exp %363 : vector<8x128xf32>
    %cst_101 = arith.constant 1.000000e+00 : f32
    %365 = vector.broadcast %cst_101 : f32 to vector<8x128xf32>
    %366 = arith.addf %365, %364 : vector<8x128xf32>
    %367 = arith.divf %365, %366 : vector<8x128xf32>
    %368 = vector.extract_strided_slice %355 {offsets = [0, 256], sizes = [8, 128], strides = [1, 1]} : vector<8x512xf32> to vector<8x128xf32>
    %369 = math.tanh %368 : vector<8x128xf32>
    %370 = vector.extract_strided_slice %355 {offsets = [0, 384], sizes = [8, 128], strides = [1, 1]} : vector<8x512xf32> to vector<8x128xf32>
    %371 = arith.negf %370 : vector<8x128xf32>
    %372 = math.exp %371 : vector<8x128xf32>
    %cst_102 = arith.constant 1.000000e+00 : f32
    %373 = vector.broadcast %cst_102 : f32 to vector<8x128xf32>
    %374 = arith.addf %373, %372 : vector<8x128xf32>
    %375 = arith.divf %373, %374 : vector<8x128xf32>
    %376 = arith.mulf %367, %345 : vector<8x128xf32>
    %377 = arith.mulf %361, %369 : vector<8x128xf32>
    %378 = arith.addf %376, %377 : vector<8x128xf32>
    %379 = math.tanh %378 : vector<8x128xf32>
    %380 = arith.mulf %375, %379 : vector<8x128xf32>
    %381 = arith.index_cast %351 : i32 to index
    %c0_103 = arith.constant 0 : index
    %382 = vector.load %arg10[%381, %c0_103] : memref<64x128xf32, #tpu.memory_space<vmem>>, vector<8x128xf32>
    tpu.vector_store %arg10[%381, %c0_103], %380 {strides = array<i32>} : memref<64x128xf32, #tpu.memory_space<vmem>>, vector<8x128xf32>,
    %c3_i32_104 = arith.constant 3 : i32
    %c8_i32_105 = arith.constant 8 : i32
    %383 = arith.muli %c3_i32_104, %c8_i32_105 : i32
    %384 = tpu.assume_multiple %383, 8 : i32
    %385 = arith.index_cast %384 : i32 to index
    %c0_106 = arith.constant 0 : index
    %386 = vector.load %arg11[%385, %c0_106] : memref<64x512xf32, #tpu.memory_space<vmem>>, vector<8x512xf32>
    %cst_107 = arith.constant dense<0.000000e+00> : vector<8x512xf32>
    %387 = tpu.matmul %380, %281, %cst_107 {dimension_numbers = #tpu.dot_dimension_numbers<[1], [0], [0], [1], [0, 0, 1, 1], [], []>} : vector<8x128xf32>, vector<128x512xf32>, vector<8x512xf32> -> vector<8x512xf32>
    %388 = arith.addf %386, %387 : vector<8x512xf32>
    %389 = vector.extract_strided_slice %388 {offsets = [0, 0], sizes = [8, 128], strides = [1, 1]} : vector<8x512xf32> to vector<8x128xf32>
    %390 = arith.negf %389 : vector<8x128xf32>
    %391 = math.exp %390 : vector<8x128xf32>
    %cst_108 = arith.constant 1.000000e+00 : f32
    %392 = vector.broadcast %cst_108 : f32 to vector<8x128xf32>
    %393 = arith.addf %392, %391 : vector<8x128xf32>
    %394 = arith.divf %392, %393 : vector<8x128xf32>
    %395 = vector.extract_strided_slice %388 {offsets = [0, 128], sizes = [8, 128], strides = [1, 1]} : vector<8x512xf32> to vector<8x128xf32>
    %396 = arith.negf %395 : vector<8x128xf32>
    %397 = math.exp %396 : vector<8x128xf32>
    %cst_109 = arith.constant 1.000000e+00 : f32
    %398 = vector.broadcast %cst_109 : f32 to vector<8x128xf32>
    %399 = arith.addf %398, %397 : vector<8x128xf32>
    %400 = arith.divf %398, %399 : vector<8x128xf32>
    %401 = vector.extract_strided_slice %388 {offsets = [0, 256], sizes = [8, 128], strides = [1, 1]} : vector<8x512xf32> to vector<8x128xf32>
    %402 = math.tanh %401 : vector<8x128xf32>
    %403 = vector.extract_strided_slice %388 {offsets = [0, 384], sizes = [8, 128], strides = [1, 1]} : vector<8x512xf32> to vector<8x128xf32>
    %404 = arith.negf %403 : vector<8x128xf32>
    %405 = math.exp %404 : vector<8x128xf32>
    %cst_110 = arith.constant 1.000000e+00 : f32
    %406 = vector.broadcast %cst_110 : f32 to vector<8x128xf32>
    %407 = arith.addf %406, %405 : vector<8x128xf32>
    %408 = arith.divf %406, %407 : vector<8x128xf32>
    %409 = arith.mulf %400, %378 : vector<8x128xf32>
    %410 = arith.mulf %394, %402 : vector<8x128xf32>
    %411 = arith.addf %409, %410 : vector<8x128xf32>
    %412 = math.tanh %411 : vector<8x128xf32>
    %413 = arith.mulf %408, %412 : vector<8x128xf32>
    %414 = arith.index_cast %384 : i32 to index
    %c0_111 = arith.constant 0 : index
    %415 = vector.load %arg10[%414, %c0_111] : memref<64x128xf32, #tpu.memory_space<vmem>>, vector<8x128xf32>
    tpu.vector_store %arg10[%414, %c0_111], %413 {strides = array<i32>} : memref<64x128xf32, #tpu.memory_space<vmem>>, vector<8x128xf32>,
    %c4_i32_112 = arith.constant 4 : i32
    %c8_i32_113 = arith.constant 8 : i32
    %416 = arith.muli %c4_i32_112, %c8_i32_113 : i32
    %417 = tpu.assume_multiple %416, 8 : i32
    %418 = arith.index_cast %417 : i32 to index
    %c0_114 = arith.constant 0 : index
    %419 = vector.load %arg11[%418, %c0_114] : memref<64x512xf32, #tpu.memory_space<vmem>>, vector<8x512xf32>
    %cst_115 = arith.constant dense<0.000000e+00> : vector<8x512xf32>
    %420 = tpu.matmul %413, %281, %cst_115 {dimension_numbers = #tpu.dot_dimension_numbers<[1], [0], [0], [1], [0, 0, 1, 1], [], []>} : vector<8x128xf32>, vector<128x512xf32>, vector<8x512xf32> -> vector<8x512xf32>
    %421 = arith.addf %419, %420 : vector<8x512xf32>
    %422 = vector.extract_strided_slice %421 {offsets = [0, 0], sizes = [8, 128], strides = [1, 1]} : vector<8x512xf32> to vector<8x128xf32>
    %423 = arith.negf %422 : vector<8x128xf32>
    %424 = math.exp %423 : vector<8x128xf32>
    %cst_116 = arith.constant 1.000000e+00 : f32
    %425 = vector.broadcast %cst_116 : f32 to vector<8x128xf32>
    %426 = arith.addf %425, %424 : vector<8x128xf32>
    %427 = arith.divf %425, %426 : vector<8x128xf32>
    %428 = vector.extract_strided_slice %421 {offsets = [0, 128], sizes = [8, 128], strides = [1, 1]} : vector<8x512xf32> to vector<8x128xf32>
    %429 = arith.negf %428 : vector<8x128xf32>
    %430 = math.exp %429 : vector<8x128xf32>
    %cst_117 = arith.constant 1.000000e+00 : f32
    %431 = vector.broadcast %cst_117 : f32 to vector<8x128xf32>
    %432 = arith.addf %431, %430 : vector<8x128xf32>
    %433 = arith.divf %431, %432 : vector<8x128xf32>
    %434 = vector.extract_strided_slice %421 {offsets = [0, 256], sizes = [8, 128], strides = [1, 1]} : vector<8x512xf32> to vector<8x128xf32>
    %435 = math.tanh %434 : vector<8x128xf32>
    %436 = vector.extract_strided_slice %421 {offsets = [0, 384], sizes = [8, 128], strides = [1, 1]} : vector<8x512xf32> to vector<8x128xf32>
    %437 = arith.negf %436 : vector<8x128xf32>
    %438 = math.exp %437 : vector<8x128xf32>
    %cst_118 = arith.constant 1.000000e+00 : f32
    %439 = vector.broadcast %cst_118 : f32 to vector<8x128xf32>
    %440 = arith.addf %439, %438 : vector<8x128xf32>
    %441 = arith.divf %439, %440 : vector<8x128xf32>
    %442 = arith.mulf %433, %411 : vector<8x128xf32>
    %443 = arith.mulf %427, %435 : vector<8x128xf32>
    %444 = arith.addf %442, %443 : vector<8x128xf32>
    %445 = math.tanh %444 : vector<8x128xf32>
    %446 = arith.mulf %441, %445 : vector<8x128xf32>
    %447 = arith.index_cast %417 : i32 to index
    %c0_119 = arith.constant 0 : index
    %448 = vector.load %arg10[%447, %c0_119] : memref<64x128xf32, #tpu.memory_space<vmem>>, vector<8x128xf32>
    tpu.vector_store %arg10[%447, %c0_119], %446 {strides = array<i32>} : memref<64x128xf32, #tpu.memory_space<vmem>>, vector<8x128xf32>,
    %c5_i32_120 = arith.constant 5 : i32
    %c8_i32_121 = arith.constant 8 : i32
    %449 = arith.muli %c5_i32_120, %c8_i32_121 : i32
    %450 = tpu.assume_multiple %449, 8 : i32
    %451 = arith.index_cast %450 : i32 to index
    %c0_122 = arith.constant 0 : index
    %452 = vector.load %arg11[%451, %c0_122] : memref<64x512xf32, #tpu.memory_space<vmem>>, vector<8x512xf32>
    %cst_123 = arith.constant dense<0.000000e+00> : vector<8x512xf32>
    %453 = tpu.matmul %446, %281, %cst_123 {dimension_numbers = #tpu.dot_dimension_numbers<[1], [0], [0], [1], [0, 0, 1, 1], [], []>} : vector<8x128xf32>, vector<128x512xf32>, vector<8x512xf32> -> vector<8x512xf32>
    %454 = arith.addf %452, %453 : vector<8x512xf32>
    %455 = vector.extract_strided_slice %454 {offsets = [0, 0], sizes = [8, 128], strides = [1, 1]} : vector<8x512xf32> to vector<8x128xf32>
    %456 = arith.negf %455 : vector<8x128xf32>
    %457 = math.exp %456 : vector<8x128xf32>
    %cst_124 = arith.constant 1.000000e+00 : f32
    %458 = vector.broadcast %cst_124 : f32 to vector<8x128xf32>
    %459 = arith.addf %458, %457 : vector<8x128xf32>
    %460 = arith.divf %458, %459 : vector<8x128xf32>
    %461 = vector.extract_strided_slice %454 {offsets = [0, 128], sizes = [8, 128], strides = [1, 1]} : vector<8x512xf32> to vector<8x128xf32>
    %462 = arith.negf %461 : vector<8x128xf32>
    %463 = math.exp %462 : vector<8x128xf32>
    %cst_125 = arith.constant 1.000000e+00 : f32
    %464 = vector.broadcast %cst_125 : f32 to vector<8x128xf32>
    %465 = arith.addf %464, %463 : vector<8x128xf32>
    %466 = arith.divf %464, %465 : vector<8x128xf32>
    %467 = vector.extract_strided_slice %454 {offsets = [0, 256], sizes = [8, 128], strides = [1, 1]} : vector<8x512xf32> to vector<8x128xf32>
    %468 = math.tanh %467 : vector<8x128xf32>
    %469 = vector.extract_strided_slice %454 {offsets = [0, 384], sizes = [8, 128], strides = [1, 1]} : vector<8x512xf32> to vector<8x128xf32>
    %470 = arith.negf %469 : vector<8x128xf32>
    %471 = math.exp %470 : vector<8x128xf32>
    %cst_126 = arith.constant 1.000000e+00 : f32
    %472 = vector.broadcast %cst_126 : f32 to vector<8x128xf32>
    %473 = arith.addf %472, %471 : vector<8x128xf32>
    %474 = arith.divf %472, %473 : vector<8x128xf32>
    %475 = arith.mulf %466, %444 : vector<8x128xf32>
    %476 = arith.mulf %460, %468 : vector<8x128xf32>
    %477 = arith.addf %475, %476 : vector<8x128xf32>
    %478 = math.tanh %477 : vector<8x128xf32>
    %479 = arith.mulf %474, %478 : vector<8x128xf32>
    %480 = arith.index_cast %450 : i32 to index
    %c0_127 = arith.constant 0 : index
    %481 = vector.load %arg10[%480, %c0_127] : memref<64x128xf32, #tpu.memory_space<vmem>>, vector<8x128xf32>
    tpu.vector_store %arg10[%480, %c0_127], %479 {strides = array<i32>} : memref<64x128xf32, #tpu.memory_space<vmem>>, vector<8x128xf32>,
    %c6_i32_128 = arith.constant 6 : i32
    %c8_i32_129 = arith.constant 8 : i32
    %482 = arith.muli %c6_i32_128, %c8_i32_129 : i32
    %483 = tpu.assume_multiple %482, 8 : i32
    %484 = arith.index_cast %483 : i32 to index
    %c0_130 = arith.constant 0 : index
    %485 = vector.load %arg11[%484, %c0_130] : memref<64x512xf32, #tpu.memory_space<vmem>>, vector<8x512xf32>
    %cst_131 = arith.constant dense<0.000000e+00> : vector<8x512xf32>
    %486 = tpu.matmul %479, %281, %cst_131 {dimension_numbers = #tpu.dot_dimension_numbers<[1], [0], [0], [1], [0, 0, 1, 1], [], []>} : vector<8x128xf32>, vector<128x512xf32>, vector<8x512xf32> -> vector<8x512xf32>
    %487 = arith.addf %485, %486 : vector<8x512xf32>
    %488 = vector.extract_strided_slice %487 {offsets = [0, 0], sizes = [8, 128], strides = [1, 1]} : vector<8x512xf32> to vector<8x128xf32>
    %489 = arith.negf %488 : vector<8x128xf32>
    %490 = math.exp %489 : vector<8x128xf32>
    %cst_132 = arith.constant 1.000000e+00 : f32
    %491 = vector.broadcast %cst_132 : f32 to vector<8x128xf32>
    %492 = arith.addf %491, %490 : vector<8x128xf32>
    %493 = arith.divf %491, %492 : vector<8x128xf32>
    %494 = vector.extract_strided_slice %487 {offsets = [0, 128], sizes = [8, 128], strides = [1, 1]} : vector<8x512xf32> to vector<8x128xf32>
    %495 = arith.negf %494 : vector<8x128xf32>
    %496 = math.exp %495 : vector<8x128xf32>
    %cst_133 = arith.constant 1.000000e+00 : f32
    %497 = vector.broadcast %cst_133 : f32 to vector<8x128xf32>
    %498 = arith.addf %497, %496 : vector<8x128xf32>
    %499 = arith.divf %497, %498 : vector<8x128xf32>
    %500 = vector.extract_strided_slice %487 {offsets = [0, 256], sizes = [8, 128], strides = [1, 1]} : vector<8x512xf32> to vector<8x128xf32>
    %501 = math.tanh %500 : vector<8x128xf32>
    %502 = vector.extract_strided_slice %487 {offsets = [0, 384], sizes = [8, 128], strides = [1, 1]} : vector<8x512xf32> to vector<8x128xf32>
    %503 = arith.negf %502 : vector<8x128xf32>
    %504 = math.exp %503 : vector<8x128xf32>
    %cst_134 = arith.constant 1.000000e+00 : f32
    %505 = vector.broadcast %cst_134 : f32 to vector<8x128xf32>
    %506 = arith.addf %505, %504 : vector<8x128xf32>
    %507 = arith.divf %505, %506 : vector<8x128xf32>
    %508 = arith.mulf %499, %477 : vector<8x128xf32>
    %509 = arith.mulf %493, %501 : vector<8x128xf32>
    %510 = arith.addf %508, %509 : vector<8x128xf32>
    %511 = math.tanh %510 : vector<8x128xf32>
    %512 = arith.mulf %507, %511 : vector<8x128xf32>
    %513 = arith.index_cast %483 : i32 to index
    %c0_135 = arith.constant 0 : index
    %514 = vector.load %arg10[%513, %c0_135] : memref<64x128xf32, #tpu.memory_space<vmem>>, vector<8x128xf32>
    tpu.vector_store %arg10[%513, %c0_135], %512 {strides = array<i32>} : memref<64x128xf32, #tpu.memory_space<vmem>>, vector<8x128xf32>,
    %c7_i32_136 = arith.constant 7 : i32
    %c8_i32_137 = arith.constant 8 : i32
    %515 = arith.muli %c7_i32_136, %c8_i32_137 : i32
    %516 = tpu.assume_multiple %515, 8 : i32
    %517 = arith.index_cast %516 : i32 to index
    %c0_138 = arith.constant 0 : index
    %518 = vector.load %arg11[%517, %c0_138] : memref<64x512xf32, #tpu.memory_space<vmem>>, vector<8x512xf32>
    %cst_139 = arith.constant dense<0.000000e+00> : vector<8x512xf32>
    %519 = tpu.matmul %512, %281, %cst_139 {dimension_numbers = #tpu.dot_dimension_numbers<[1], [0], [0], [1], [0, 0, 1, 1], [], []>} : vector<8x128xf32>, vector<128x512xf32>, vector<8x512xf32> -> vector<8x512xf32>
    %520 = arith.addf %518, %519 : vector<8x512xf32>
    %521 = vector.extract_strided_slice %520 {offsets = [0, 0], sizes = [8, 128], strides = [1, 1]} : vector<8x512xf32> to vector<8x128xf32>
    %522 = arith.negf %521 : vector<8x128xf32>
    %523 = math.exp %522 : vector<8x128xf32>
    %cst_140 = arith.constant 1.000000e+00 : f32
    %524 = vector.broadcast %cst_140 : f32 to vector<8x128xf32>
    %525 = arith.addf %524, %523 : vector<8x128xf32>
    %526 = arith.divf %524, %525 : vector<8x128xf32>
    %527 = vector.extract_strided_slice %520 {offsets = [0, 128], sizes = [8, 128], strides = [1, 1]} : vector<8x512xf32> to vector<8x128xf32>
    %528 = arith.negf %527 : vector<8x128xf32>
    %529 = math.exp %528 : vector<8x128xf32>
    %cst_141 = arith.constant 1.000000e+00 : f32
    %530 = vector.broadcast %cst_141 : f32 to vector<8x128xf32>
    %531 = arith.addf %530, %529 : vector<8x128xf32>
    %532 = arith.divf %530, %531 : vector<8x128xf32>
    %533 = vector.extract_strided_slice %520 {offsets = [0, 256], sizes = [8, 128], strides = [1, 1]} : vector<8x512xf32> to vector<8x128xf32>
    %534 = math.tanh %533 : vector<8x128xf32>
    %535 = vector.extract_strided_slice %520 {offsets = [0, 384], sizes = [8, 128], strides = [1, 1]} : vector<8x512xf32> to vector<8x128xf32>
    %536 = arith.negf %535 : vector<8x128xf32>
    %537 = math.exp %536 : vector<8x128xf32>
    %cst_142 = arith.constant 1.000000e+00 : f32
    %538 = vector.broadcast %cst_142 : f32 to vector<8x128xf32>
    %539 = arith.addf %538, %537 : vector<8x128xf32>
    %540 = arith.divf %538, %539 : vector<8x128xf32>
    %541 = arith.mulf %532, %510 : vector<8x128xf32>
    %542 = arith.mulf %526, %534 : vector<8x128xf32>
    %543 = arith.addf %541, %542 : vector<8x128xf32>
    %544 = math.tanh %543 : vector<8x128xf32>
    %545 = arith.mulf %540, %544 : vector<8x128xf32>
    %546 = arith.index_cast %516 : i32 to index
    %c0_143 = arith.constant 0 : index
    %547 = vector.load %arg10[%546, %c0_143] : memref<64x128xf32, #tpu.memory_space<vmem>>, vector<8x128xf32>
    tpu.vector_store %arg10[%546, %c0_143], %545 {strides = array<i32>} : memref<64x128xf32, #tpu.memory_space<vmem>>, vector<8x128xf32>,
    %c8_i32_144 = arith.constant 8 : i32
    %c0_145 = arith.constant 0 : index
    %c0_146 = arith.constant 0 : index
    %548 = vector.load %arg10[%c0_145, %c0_146] : memref<64x128xf32, #tpu.memory_space<vmem>>, vector<64x128xf32>
    %c0_147 = arith.constant 0 : index
    %c0_148 = arith.constant 0 : index
    %549 = vector.load %arg7[%c0_147, %c0_148] : memref<128x128xf32, #tpu.memory_space<vmem>>, vector<128x128xf32>
    %cst_149 = arith.constant dense<0.000000e+00> : vector<64x128xf32>
    %550 = tpu.matmul %548, %549, %cst_149 {dimension_numbers = #tpu.dot_dimension_numbers<[1], [0], [0], [1], [0, 0, 1, 1], [], []>} : vector<64x128xf32>, vector<128x128xf32>, vector<64x128xf32> -> vector<64x128xf32>
    %c0_150 = arith.constant 0 : index
    %c0_151 = arith.constant 0 : index
    %551 = vector.load %arg8[%c0_150, %c0_151] : memref<1x128xf32, #tpu.memory_space<vmem>>, vector<1x128xf32>
    %552 = vector.broadcast %551 : vector<1x128xf32> to vector<64x128xf32>
    %553 = arith.addf %550, %552 : vector<64x128xf32>
    %c0_152 = arith.constant 0 : index
    %c0_153 = arith.constant 0 : index
    %554 = vector.load %arg9[%c0_152, %c0_153] : memref<64x128xf32, #tpu.memory_space<vmem>>, vector<64x128xf32>
    tpu.vector_store %arg9[%c0_152, %c0_153], %553 {strides = array<i32>} : memref<64x128xf32, #tpu.memory_space<vmem>>, vector<64x128xf32>,
    return
  }
}

</mosaic_0001>

<llo_original>
// kernel: tpu_custom_call.1
$region0: #{tpu_custom_call.1}
  #allocation0 [shape = 'u32[]', space=smem, size = 0x4, offset = 0x4, fixed_abs, tag = 'smem constant byte address 0x4 - core index']
  #allocation1 [shape = 'u32[72,128]{1,0:T(1,128)}', space=vmem, size = 0x9000, scoped, tag = 'internal scratch']
  #allocation2 [shape = 'f32[64,128]{1,0:T(8,128)}', space=vmem, size = 0x8000, scoped, tag = 'scratch operand']
  #allocation3 [shape = 'f32[64,512]{1,0:T(8,128)}', space=vmem, size = 0x20000, scoped, tag = 'scratch operand']
  %s0 = inlined_call_operand.hbm [shape: f32[64,128], index: 0, kind: input, shape index: {}]
  %s1 = inlined_call_operand.hbm [shape: f32[128,512], index: 1, kind: input, shape index: {}]
  %s2 = inlined_call_operand.hbm [shape: f32[128,512], index: 2, kind: input, shape index: {}]
  %s3 = inlined_call_operand.hbm [shape: f32[1,512], index: 3, kind: input, shape index: {}]
  %s4 = inlined_call_operand.hbm [shape: f32[128,512], index: 4, kind: input, shape index: {}]
  %s5 = inlined_call_operand.hbm [shape: f32[128,512], index: 5, kind: input, shape index: {}]
  %s6 = inlined_call_operand.vmem [shape: f32[1,512], index: 6, kind: input, shape index: {}]
  %s7 = inlined_call_operand.hbm [shape: f32[128,128], index: 7, kind: input, shape index: {}]
  %s8 = inlined_call_operand.vmem [shape: f32[1,128], index: 8, kind: input, shape index: {}]
  %s9 = inlined_call_operand.hbm [shape: f32[64,128], index: 9, kind: output, shape index: {}]
  %s10 = sld [smem:[#allocation0]]
  $region74: #{tpu_custom_call.1} parent=0
    _
  %s12 = ssub.s32 1, %s10
  %s13 = scalar_select 0, %s12, %s10
  $region1: #{tpu_custom_call.1} parent=0
    #allocation4 [shape = 'u8[32768]{0}', space=vmem, size = 0x8000, scoped, tag = 'input window, operand 0, single buffered']
    #allocation5 [shape = 's32[1]{0}', space=sflag, size = 0x4, scoped, tag = 'scoped memory for tpu_custom_call.1']
    #allocation6 [shape = 's32[1]{0}', space=sflag, size = 0x4, scoped, tag = 'scoped memory for tpu_custom_call.1']
    #allocation7 [shape = 'u8[262144]{0}', space=vmem, size = 0x40000, scoped, tag = 'input window, operand 1, single buffered']
    #allocation8 [shape = 's32[1]{0}', space=sflag, size = 0x4, scoped, tag = 'scoped memory for tpu_custom_call.1']
    #allocation9 [shape = 'u8[262144]{0}', space=vmem, size = 0x40000, scoped, tag = 'input window, operand 2, single buffered']
    #allocation10 [shape = 'u8[2048]{0}', space=vmem, size = 0x800, scoped, tag = 'input window, operand 3, single buffered']
    #allocation11 [shape = 's32[1]{0}', space=sflag, size = 0x4, scoped, tag = 'scoped memory for tpu_custom_call.1']
    #allocation12 [shape = 'u8[262144]{0}', space=vmem, size = 0x40000, scoped, tag = 'input window, operand 4, single buffered']
    #allocation13 [shape = 'u8[262144]{0}', space=vmem, size = 0x40000, scoped, tag = 'input window, operand 5, single buffered']
    #allocation14 [shape = 's32[1]{0}', space=sflag, size = 0x4, scoped, tag = 'scoped memory for tpu_custom_call.1']
    #allocation15 [shape = 'u8[65536]{0}', space=vmem, size = 0x10000, scoped, tag = 'input window, operand 7, single buffered']
    #allocation16 [shape = 'u8[32768]{0}', space=vmem, size = 0x8000, scoped, tag = 'output window, operand 0, single buffered']
    %14 = vsyncpa [#allocation5], 0
    %15 = vsyncpa [#allocation8], 0
    %16 = vsyncpa [#allocation11], 0
    %17 = vsyncpa [#allocation14], 0
    %18 = vsyncpa [#allocation6], 0
    // Predicated region
    $region2: #{tpu_custom_call.1} parent=1 // pred_check
      _
    $region3: #{tpu_custom_call.1} parent=1 // pred_check_branch
      %20 = sbr.rel (0) target = $region5
    $region4: #{tpu_custom_call.1} parent=1 // pred_region
      %22 = vsyncadd [#allocation5], 0
      %s23 = sshll.u32 %s0, 4
      %s24 = int_to_ptr.hbm [resolvable:$true] %s23
      %s25 = sshll.u32 [#allocation4], 4
      %s26 = int_to_ptr.vmem [resolvable:$true] %s25
      %31 = dma.hbm_to_vmem [thread:$0]  %s24, 1024, %s26, [#allocation5], 128, 128, 8
    $region5: #{tpu_custom_call.1} parent=1 // pred_fallthru
      _
    // Predicated region
    $region6: #{tpu_custom_call.1} parent=1 // pred_check
      _
    $region7: #{tpu_custom_call.1} parent=1 // pred_check_branch
      %33 = sbr.rel (0) target = $region9
    $region8: #{tpu_custom_call.1} parent=1 // pred_region
      %35 = vsyncadd [#allocation8], 0
      %s36 = sshll.u32 %s1, 4
      %s37 = int_to_ptr.hbm [resolvable:$true] %s36
      %s38 = sshll.u32 [#allocation7], 4
      %s39 = int_to_ptr.vmem [resolvable:$true] %s38
      %44 = dma.hbm_to_vmem [thread:$0]  %s37, 8192, %s39, [#allocation8], 512, 512, 32
    $region9: #{tpu_custom_call.1} parent=1 // pred_fallthru
      _
    // Predicated region
    $region10: #{tpu_custom_call.1} parent=1 // pred_check
      _
    $region11: #{tpu_custom_call.1} parent=1 // pred_check_branch
      %46 = sbr.rel (0) target = $region13
    $region12: #{tpu_custom_call.1} parent=1 // pred_region
      %48 = vsyncadd [#allocation8], 0
      %s49 = sshll.u32 %s2, 4
      %s50 = int_to_ptr.hbm [resolvable:$true] %s49
      %s51 = sshll.u32 [#allocation9], 4
      %s52 = int_to_ptr.vmem [resolvable:$true] %s51
      %57 = dma.hbm_to_vmem [thread:$0]  %s50, 8192, %s52, [#allocation8], 512, 512, 32
    $region13: #{tpu_custom_call.1} parent=1 // pred_fallthru
      _
    // Predicated region
    $region14: #{tpu_custom_call.1} parent=1 // pred_check
      _
    $region15: #{tpu_custom_call.1} parent=1 // pred_check_branch
      %59 = sbr.rel (0) target = $region17
    $region16: #{tpu_custom_call.1} parent=1 // pred_region
      %61 = vsyncadd [#allocation11], 0
      %s63 = sshll.u32 %s3, 4
      %s64 = int_to_ptr.hbm [resolvable:$true] %s63
      %s65 = sshll.u32 [#allocation10], 4
      %s66 = int_to_ptr.vmem [resolvable:$true] %s65
      %68 = dma.hbm_to_vmem [thread:$0]  %s64, 64, %s66, [#allocation11]
    $region17: #{tpu_custom_call.1} parent=1 // pred_fallthru
      _
    // Predicated region
    $region18: #{tpu_custom_call.1} parent=1 // pred_check
      _
    $region19: #{tpu_custom_call.1} parent=1 // pred_check_branch
      %70 = sbr.rel (0) target = $region21
    $region20: #{tpu_custom_call.1} parent=1 // pred_region
      %72 = vsyncadd [#allocation11], 0
      %s73 = sshll.u32 %s4, 4
      %s74 = int_to_ptr.hbm [resolvable:$true] %s73
      %s75 = sshll.u32 [#allocation12], 4
      %s76 = int_to_ptr.vmem [resolvable:$true] %s75
      %81 = dma.hbm_to_vmem [thread:$0]  %s74, 8192, %s76, [#allocation11], 512, 512, 32
    $region21: #{tpu_custom_call.1} parent=1 // pred_fallthru
      _
    // Predicated region
    $region22: #{tpu_custom_call.1} parent=1 // pred_check
      _
    $region23: #{tpu_custom_call.1} parent=1 // pred_check_branch
      %83 = sbr.rel (0) target = $region25
    $region24: #{tpu_custom_call.1} parent=1 // pred_region
      %85 = vsyncadd [#allocation14], 0
      %s86 = sshll.u32 %s5, 4
      %s87 = int_to_ptr.hbm [resolvable:$true] %s86
      %s88 = sshll.u32 [#allocation13], 4
      %s89 = int_to_ptr.vmem [resolvable:$true] %s88
      %94 = dma.hbm_to_vmem [thread:$0]  %s87, 8192, %s89, [#allocation14], 512, 512, 32
    $region25: #{tpu_custom_call.1} parent=1 // pred_fallthru
      _
    // Predicated region
    $region26: #{tpu_custom_call.1} parent=1 // pred_check
      _
    $region27: #{tpu_custom_call.1} parent=1 // pred_check_branch
      %96 = sbr.rel (0) target = $region29
    $region28: #{tpu_custom_call.1} parent=1 // pred_region
      _
    $region29: #{tpu_custom_call.1} parent=1 // pred_fallthru
      _
    // Predicated region
    $region30: #{tpu_custom_call.1} parent=1 // pred_check
      _
    $region31: #{tpu_custom_call.1} parent=1 // pred_check_branch
      %98 = sbr.rel (0) target = $region33
    $region32: #{tpu_custom_call.1} parent=1 // pred_region
      %100 = vsyncadd [#allocation14], 0
      %s101 = sshll.u32 %s7, 4
      %s102 = int_to_ptr.hbm [resolvable:$true] %s101
      %s103 = sshll.u32 [#allocation15], 4
      %s104 = int_to_ptr.vmem [resolvable:$true] %s103
      %109 = dma.hbm_to_vmem [thread:$0]  %s102, 2048, %s104, [#allocation14], 128, 128, 8
    $region33: #{tpu_custom_call.1} parent=1 // pred_fallthru
      _
    // Predicated region
    $region34: #{tpu_custom_call.1} parent=1 // pred_check
      _
    $region35: #{tpu_custom_call.1} parent=1 // pred_check_branch
      %111 = sbr.rel (0) target = $region37
    $region36: #{tpu_custom_call.1} parent=1 // pred_region
      _
    $region37: #{tpu_custom_call.1} parent=1 // pred_fallthru
      _
    // Predicated region
    $region38: #{tpu_custom_call.1} parent=1 // pred_check
      _
    $region39: #{tpu_custom_call.1} parent=1 // pred_check_branch
      %113 = sbr.rel (0) target = $region41
    $region40: #{tpu_custom_call.1} parent=1 // pred_region
      %115 = dma.done [#allocation5], 1024
    $region41: #{tpu_custom_call.1} parent=1 // pred_fallthru
      _
    // Predicated region
    $region42: #{tpu_custom_call.1} parent=1 // pred_check
      _
    $region43: #{tpu_custom_call.1} parent=1 // pred_check_branch
      %117 = sbr.rel (0) target = $region45
    $region44: #{tpu_custom_call.1} parent=1 // pred_region
      %119 = dma.done [#allocation8], 8192
    $region45: #{tpu_custom_call.1} parent=1 // pred_fallthru
      _
    // Predicated region
    $region46: #{tpu_custom_call.1} parent=1 // pred_check
      _
    $region47: #{tpu_custom_call.1} parent=1 // pred_check_branch
      %121 = sbr.rel (0) target = $region49
    $region48: #{tpu_custom_call.1} parent=1 // pred_region
      %123 = dma.done [#allocation8], 8192
    $region49: #{tpu_custom_call.1} parent=1 // pred_fallthru
      _
    // Predicated region
    $region50: #{tpu_custom_call.1} parent=1 // pred_check
      _
    $region51: #{tpu_custom_call.1} parent=1 // pred_check_branch
      %125 = sbr.rel (0) target = $region53
    $region52: #{tpu_custom_call.1} parent=1 // pred_region
      %127 = dma.done [#allocation11], 64
    $region53: #{tpu_custom_call.1} parent=1 // pred_fallthru
      _
    // Predicated region
    $region54: #{tpu_custom_call.1} parent=1 // pred_check
      _
    $region55: #{tpu_custom_call.1} parent=1 // pred_check_branch
      %129 = sbr.rel (0) target = $region57
    $region56: #{tpu_custom_call.1} parent=1 // pred_region
      %131 = dma.done [#allocation11], 8192
    $region57: #{tpu_custom_call.1} parent=1 // pred_fallthru
      _
    // Predicated region
    $region58: #{tpu_custom_call.1} parent=1 // pred_check
      _
    $region59: #{tpu_custom_call.1} parent=1 // pred_check_branch
      %133 = sbr.rel (0) target = $region61
    $region60: #{tpu_custom_call.1} parent=1 // pred_region
      %135 = dma.done [#allocation14], 8192
    $region61: #{tpu_custom_call.1} parent=1 // pred_fallthru
      _
    // Predicated region
    $region62: #{tpu_custom_call.1} parent=1 // pred_check
      _
    $region63: #{tpu_custom_call.1} parent=1 // pred_check_branch
      %137 = sbr.rel (0) target = $region65
    $region64: #{tpu_custom_call.1} parent=1 // pred_region
      %139 = dma.done [#allocation14], 2048
    $region65: #{tpu_custom_call.1} parent=1 // pred_fallthru
      _
    %v140 = vld [vmem:[#allocation4] sm:$0xff]
    %v141 = vld [vmem:[#allocation4 + $0x8] sm:$0xff]
    %v142 = vld [vmem:[#allocation4 + $0x10] sm:$0xff]
    %v143 = vld [vmem:[#allocation4 + $0x18] sm:$0xff]
    %v144 = vld [vmem:[#allocation4 + $0x20] sm:$0xff]
    %v145 = vld [vmem:[#allocation4 + $0x28] sm:$0xff]
    %v146 = vld [vmem:[#allocation4 + $0x30] sm:$0xff]
    %v147 = vld [vmem:[#allocation4 + $0x38] sm:$0xff]
    %v148 = vld [vmem:[#allocation7] sm:$0xff]
    %v149 = vld [vmem:[#allocation7 + $0x8] sm:$0xff]
    %v150 = vld [vmem:[#allocation7 + $0x10] sm:$0xff]
    %v151 = vld [vmem:[#allocation7 + $0x18] sm:$0xff]
    %v152 = vld [vmem:[#allocation7 + $0x20] sm:$0xff]
    %v153 = vld [vmem:[#allocation7 + $0x28] sm:$0xff]
    %v154 = vld [vmem:[#allocation7 + $0x30] sm:$0xff]
    %v155 = vld [vmem:[#allocation7 + $0x38] sm:$0xff]
    %v156 = vld [vmem:[#allocation7 + $0x40] sm:$0xff]
    %v157 = vld [vmem:[#allocation7 + $0x48] sm:$0xff]
    %v158 = vld [vmem:[#allocation7 + $0x50] sm:$0xff]
    %v159 = vld [vmem:[#allocation7 + $0x58] sm:$0xff]
    %v160 = vld [vmem:[#allocation7 + $0x60] sm:$0xff]
    %v161 = vld [vmem:[#allocation7 + $0x68] sm:$0xff]
    %v162 = vld [vmem:[#allocation7 + $0x70] sm:$0xff]
    %v163 = vld [vmem:[#allocation7 + $0x78] sm:$0xff]
    %v164 = vld [vmem:[#allocation7 + $0x80] sm:$0xff]
    %v165 = vld [vmem:[#allocation7 + $0x88] sm:$0xff]
    %v166 = vld [vmem:[#allocation7 + $0x90] sm:$0xff]
    %v167 = vld [vmem:[#allocation7 + $0x98] sm:$0xff]
    %v168 = vld [vmem:[#allocation7 + $0xa0] sm:$0xff]
    %v169 = vld [vmem:[#allocation7 + $0xa8] sm:$0xff]
    %v170 = vld [vmem:[#allocation7 + $0xb0] sm:$0xff]
    %v171 = vld [vmem:[#allocation7 + $0xb8] sm:$0xff]
    %v172 = vld [vmem:[#allocation7 + $0xc0] sm:$0xff]
    %v173 = vld [vmem:[#allocation7 + $0xc8] sm:$0xff]
    %v174 = vld [vmem:[#allocation7 + $0xd0] sm:$0xff]
    %v175 = vld [vmem:[#allocation7 + $0xd8] sm:$0xff]
    %v176 = vld [vmem:[#allocation7 + $0xe0] sm:$0xff]
    %v177 = vld [vmem:[#allocation7 + $0xe8] sm:$0xff]
    %v178 = vld [vmem:[#allocation7 + $0xf0] sm:$0xff]
    %v179 = vld [vmem:[#allocation7 + $0xf8] sm:$0xff]
    %v180 = vld [vmem:[#allocation7 + $0x100] sm:$0xff]
    %v181 = vld [vmem:[#allocation7 + $0x108] sm:$0xff]
    %v182 = vld [vmem:[#allocation7 + $0x110] sm:$0xff]
    %v183 = vld [vmem:[#allocation7 + $0x118] sm:$0xff]
    %v184 = vld [vmem:[#allocation7 + $0x120] sm:$0xff]
    %v185 = vld [vmem:[#allocation7 + $0x128] sm:$0xff]
    %v186 = vld [vmem:[#allocation7 + $0x130] sm:$0xff]
    %v187 = vld [vmem:[#allocation7 + $0x138] sm:$0xff]
    %v188 = vld [vmem:[#allocation7 + $0x140] sm:$0xff]
    %v189 = vld [vmem:[#allocation7 + $0x148] sm:$0xff]
    %v190 = vld [vmem:[#allocation7 + $0x150] sm:$0xff]
    %v191 = vld [vmem:[#allocation7 + $0x158] sm:$0xff]
    %v192 = vld [vmem:[#allocation7 + $0x160] sm:$0xff]
    %v193 = vld [vmem:[#allocation7 + $0x168] sm:$0xff]
    %v194 = vld [vmem:[#allocation7 + $0x170] sm:$0xff]
    %v195 = vld [vmem:[#allocation7 + $0x178] sm:$0xff]
    %v196 = vld [vmem:[#allocation7 + $0x180] sm:$0xff]
    %v197 = vld [vmem:[#allocation7 + $0x188] sm:$0xff]
    %v198 = vld [vmem:[#allocation7 + $0x190] sm:$0xff]
    %v199 = vld [vmem:[#allocation7 + $0x198] sm:$0xff]
    %v200 = vld [vmem:[#allocation7 + $0x1a0] sm:$0xff]
    %v201 = vld [vmem:[#allocation7 + $0x1a8] sm:$0xff]
    %v202 = vld [vmem:[#allocation7 + $0x1b0] sm:$0xff]
    %v203 = vld [vmem:[#allocation7 + $0x1b8] sm:$0xff]
    %v204 = vld [vmem:[#allocation7 + $0x1c0] sm:$0xff]
    %v205 = vld [vmem:[#allocation7 + $0x1c8] sm:$0xff]
    %v206 = vld [vmem:[#allocation7 + $0x1d0] sm:$0xff]
    %v207 = vld [vmem:[#allocation7 + $0x1d8] sm:$0xff]
    %v208 = vld [vmem:[#allocation7 + $0x1e0] sm:$0xff]
    %v209 = vld [vmem:[#allocation7 + $0x1e8] sm:$0xff]
    %v210 = vld [vmem:[#allocation7 + $0x1f0] sm:$0xff]
    %v211 = vld [vmem:[#allocation7 + $0x1f8] sm:$0xff]
    %v212 = vld [vmem:[#allocation10] sm:$0xf]
    %v214 = vperm.slane %v212, 0
    %v215 = vperm.slane %v212, 1
    %v216 = vperm.slane %v212, 2
    %v217 = vperm.slane %v212, 3
    %222 = vmatpush.msra.mxu0 %v208
    %223 = vmatpush.msra.mxu0 %v204
    %224 = vmatpush.msra.mxu0 %v200
    %225 = vmatpush.msra.mxu0 %v196
    %226 = vmatpush.msra.mxu0 %v192
    %227 = vmatpush.msra.mxu0 %v188
    %228 = vmatpush.msra.mxu0 %v184
    %229 = vmatpush.msra.mxu0 %v180
    %230 = vmatpush.msra.mxu0 %v176
    %231 = vmatpush.msra.mxu0 %v172
    %232 = vmatpush.msra.mxu0 %v168
    %233 = vmatpush.msra.mxu0 %v164
    %234 = vmatpush.msra.mxu0 %v160
    %235 = vmatpush.msra.mxu0 %v156
    %236 = vmatpush.msra.mxu0 %v152
    %237 = vmatpush.msra.mxu0 %v148
    %238 = vmatmul.f32.gmra.mxu0 %v140
    %v239 = vpop.f32.mrf.mxu0
    %v240 = vadd.f32 %v214, %v239
    %241 = vmatmul.f32.gmra.mxu0 %v141
    %v242 = vpop.f32.mrf.mxu0
    %v243 = vadd.f32 %v214, %v242
    %244 = vmatmul.f32.gmra.mxu0 %v142
    %v245 = vpop.f32.mrf.mxu0
    %v246 = vadd.f32 %v214, %v245
    %247 = vmatmul.f32.gmra.mxu0 %v143
    %v248 = vpop.f32.mrf.mxu0
    %v249 = vadd.f32 %v214, %v248
    %250 = vmatmul.f32.gmra.mxu0 %v144
    %v251 = vpop.f32.mrf.mxu0
    %v252 = vadd.f32 %v214, %v251
    %253 = vmatmul.f32.gmra.mxu0 %v145
    %v254 = vpop.f32.mrf.mxu0
    %v255 = vadd.f32 %v214, %v254
    %256 = vmatmul.f32.gmra.mxu0 %v146
    %v257 = vpop.f32.mrf.mxu0
    %v258 = vadd.f32 %v214, %v257
    %259 = vmatmul.f32.gmra.mxu0 %v147
    %v260 = vpop.f32.mrf.mxu0
    %v261 = vadd.f32 %v214, %v260
    %262 = vdwg.mxu0
    %263 = vmatpush.msra.mxu0 %v209
    %264 = vmatpush.msra.mxu0 %v205
    %265 = vmatpush.msra.mxu0 %v201
    %266 = vmatpush.msra.mxu0 %v197
    %267 = vmatpush.msra.mxu0 %v193
    %268 = vmatpush.msra.mxu0 %v189
    %269 = vmatpush.msra.mxu0 %v185
    %270 = vmatpush.msra.mxu0 %v181
    %271 = vmatpush.msra.mxu0 %v177
    %272 = vmatpush.msra.mxu0 %v173
    %273 = vmatpush.msra.mxu0 %v169
    %274 = vmatpush.msra.mxu0 %v165
    %275 = vmatpush.msra.mxu0 %v161
    %276 = vmatpush.msra.mxu0 %v157
    %277 = vmatpush.msra.mxu0 %v153
    %278 = vmatpush.msra.mxu0 %v149
    %279 = vmatmul.f32.gmra.mxu0 %v140
    %v280 = vpop.f32.mrf.mxu0
    %v281 = vadd.f32 %v215, %v280
    %282 = vmatmul.f32.gmra.mxu0 %v141
    %v283 = vpop.f32.mrf.mxu0
    %v284 = vadd.f32 %v215, %v283
    %285 = vmatmul.f32.gmra.mxu0 %v142
    %v286 = vpop.f32.mrf.mxu0
    %v287 = vadd.f32 %v215, %v286
    %288 = vmatmul.f32.gmra.mxu0 %v143
    %v289 = vpop.f32.mrf.mxu0
    %v290 = vadd.f32 %v215, %v289
    %291 = vmatmul.f32.gmra.mxu0 %v144
    %v292 = vpop.f32.mrf.mxu0
    %v293 = vadd.f32 %v215, %v292
    %294 = vmatmul.f32.gmra.mxu0 %v145
    %v295 = vpop.f32.mrf.mxu0
    %v296 = vadd.f32 %v215, %v295
    %297 = vmatmul.f32.gmra.mxu0 %v146
    %v298 = vpop.f32.mrf.mxu0
    %v299 = vadd.f32 %v215, %v298
    %300 = vmatmul.f32.gmra.mxu0 %v147
    %v301 = vpop.f32.mrf.mxu0
    %v302 = vadd.f32 %v215, %v301
    %303 = vdwg.mxu0
    %304 = vmatpush.msra.mxu0 %v210
    %305 = vmatpush.msra.mxu0 %v206
    %306 = vmatpush.msra.mxu0 %v202
    %307 = vmatpush.msra.mxu0 %v198
    %308 = vmatpush.msra.mxu0 %v194
    %309 = vmatpush.msra.mxu0 %v190
    %310 = vmatpush.msra.mxu0 %v186
    %311 = vmatpush.msra.mxu0 %v182
    %312 = vmatpush.msra.mxu0 %v178
    %313 = vmatpush.msra.mxu0 %v174
    %314 = vmatpush.msra.mxu0 %v170
    %315 = vmatpush.msra.mxu0 %v166
    %316 = vmatpush.msra.mxu0 %v162
    %317 = vmatpush.msra.mxu0 %v158
    %318 = vmatpush.msra.mxu0 %v154
    %319 = vmatpush.msra.mxu0 %v150
    %320 = vmatmul.f32.gmra.mxu0 %v140
    %v321 = vpop.f32.mrf.mxu0
    %v322 = vadd.f32 %v216, %v321
    %323 = vmatmul.f32.gmra.mxu0 %v141
    %v324 = vpop.f32.mrf.mxu0
    %v325 = vadd.f32 %v216, %v324
    %326 = vmatmul.f32.gmra.mxu0 %v142
    %v327 = vpop.f32.mrf.mxu0
    %v328 = vadd.f32 %v216, %v327
    %329 = vmatmul.f32.gmra.mxu0 %v143
    %v330 = vpop.f32.mrf.mxu0
    %v331 = vadd.f32 %v216, %v330
    %332 = vmatmul.f32.gmra.mxu0 %v144
    %v333 = vpop.f32.mrf.mxu0
    %v334 = vadd.f32 %v216, %v333
    %335 = vmatmul.f32.gmra.mxu0 %v145
    %v336 = vpop.f32.mrf.mxu0
    %v337 = vadd.f32 %v216, %v336
    %338 = vmatmul.f32.gmra.mxu0 %v146
    %v339 = vpop.f32.mrf.mxu0
    %v340 = vadd.f32 %v216, %v339
    %341 = vmatmul.f32.gmra.mxu0 %v147
    %v342 = vpop.f32.mrf.mxu0
    %v343 = vadd.f32 %v216, %v342
    %344 = vdwg.mxu0
    %345 = vmatpush.msra.mxu0 %v211
    %346 = vmatpush.msra.mxu0 %v207
    %347 = vmatpush.msra.mxu0 %v203
    %348 = vmatpush.msra.mxu0 %v199
    %349 = vmatpush.msra.mxu0 %v195
    %350 = vmatpush.msra.mxu0 %v191
    %351 = vmatpush.msra.mxu0 %v187
    %352 = vmatpush.msra.mxu0 %v183
    %353 = vmatpush.msra.mxu0 %v179
    %354 = vmatpush.msra.mxu0 %v175
    %355 = vmatpush.msra.mxu0 %v171
    %356 = vmatpush.msra.mxu0 %v167
    %357 = vmatpush.msra.mxu0 %v163
    %358 = vmatpush.msra.mxu0 %v159
    %359 = vmatpush.msra.mxu0 %v155
    %360 = vmatpush.msra.mxu0 %v151
    %361 = vmatmul.f32.gmra.mxu0 %v140
    %v362 = vpop.f32.mrf.mxu0
    %v363 = vadd.f32 %v217, %v362
    %364 = vmatmul.f32.gmra.mxu0 %v141
    %v365 = vpop.f32.mrf.mxu0
    %v366 = vadd.f32 %v217, %v365
    %367 = vmatmul.f32.gmra.mxu0 %v142
    %v368 = vpop.f32.mrf.mxu0
    %v369 = vadd.f32 %v217, %v368
    %370 = vmatmul.f32.gmra.mxu0 %v143
    %v371 = vpop.f32.mrf.mxu0
    %v372 = vadd.f32 %v217, %v371
    %373 = vmatmul.f32.gmra.mxu0 %v144
    %v374 = vpop.f32.mrf.mxu0
    %v375 = vadd.f32 %v217, %v374
    %376 = vmatmul.f32.gmra.mxu0 %v145
    %v377 = vpop.f32.mrf.mxu0
    %v378 = vadd.f32 %v217, %v377
    %379 = vmatmul.f32.gmra.mxu0 %v146
    %v380 = vpop.f32.mrf.mxu0
    %v381 = vadd.f32 %v217, %v380
    %382 = vmatmul.f32.gmra.mxu0 %v147
    %v383 = vpop.f32.mrf.mxu0
    %v384 = vadd.f32 %v217, %v383
    %385 = vdwg.mxu0
    %386 = vst [vmem:[#allocation3] sm:$0xff] %v240
    %387 = vst [vmem:[#allocation3 + $0x8] sm:$0xff] %v281
    %388 = vst [vmem:[#allocation3 + $0x10] sm:$0xff] %v322
    %389 = vst [vmem:[#allocation3 + $0x18] sm:$0xff] %v363
    %390 = vst [vmem:[#allocation3 + $0x20] sm:$0xff] %v243
    %391 = vst [vmem:[#allocation3 + $0x28] sm:$0xff] %v284
    %392 = vst [vmem:[#allocation3 + $0x30] sm:$0xff] %v325
    %393 = vst [vmem:[#allocation3 + $0x38] sm:$0xff] %v366
    %394 = vst [vmem:[#allocation3 + $0x40] sm:$0xff] %v246
    %395 = vst [vmem:[#allocation3 + $0x48] sm:$0xff] %v287
    %396 = vst [vmem:[#allocation3 + $0x50] sm:$0xff] %v328
    %397 = vst [vmem:[#allocation3 + $0x58] sm:$0xff] %v369
    %398 = vst [vmem:[#allocation3 + $0x60] sm:$0xff] %v249
    %399 = vst [vmem:[#allocation3 + $0x68] sm:$0xff] %v290
    %400 = vst [vmem:[#allocation3 + $0x70] sm:$0xff] %v331
    %401 = vst [vmem:[#allocation3 + $0x78] sm:$0xff] %v372
    %402 = vst [vmem:[#allocation3 + $0x80] sm:$0xff] %v252
    %403 = vst [vmem:[#allocation3 + $0x88] sm:$0xff] %v293
    %404 = vst [vmem:[#allocation3 + $0x90] sm:$0xff] %v334
    %405 = vst [vmem:[#allocation3 + $0x98] sm:$0xff] %v375
    %406 = vst [vmem:[#allocation3 + $0xa0] sm:$0xff] %v255
    %407 = vst [vmem:[#allocation3 + $0xa8] sm:$0xff] %v296
    %408 = vst [vmem:[#allocation3 + $0xb0] sm:$0xff] %v337
    %409 = vst [vmem:[#allocation3 + $0xb8] sm:$0xff] %v378
    %410 = vst [vmem:[#allocation3 + $0xc0] sm:$0xff] %v258
    %411 = vst [vmem:[#allocation3 + $0xc8] sm:$0xff] %v299
    %412 = vst [vmem:[#allocation3 + $0xd0] sm:$0xff] %v340
    %413 = vst [vmem:[#allocation3 + $0xd8] sm:$0xff] %v381
    %414 = vst [vmem:[#allocation3 + $0xe0] sm:$0xff] %v261
    %415 = vst [vmem:[#allocation3 + $0xe8] sm:$0xff] %v302
    %416 = vst [vmem:[#allocation3 + $0xf0] sm:$0xff] %v343
    %417 = vst [vmem:[#allocation3 + $0xf8] sm:$0xff] %v384
    %v418 = vld [vmem:[#allocation9] sm:$0xff]
    %v419 = vld [vmem:[#allocation9 + $0x8] sm:$0xff]
    %v420 = vld [vmem:[#allocation9 + $0x10] sm:$0xff]
    %v421 = vld [vmem:[#allocation9 + $0x18] sm:$0xff]
    %v422 = vld [vmem:[#allocation9 + $0x20] sm:$0xff]
    %v423 = vld [vmem:[#allocation9 + $0x28] sm:$0xff]
    %v424 = vld [vmem:[#allocation9 + $0x30] sm:$0xff]
    %v425 = vld [vmem:[#allocation9 + $0x38] sm:$0xff]
    %v426 = vld [vmem:[#allocation9 + $0x40] sm:$0xff]
    %v427 = vld [vmem:[#allocation9 + $0x48] sm:$0xff]
    %v428 = vld [vmem:[#allocation9 + $0x50] sm:$0xff]
    %v429 = vld [vmem:[#allocation9 + $0x58] sm:$0xff]
    %v430 = vld [vmem:[#allocation9 + $0x60] sm:$0xff]
    %v431 = vld [vmem:[#allocation9 + $0x68] sm:$0xff]
    %v432 = vld [vmem:[#allocation9 + $0x70] sm:$0xff]
    %v433 = vld [vmem:[#allocation9 + $0x78] sm:$0xff]
    %v434 = vld [vmem:[#allocation9 + $0x80] sm:$0xff]
    %v435 = vld [vmem:[#allocation9 + $0x88] sm:$0xff]
    %v436 = vld [vmem:[#allocation9 + $0x90] sm:$0xff]
    %v437 = vld [vmem:[#allocation9 + $0x98] sm:$0xff]
    %v438 = vld [vmem:[#allocation9 + $0xa0] sm:$0xff]
    %v439 = vld [vmem:[#allocation9 + $0xa8] sm:$0xff]
    %v440 = vld [vmem:[#allocation9 + $0xb0] sm:$0xff]
    %v441 = vld [vmem:[#allocation9 + $0xb8] sm:$0xff]
    %v442 = vld [vmem:[#allocation9 + $0xc0] sm:$0xff]
    %v443 = vld [vmem:[#allocation9 + $0xc8] sm:$0xff]
    %v444 = vld [vmem:[#allocation9 + $0xd0] sm:$0xff]
    %v445 = vld [vmem:[#allocation9 + $0xd8] sm:$0xff]
    %v446 = vld [vmem:[#allocation9 + $0xe0] sm:$0xff]
    %v447 = vld [vmem:[#allocation9 + $0xe8] sm:$0xff]
    %v448 = vld [vmem:[#allocation9 + $0xf0] sm:$0xff]
    %v449 = vld [vmem:[#allocation9 + $0xf8] sm:$0xff]
    %v450 = vld [vmem:[#allocation9 + $0x100] sm:$0xff]
    %v451 = vld [vmem:[#allocation9 + $0x108] sm:$0xff]
    %v452 = vld [vmem:[#allocation9 + $0x110] sm:$0xff]
    %v453 = vld [vmem:[#allocation9 + $0x118] sm:$0xff]
    %v454 = vld [vmem:[#allocation9 + $0x120] sm:$0xff]
    %v455 = vld [vmem:[#allocation9 + $0x128] sm:$0xff]
    %v456 = vld [vmem:[#allocation9 + $0x130] sm:$0xff]
    %v457 = vld [vmem:[#allocation9 + $0x138] sm:$0xff]
    %v458 = vld [vmem:[#allocation9 + $0x140] sm:$0xff]
    %v459 = vld [vmem:[#allocation9 + $0x148] sm:$0xff]
    %v460 = vld [vmem:[#allocation9 + $0x150] sm:$0xff]
    %v461 = vld [vmem:[#allocation9 + $0x158] sm:$0xff]
    %v462 = vld [vmem:[#allocation9 + $0x160] sm:$0xff]
    %v463 = vld [vmem:[#allocation9 + $0x168] sm:$0xff]
    %v464 = vld [vmem:[#allocation9 + $0x170] sm:$0xff]
    %v465 = vld [vmem:[#allocation9 + $0x178] sm:$0xff]
    %v466 = vld [vmem:[#allocation9 + $0x180] sm:$0xff]
    %v467 = vld [vmem:[#allocation9 + $0x188] sm:$0xff]
    %v468 = vld [vmem:[#allocation9 + $0x190] sm:$0xff]
    %v469 = vld [vmem:[#allocation9 + $0x198] sm:$0xff]
    %v470 = vld [vmem:[#allocation9 + $0x1a0] sm:$0xff]
    %v471 = vld [vmem:[#allocation9 + $0x1a8] sm:$0xff]
    %v472 = vld [vmem:[#allocation9 + $0x1b0] sm:$0xff]
    %v473 = vld [vmem:[#allocation9 + $0x1b8] sm:$0xff]
    %v474 = vld [vmem:[#allocation9 + $0x1c0] sm:$0xff]
    %v475 = vld [vmem:[#allocation9 + $0x1c8] sm:$0xff]
    %v476 = vld [vmem:[#allocation9 + $0x1d0] sm:$0xff]
    %v477 = vld [vmem:[#allocation9 + $0x1d8] sm:$0xff]
    %v478 = vld [vmem:[#allocation9 + $0x1e0] sm:$0xff]
    %v479 = vld [vmem:[#allocation9 + $0x1e8] sm:$0xff]
    %v480 = vld [vmem:[#allocation9 + $0x1f0] sm:$0xff]
    %v481 = vld [vmem:[#allocation9 + $0x1f8] sm:$0xff]
    %s482 = smul.u32 0, 4
    %s483 = smul.addr %s482, 8
    %s484 = scalar_lea.vmem [#allocation3], %s483
    %v485 = vld [vmem:[%s484] sm:$0xff]
    %v486 = vld [vmem:[%s484 + $0x8] sm:$0xff]
    %v487 = vld [vmem:[%s484 + $0x10] sm:$0xff]
    %v488 = vld [vmem:[%s484 + $0x18] sm:$0xff]
    %489 = vmatpush.msra.mxu0 %v478
    %490 = vmatpush.msra.mxu0 %v474
    %491 = vmatpush.msra.mxu0 %v470
    %492 = vmatpush.msra.mxu0 %v466
    %493 = vmatpush.msra.mxu0 %v462
    %494 = vmatpush.msra.mxu0 %v458
    %495 = vmatpush.msra.mxu0 %v454
    %496 = vmatpush.msra.mxu0 %v450
    %497 = vmatpush.msra.mxu0 %v446
    %498 = vmatpush.msra.mxu0 %v442
    %499 = vmatpush.msra.mxu0 %v438
    %500 = vmatpush.msra.mxu0 %v434
    %501 = vmatpush.msra.mxu0 %v430
    %502 = vmatpush.msra.mxu0 %v426
    %503 = vmatpush.msra.mxu0 %v422
    %504 = vmatpush.msra.mxu0 %v418
    %505 = vmatmul.f32.gmra.mxu0 0.0
    %v506 = vpop.f32.mrf.mxu0
    %v507 = vadd.f32 0.0, %v506
    %508 = vdwg.mxu0
    %509 = vmatpush.msra.mxu0 %v479
    %510 = vmatpush.msra.mxu0 %v475
    %511 = vmatpush.msra.mxu0 %v471
    %512 = vmatpush.msra.mxu0 %v467
    %513 = vmatpush.msra.mxu0 %v463
    %514 = vmatpush.msra.mxu0 %v459
    %515 = vmatpush.msra.mxu0 %v455
    %516 = vmatpush.msra.mxu0 %v451
    %517 = vmatpush.msra.mxu0 %v447
    %518 = vmatpush.msra.mxu0 %v443
    %519 = vmatpush.msra.mxu0 %v439
    %520 = vmatpush.msra.mxu0 %v435
    %521 = vmatpush.msra.mxu0 %v431
    %522 = vmatpush.msra.mxu0 %v427
    %523 = vmatpush.msra.mxu0 %v423
    %524 = vmatpush.msra.mxu0 %v419
    %525 = vmatmul.f32.gmra.mxu0 0.0
    %v526 = vpop.f32.mrf.mxu0
    %v527 = vadd.f32 0.0, %v526
    %528 = vdwg.mxu0
    %529 = vmatpush.msra.mxu0 %v480
    %530 = vmatpush.msra.mxu0 %v476
    %531 = vmatpush.msra.mxu0 %v472
    %532 = vmatpush.msra.mxu0 %v468
    %533 = vmatpush.msra.mxu0 %v464
    %534 = vmatpush.msra.mxu0 %v460
    %535 = vmatpush.msra.mxu0 %v456
    %536 = vmatpush.msra.mxu0 %v452
    %537 = vmatpush.msra.mxu0 %v448
    %538 = vmatpush.msra.mxu0 %v444
    %539 = vmatpush.msra.mxu0 %v440
    %540 = vmatpush.msra.mxu0 %v436
    %541 = vmatpush.msra.mxu0 %v432
    %542 = vmatpush.msra.mxu0 %v428
    %543 = vmatpush.msra.mxu0 %v424
    %544 = vmatpush.msra.mxu0 %v420
    %545 = vmatmul.f32.gmra.mxu0 0.0
    %v546 = vpop.f32.mrf.mxu0
    %v547 = vadd.f32 0.0, %v546
    %548 = vdwg.mxu0
    %549 = vmatpush.msra.mxu0 %v481
    %550 = vmatpush.msra.mxu0 %v477
    %551 = vmatpush.msra.mxu0 %v473
    %552 = vmatpush.msra.mxu0 %v469
    %553 = vmatpush.msra.mxu0 %v465
    %554 = vmatpush.msra.mxu0 %v461
    %555 = vmatpush.msra.mxu0 %v457
    %556 = vmatpush.msra.mxu0 %v453
    %557 = vmatpush.msra.mxu0 %v449
    %558 = vmatpush.msra.mxu0 %v445
    %559 = vmatpush.msra.mxu0 %v441
    %560 = vmatpush.msra.mxu0 %v437
    %561 = vmatpush.msra.mxu0 %v433
    %562 = vmatpush.msra.mxu0 %v429
    %563 = vmatpush.msra.mxu0 %v425
    %564 = vmatpush.msra.mxu0 %v421
    %565 = vmatmul.f32.gmra.mxu0 0.0
    %v566 = vpop.f32.mrf.mxu0
    %v567 = vadd.f32 0.0, %v566
    %568 = vdwg.mxu0
    %v569 = vadd.f32 %v485, %v507
    %v570 = vadd.f32 %v486, %v527
    %v571 = vadd.f32 %v487, %v547
    %v572 = vadd.f32 %v488, %v567
    %v573 = vxor.u32 %v569, 2147483648
    %v574 = vmul.f32 %v573, 1.442695
    %v575 = vpow.pop %v574
    %v576 = vadd.f32 %v575, 1.0
    %v577 = vrcp.pop %v576
    %v578 = vmul.f32 %v576, %v577
    %v579 = vsub.f32 1.0, %v578
    %v580 = vmul.f32 %v577, %v579
    %v581 = vadd.f32 %v577, %v580
    %vm582 = vweird.f32 %v576
    %vm583 = vweird.f32 %v577
    %vm584 = vmor %vm582, %vm583
    %v585 = vsel %vm584, %v577, %v581
    %v586 = vand.u32 2147483647, %v576
    %vm587 = vcmp.eq.f32.partialorder %v586, 8.507059e+37
    %v588 = vand.u32 %v576, 2147483648
    %v589 = vor.u32 1.1754944e-38, %v588
    %v590 = vsel %vm587, %v589, %v585
    %v591 = vmul.f32 1.0, %v590
    %v592 = vxor.u32 %v570, 2147483648
    %v593 = vmul.f32 %v592, 1.442695
    %v594 = vpow.pop %v593
    %v595 = vadd.f32 %v594, 1.0
    %v596 = vrcp.pop %v595
    %v597 = vmul.f32 %v595, %v596
    %v598 = vsub.f32 1.0, %v597
    %v599 = vmul.f32 %v596, %v598
    %v600 = vadd.f32 %v596, %v599
    %vm601 = vweird.f32 %v595
    %vm602 = vweird.f32 %v596
    %vm603 = vmor %vm601, %vm602
    %v604 = vsel %vm603, %v596, %v600
    %v605 = vand.u32 2147483647, %v595
    %vm606 = vcmp.eq.f32.partialorder %v605, 8.507059e+37
    %v607 = vand.u32 %v595, 2147483648
    %v608 = vor.u32 1.1754944e-38, %v607
    %v609 = vsel %vm606, %v608, %v604
    %v610 = vmul.f32 1.0, %v609
    %v611 = vtanh.pop %v571
    %v612 = vxor.u32 %v572, 2147483648
    %v613 = vmul.f32 %v612, 1.442695
    %v614 = vpow.pop %v613
    %v615 = vadd.f32 %v614, 1.0
    %v616 = vrcp.pop %v615
    %v617 = vmul.f32 %v615, %v616
    %v618 = vsub.f32 1.0, %v617
    %v619 = vmul.f32 %v616, %v618
    %v620 = vadd.f32 %v616, %v619
    %vm621 = vweird.f32 %v615
    %vm622 = vweird.f32 %v616
    %vm623 = vmor %vm621, %vm622
    %v624 = vsel %vm623, %v616, %v620
    %v625 = vand.u32 2147483647, %v615
    %vm626 = vcmp.eq.f32.partialorder %v625, 8.507059e+37
    %v627 = vand.u32 %v615, 2147483648
    %v628 = vor.u32 1.1754944e-38, %v627
    %v629 = vsel %vm626, %v628, %v624
    %v630 = vmul.f32 1.0, %v629
    %v631 = vmul.f32 %v610, 0.0
    %v632 = vmul.f32 %v591, %v611
    %v633 = vadd.f32 %v631, %v632
    %v634 = vtanh.pop %v633
    %v635 = vmul.f32 %v630, %v634
    %636 = vst [vmem:[#allocation2] sm:$0xff] %v635
    %s637 = smul.u32 1, 4
    %s638 = smul.addr %s637, 8
    %s639 = scalar_lea.vmem [#allocation3], %s638
    %v640 = vld [vmem:[%s639] sm:$0xff]
    %v641 = vld [vmem:[%s639 + $0x8] sm:$0xff]
    %v642 = vld [vmem:[%s639 + $0x10] sm:$0xff]
    %v643 = vld [vmem:[%s639 + $0x18] sm:$0xff]
    %644 = vmatpush.msra.mxu0 %v478
    %645 = vmatpush.msra.mxu0 %v474
    %646 = vmatpush.msra.mxu0 %v470
    %647 = vmatpush.msra.mxu0 %v466
    %648 = vmatpush.msra.mxu0 %v462
    %649 = vmatpush.msra.mxu0 %v458
    %650 = vmatpush.msra.mxu0 %v454
    %651 = vmatpush.msra.mxu0 %v450
    %652 = vmatpush.msra.mxu0 %v446
    %653 = vmatpush.msra.mxu0 %v442
    %654 = vmatpush.msra.mxu0 %v438
    %655 = vmatpush.msra.mxu0 %v434
    %656 = vmatpush.msra.mxu0 %v430
    %657 = vmatpush.msra.mxu0 %v426
    %658 = vmatpush.msra.mxu0 %v422
    %659 = vmatpush.msra.mxu0 %v418
    %660 = vmatmul.f32.gmra.mxu0 %v635
    %v661 = vpop.f32.mrf.mxu0
    %v662 = vadd.f32 0.0, %v661
    %663 = vdwg.mxu0
    %664 = vmatpush.msra.mxu0 %v479
    %665 = vmatpush.msra.mxu0 %v475
    %666 = vmatpush.msra.mxu0 %v471
    %667 = vmatpush.msra.mxu0 %v467
    %668 = vmatpush.msra.mxu0 %v463
    %669 = vmatpush.msra.mxu0 %v459
    %670 = vmatpush.msra.mxu0 %v455
    %671 = vmatpush.msra.mxu0 %v451
    %672 = vmatpush.msra.mxu0 %v447
    %673 = vmatpush.msra.mxu0 %v443
    %674 = vmatpush.msra.mxu0 %v439
    %675 = vmatpush.msra.mxu0 %v435
    %676 = vmatpush.msra.mxu0 %v431
    %677 = vmatpush.msra.mxu0 %v427
    %678 = vmatpush.msra.mxu0 %v423
    %679 = vmatpush.msra.mxu0 %v419
    %680 = vmatmul.f32.gmra.mxu0 %v635
    %v681 = vpop.f32.mrf.mxu0
    %v682 = vadd.f32 0.0, %v681
    %683 = vdwg.mxu0
    %684 = vmatpush.msra.mxu0 %v480
    %685 = vmatpush.msra.mxu0 %v476
    %686 = vmatpush.msra.mxu0 %v472
    %687 = vmatpush.msra.mxu0 %v468
    %688 = vmatpush.msra.mxu0 %v464
    %689 = vmatpush.msra.mxu0 %v460
    %690 = vmatpush.msra.mxu0 %v456
    %691 = vmatpush.msra.mxu0 %v452
    %692 = vmatpush.msra.mxu0 %v448
    %693 = vmatpush.msra.mxu0 %v444
    %694 = vmatpush.msra.mxu0 %v440
    %695 = vmatpush.msra.mxu0 %v436
    %696 = vmatpush.msra.mxu0 %v432
    %697 = vmatpush.msra.mxu0 %v428
    %698 = vmatpush.msra.mxu0 %v424
    %699 = vmatpush.msra.mxu0 %v420
    %700 = vmatmul.f32.gmra.mxu0 %v635
    %v701 = vpop.f32.mrf.mxu0
    %v702 = vadd.f32 0.0, %v701
    %703 = vdwg.mxu0
    %704 = vmatpush.msra.mxu0 %v481
    %705 = vmatpush.msra.mxu0 %v477
    %706 = vmatpush.msra.mxu0 %v473
    %707 = vmatpush.msra.mxu0 %v469
    %708 = vmatpush.msra.mxu0 %v465
    %709 = vmatpush.msra.mxu0 %v461
    %710 = vmatpush.msra.mxu0 %v457
    %711 = vmatpush.msra.mxu0 %v453
    %712 = vmatpush.msra.mxu0 %v449
    %713 = vmatpush.msra.mxu0 %v445
    %714 = vmatpush.msra.mxu0 %v441
    %715 = vmatpush.msra.mxu0 %v437
    %716 = vmatpush.msra.mxu0 %v433
    %717 = vmatpush.msra.mxu0 %v429
    %718 = vmatpush.msra.mxu0 %v425
    %719 = vmatpush.msra.mxu0 %v421
    %720 = vmatmul.f32.gmra.mxu0 %v635
    %v721 = vpop.f32.mrf.mxu0
    %v722 = vadd.f32 0.0, %v721
    %723 = vdwg.mxu0
    %v724 = vadd.f32 %v640, %v662
    %v725 = vadd.f32 %v641, %v682
    %v726 = vadd.f32 %v642, %v702
    %v727 = vadd.f32 %v643, %v722
    %v728 = vxor.u32 %v724, 2147483648
    %v729 = vmul.f32 %v728, 1.442695
    %v730 = vpow.pop %v729
    %v731 = vadd.f32 %v730, 1.0
    %v732 = vrcp.pop %v731
    %v733 = vmul.f32 %v731, %v732
    %v734 = vsub.f32 1.0, %v733
    %v735 = vmul.f32 %v732, %v734
    %v736 = vadd.f32 %v732, %v735
    %vm737 = vweird.f32 %v731
    %vm738 = vweird.f32 %v732
    %vm739 = vmor %vm737, %vm738
    %v740 = vsel %vm739, %v732, %v736
    %v741 = vand.u32 2147483647, %v731
    %vm742 = vcmp.eq.f32.partialorder %v741, 8.507059e+37
    %v743 = vand.u32 %v731, 2147483648
    %v744 = vor.u32 1.1754944e-38, %v743
    %v745 = vsel %vm742, %v744, %v740
    %v746 = vmul.f32 1.0, %v745
    %v747 = vxor.u32 %v725, 2147483648
    %v748 = vmul.f32 %v747, 1.442695
    %v749 = vpow.pop %v748
    %v750 = vadd.f32 %v749, 1.0
    %v751 = vrcp.pop %v750
    %v752 = vmul.f32 %v750, %v751
    %v753 = vsub.f32 1.0, %v752
    %v754 = vmul.f32 %v751, %v753
    %v755 = vadd.f32 %v751, %v754
    %vm756 = vweird.f32 %v750
    %vm757 = vweird.f32 %v751
    %vm758 = vmor %vm756, %vm757
    %v759 = vsel %vm758, %v751, %v755
    %v760 = vand.u32 2147483647, %v750
    %vm761 = vcmp.eq.f32.partialorder %v760, 8.507059e+37
    %v762 = vand.u32 %v750, 2147483648
    %v763 = vor.u32 1.1754944e-38, %v762
    %v764 = vsel %vm761, %v763, %v759
    %v765 = vmul.f32 1.0, %v764
    %v766 = vtanh.pop %v726
    %v767 = vxor.u32 %v727, 2147483648
    %v768 = vmul.f32 %v767, 1.442695
    %v769 = vpow.pop %v768
    %v770 = vadd.f32 %v769, 1.0
    %v771 = vrcp.pop %v770
    %v772 = vmul.f32 %v770, %v771
    %v773 = vsub.f32 1.0, %v772
    %v774 = vmul.f32 %v771, %v773
    %v775 = vadd.f32 %v771, %v774
    %vm776 = vweird.f32 %v770
    %vm777 = vweird.f32 %v771
    %vm778 = vmor %vm776, %vm777
    %v779 = vsel %vm778, %v771, %v775
    %v780 = vand.u32 2147483647, %v770
    %vm781 = vcmp.eq.f32.partialorder %v780, 8.507059e+37
    %v782 = vand.u32 %v770, 2147483648
    %v783 = vor.u32 1.1754944e-38, %v782
    %v784 = vsel %vm781, %v783, %v779
    %v785 = vmul.f32 1.0, %v784
    %v786 = vmul.f32 %v765, %v633
    %v787 = vmul.f32 %v746, %v766
    %v788 = vadd.f32 %v786, %v787
    %v789 = vtanh.pop %v788
    %v790 = vmul.f32 %v785, %v789
    %s791 = scalar_lea.vmem [#allocation2], 8
    %792 = vst [vmem:[%s791] sm:$0xff] %v790
    %s793 = smul.u32 2, 4
    %s794 = smul.addr %s793, 8
    %s795 = scalar_lea.vmem [#allocation3], %s794
    %v796 = vld [vmem:[%s795] sm:$0xff]
    %v797 = vld [vmem:[%s795 + $0x8] sm:$0xff]
    %v798 = vld [vmem:[%s795 + $0x10] sm:$0xff]
    %v799 = vld [vmem:[%s795 + $0x18] sm:$0xff]
    %800 = vmatpush.msra.mxu0 %v478
    %801 = vmatpush.msra.mxu0 %v474
    %802 = vmatpush.msra.mxu0 %v470
    %803 = vmatpush.msra.mxu0 %v466
    %804 = vmatpush.msra.mxu0 %v462
    %805 = vmatpush.msra.mxu0 %v458
    %806 = vmatpush.msra.mxu0 %v454
    %807 = vmatpush.msra.mxu0 %v450
    %808 = vmatpush.msra.mxu0 %v446
    %809 = vmatpush.msra.mxu0 %v442
    %810 = vmatpush.msra.mxu0 %v438
    %811 = vmatpush.msra.mxu0 %v434
    %812 = vmatpush.msra.mxu0 %v430
    %813 = vmatpush.msra.mxu0 %v426
    %814 = vmatpush.msra.mxu0 %v422
    %815 = vmatpush.msra.mxu0 %v418
    %816 = vmatmul.f32.gmra.mxu0 %v790
    %v817 = vpop.f32.mrf.mxu0
    %v818 = vadd.f32 0.0, %v817
    %819 = vdwg.mxu0
    %820 = vmatpush.msra.mxu0 %v479
    %821 = vmatpush.msra.mxu0 %v475
    %822 = vmatpush.msra.mxu0 %v471
    %823 = vmatpush.msra.mxu0 %v467
    %824 = vmatpush.msra.mxu0 %v463
    %825 = vmatpush.msra.mxu0 %v459
    %826 = vmatpush.msra.mxu0 %v455
    %827 = vmatpush.msra.mxu0 %v451
    %828 = vmatpush.msra.mxu0 %v447
    %829 = vmatpush.msra.mxu0 %v443
    %830 = vmatpush.msra.mxu0 %v439
    %831 = vmatpush.msra.mxu0 %v435
    %832 = vmatpush.msra.mxu0 %v431
    %833 = vmatpush.msra.mxu0 %v427
    %834 = vmatpush.msra.mxu0 %v423
    %835 = vmatpush.msra.mxu0 %v419
    %836 = vmatmul.f32.gmra.mxu0 %v790
    %v837 = vpop.f32.mrf.mxu0
    %v838 = vadd.f32 0.0, %v837
    %839 = vdwg.mxu0
    %840 = vmatpush.msra.mxu0 %v480
    %841 = vmatpush.msra.mxu0 %v476
    %842 = vmatpush.msra.mxu0 %v472
    %843 = vmatpush.msra.mxu0 %v468
    %844 = vmatpush.msra.mxu0 %v464
    %845 = vmatpush.msra.mxu0 %v460
    %846 = vmatpush.msra.mxu0 %v456
    %847 = vmatpush.msra.mxu0 %v452
    %848 = vmatpush.msra.mxu0 %v448
    %849 = vmatpush.msra.mxu0 %v444
    %850 = vmatpush.msra.mxu0 %v440
    %851 = vmatpush.msra.mxu0 %v436
    %852 = vmatpush.msra.mxu0 %v432
    %853 = vmatpush.msra.mxu0 %v428
    %854 = vmatpush.msra.mxu0 %v424
    %855 = vmatpush.msra.mxu0 %v420
    %856 = vmatmul.f32.gmra.mxu0 %v790
    %v857 = vpop.f32.mrf.mxu0
    %v858 = vadd.f32 0.0, %v857
    %859 = vdwg.mxu0
    %860 = vmatpush.msra.mxu0 %v481
    %861 = vmatpush.msra.mxu0 %v477
    %862 = vmatpush.msra.mxu0 %v473
    %863 = vmatpush.msra.mxu0 %v469
    %864 = vmatpush.msra.mxu0 %v465
    %865 = vmatpush.msra.mxu0 %v461
    %866 = vmatpush.msra.mxu0 %v457
    %867 = vmatpush.msra.mxu0 %v453
    %868 = vmatpush.msra.mxu0 %v449
    %869 = vmatpush.msra.mxu0 %v445
    %870 = vmatpush.msra.mxu0 %v441
    %871 = vmatpush.msra.mxu0 %v437
    %872 = vmatpush.msra.mxu0 %v433
    %873 = vmatpush.msra.mxu0 %v429
    %874 = vmatpush.msra.mxu0 %v425
    %875 = vmatpush.msra.mxu0 %v421
    %876 = vmatmul.f32.gmra.mxu0 %v790
    %v877 = vpop.f32.mrf.mxu0
    %v878 = vadd.f32 0.0, %v877
    %879 = vdwg.mxu0
    %v880 = vadd.f32 %v796, %v818
    %v881 = vadd.f32 %v797, %v838
    %v882 = vadd.f32 %v798, %v858
    %v883 = vadd.f32 %v799, %v878
    %v884 = vxor.u32 %v880, 2147483648
    %v885 = vmul.f32 %v884, 1.442695
    %v886 = vpow.pop %v885
    %v887 = vadd.f32 %v886, 1.0
    %v888 = vrcp.pop %v887
    %v889 = vmul.f32 %v887, %v888
    %v890 = vsub.f32 1.0, %v889
    %v891 = vmul.f32 %v888, %v890
    %v892 = vadd.f32 %v888, %v891
    %vm893 = vweird.f32 %v887
    %vm894 = vweird.f32 %v888
    %vm895 = vmor %vm893, %vm894
    %v896 = vsel %vm895, %v888, %v892
    %v897 = vand.u32 2147483647, %v887
    %vm898 = vcmp.eq.f32.partialorder %v897, 8.507059e+37
    %v899 = vand.u32 %v887, 2147483648
    %v900 = vor.u32 1.1754944e-38, %v899
    %v901 = vsel %vm898, %v900, %v896
    %v902 = vmul.f32 1.0, %v901
    %v903 = vxor.u32 %v881, 2147483648
    %v904 = vmul.f32 %v903, 1.442695
    %v905 = vpow.pop %v904
    %v906 = vadd.f32 %v905, 1.0
    %v907 = vrcp.pop %v906
    %v908 = vmul.f32 %v906, %v907
    %v909 = vsub.f32 1.0, %v908
    %v910 = vmul.f32 %v907, %v909
    %v911 = vadd.f32 %v907, %v910
    %vm912 = vweird.f32 %v906
    %vm913 = vweird.f32 %v907
    %vm914 = vmor %vm912, %vm913
    %v915 = vsel %vm914, %v907, %v911
    %v916 = vand.u32 2147483647, %v906
    %vm917 = vcmp.eq.f32.partialorder %v916, 8.507059e+37
    %v918 = vand.u32 %v906, 2147483648
    %v919 = vor.u32 1.1754944e-38, %v918
    %v920 = vsel %vm917, %v919, %v915
    %v921 = vmul.f32 1.0, %v920
    %v922 = vtanh.pop %v882
    %v923 = vxor.u32 %v883, 2147483648
    %v924 = vmul.f32 %v923, 1.442695
    %v925 = vpow.pop %v924
    %v926 = vadd.f32 %v925, 1.0
    %v927 = vrcp.pop %v926
    %v928 = vmul.f32 %v926, %v927
    %v929 = vsub.f32 1.0, %v928
    %v930 = vmul.f32 %v927, %v929
    %v931 = vadd.f32 %v927, %v930
    %vm932 = vweird.f32 %v926
    %vm933 = vweird.f32 %v927
    %vm934 = vmor %vm932, %vm933
    %v935 = vsel %vm934, %v927, %v931
    %v936 = vand.u32 2147483647, %v926
    %vm937 = vcmp.eq.f32.partialorder %v936, 8.507059e+37
    %v938 = vand.u32 %v926, 2147483648
    %v939 = vor.u32 1.1754944e-38, %v938
    %v940 = vsel %vm937, %v939, %v935
    %v941 = vmul.f32 1.0, %v940
    %v942 = vmul.f32 %v921, %v788
    %v943 = vmul.f32 %v902, %v922
    %v944 = vadd.f32 %v942, %v943
    %v945 = vtanh.pop %v944
    %v946 = vmul.f32 %v941, %v945
    %s947 = scalar_lea.vmem [#allocation2], 16
    %948 = vst [vmem:[%s947] sm:$0xff] %v946
    %s949 = smul.u32 3, 4
    %s950 = smul.addr %s949, 8
    %s951 = scalar_lea.vmem [#allocation3], %s950
    %v952 = vld [vmem:[%s951] sm:$0xff]
    %v953 = vld [vmem:[%s951 + $0x8] sm:$0xff]
    %v954 = vld [vmem:[%s951 + $0x10] sm:$0xff]
    %v955 = vld [vmem:[%s951 + $0x18] sm:$0xff]
    %956 = vmatpush.msra.mxu0 %v478
    %957 = vmatpush.msra.mxu0 %v474
    %958 = vmatpush.msra.mxu0 %v470
    %959 = vmatpush.msra.mxu0 %v466
    %960 = vmatpush.msra.mxu0 %v462
    %961 = vmatpush.msra.mxu0 %v458
    %962 = vmatpush.msra.mxu0 %v454
    %963 = vmatpush.msra.mxu0 %v450
    %964 = vmatpush.msra.mxu0 %v446
    %965 = vmatpush.msra.mxu0 %v442
    %966 = vmatpush.msra.mxu0 %v438
    %967 = vmatpush.msra.mxu0 %v434
    %968 = vmatpush.msra.mxu0 %v430
    %969 = vmatpush.msra.mxu0 %v426
    %970 = vmatpush.msra.mxu0 %v422
    %971 = vmatpush.msra.mxu0 %v418
    %972 = vmatmul.f32.gmra.mxu0 %v946
    %v973 = vpop.f32.mrf.mxu0
    %v974 = vadd.f32 0.0, %v973
    %975 = vdwg.mxu0
    %976 = vmatpush.msra.mxu0 %v479
    %977 = vmatpush.msra.mxu0 %v475
    %978 = vmatpush.msra.mxu0 %v471
    %979 = vmatpush.msra.mxu0 %v467
    %980 = vmatpush.msra.mxu0 %v463
    %981 = vmatpush.msra.mxu0 %v459
    %982 = vmatpush.msra.mxu0 %v455
    %983 = vmatpush.msra.mxu0 %v451
    %984 = vmatpush.msra.mxu0 %v447
    %985 = vmatpush.msra.mxu0 %v443
    %986 = vmatpush.msra.mxu0 %v439
    %987 = vmatpush.msra.mxu0 %v435
    %988 = vmatpush.msra.mxu0 %v431
    %989 = vmatpush.msra.mxu0 %v427
    %990 = vmatpush.msra.mxu0 %v423
    %991 = vmatpush.msra.mxu0 %v419
    %992 = vmatmul.f32.gmra.mxu0 %v946
    %v993 = vpop.f32.mrf.mxu0
    %v994 = vadd.f32 0.0, %v993
    %995 = vdwg.mxu0
    %996 = vmatpush.msra.mxu0 %v480
    %997 = vmatpush.msra.mxu0 %v476
    %998 = vmatpush.msra.mxu0 %v472
    %999 = vmatpush.msra.mxu0 %v468
    %1000 = vmatpush.msra.mxu0 %v464
    %1001 = vmatpush.msra.mxu0 %v460
    %1002 = vmatpush.msra.mxu0 %v456
    %1003 = vmatpush.msra.mxu0 %v452
    %1004 = vmatpush.msra.mxu0 %v448
    %1005 = vmatpush.msra.mxu0 %v444
    %1006 = vmatpush.msra.mxu0 %v440
    %1007 = vmatpush.msra.mxu0 %v436
    %1008 = vmatpush.msra.mxu0 %v432
    %1009 = vmatpush.msra.mxu0 %v428
    %1010 = vmatpush.msra.mxu0 %v424
    %1011 = vmatpush.msra.mxu0 %v420
    %1012 = vmatmul.f32.gmra.mxu0 %v946
    %v1013 = vpop.f32.mrf.mxu0
    %v1014 = vadd.f32 0.0, %v1013
    %1015 = vdwg.mxu0
    %1016 = vmatpush.msra.mxu0 %v481
    %1017 = vmatpush.msra.mxu0 %v477
    %1018 = vmatpush.msra.mxu0 %v473
    %1019 = vmatpush.msra.mxu0 %v469
    %1020 = vmatpush.msra.mxu0 %v465
    %1021 = vmatpush.msra.mxu0 %v461
    %1022 = vmatpush.msra.mxu0 %v457
    %1023 = vmatpush.msra.mxu0 %v453
    %1024 = vmatpush.msra.mxu0 %v449
    %1025 = vmatpush.msra.mxu0 %v445
    %1026 = vmatpush.msra.mxu0 %v441
    %1027 = vmatpush.msra.mxu0 %v437
    %1028 = vmatpush.msra.mxu0 %v433
    %1029 = vmatpush.msra.mxu0 %v429
    %1030 = vmatpush.msra.mxu0 %v425
    %1031 = vmatpush.msra.mxu0 %v421
    %1032 = vmatmul.f32.gmra.mxu0 %v946
    %v1033 = vpop.f32.mrf.mxu0
    %v1034 = vadd.f32 0.0, %v1033
    %1035 = vdwg.mxu0
    %v1036 = vadd.f32 %v952, %v974
    %v1037 = vadd.f32 %v953, %v994
    %v1038 = vadd.f32 %v954, %v1014
    %v1039 = vadd.f32 %v955, %v1034
    %v1040 = vxor.u32 %v1036, 2147483648
    %v1041 = vmul.f32 %v1040, 1.442695
    %v1042 = vpow.pop %v1041
    %v1043 = vadd.f32 %v1042, 1.0
    %v1044 = vrcp.pop %v1043
    %v1045 = vmul.f32 %v1043, %v1044
    %v1046 = vsub.f32 1.0, %v1045
    %v1047 = vmul.f32 %v1044, %v1046
    %v1048 = vadd.f32 %v1044, %v1047
    %vm1049 = vweird.f32 %v1043
    %vm1050 = vweird.f32 %v1044
    %vm1051 = vmor %vm1049, %vm1050
    %v1052 = vsel %vm1051, %v1044, %v1048
    %v1053 = vand.u32 2147483647, %v1043
    %vm1054 = vcmp.eq.f32.partialorder %v1053, 8.507059e+37
    %v1055 = vand.u32 %v1043, 2147483648
    %v1056 = vor.u32 1.1754944e-38, %v1055
    %v1057 = vsel %vm1054, %v1056, %v1052
    %v1058 = vmul.f32 1.0, %v1057
    %v1059 = vxor.u32 %v1037, 2147483648
    %v1060 = vmul.f32 %v1059, 1.442695
    %v1061 = vpow.pop %v1060
    %v1062 = vadd.f32 %v1061, 1.0
    %v1063 = vrcp.pop %v1062
    %v1064 = vmul.f32 %v1062, %v1063
    %v1065 = vsub.f32 1.0, %v1064
    %v1066 = vmul.f32 %v1063, %v1065
    %v1067 = vadd.f32 %v1063, %v1066
    %vm1068 = vweird.f32 %v1062
    %vm1069 = vweird.f32 %v1063
    %vm1070 = vmor %vm1068, %vm1069
    %v1071 = vsel %vm1070, %v1063, %v1067
    %v1072 = vand.u32 2147483647, %v1062
    %vm1073 = vcmp.eq.f32.partialorder %v1072, 8.507059e+37
    %v1074 = vand.u32 %v1062, 2147483648
    %v1075 = vor.u32 1.1754944e-38, %v1074
    %v1076 = vsel %vm1073, %v1075, %v1071
    %v1077 = vmul.f32 1.0, %v1076
    %v1078 = vtanh.pop %v1038
    %v1079 = vxor.u32 %v1039, 2147483648
    %v1080 = vmul.f32 %v1079, 1.442695
    %v1081 = vpow.pop %v1080
    %v1082 = vadd.f32 %v1081, 1.0
    %v1083 = vrcp.pop %v1082
    %v1084 = vmul.f32 %v1082, %v1083
    %v1085 = vsub.f32 1.0, %v1084
    %v1086 = vmul.f32 %v1083, %v1085
    %v1087 = vadd.f32 %v1083, %v1086
    %vm1088 = vweird.f32 %v1082
    %vm1089 = vweird.f32 %v1083
    %vm1090 = vmor %vm1088, %vm1089
    %v1091 = vsel %vm1090, %v1083, %v1087
    %v1092 = vand.u32 2147483647, %v1082
    %vm1093 = vcmp.eq.f32.partialorder %v1092, 8.507059e+37
    %v1094 = vand.u32 %v1082, 2147483648
    %v1095 = vor.u32 1.1754944e-38, %v1094
    %v1096 = vsel %vm1093, %v1095, %v1091
    %v1097 = vmul.f32 1.0, %v1096
    %v1098 = vmul.f32 %v1077, %v944
    %v1099 = vmul.f32 %v1058, %v1078
    %v1100 = vadd.f32 %v1098, %v1099
    %v1101 = vtanh.pop %v1100
    %v1102 = vmul.f32 %v1097, %v1101
    %s1103 = scalar_lea.vmem [#allocation2], 24
    %1104 = vst [vmem:[%s1103] sm:$0xff] %v1102
    %s1105 = smul.u32 4, 4
    %s1106 = smul.addr %s1105, 8
    %s1107 = scalar_lea.vmem [#allocation3], %s1106
    %v1108 = vld [vmem:[%s1107] sm:$0xff]
    %v1109 = vld [vmem:[%s1107 + $0x8] sm:$0xff]
    %v1110 = vld [vmem:[%s1107 + $0x10] sm:$0xff]
    %v1111 = vld [vmem:[%s1107 + $0x18] sm:$0xff]
    %1112 = vmatpush.msra.mxu0 %v478
    %1113 = vmatpush.msra.mxu0 %v474
    %1114 = vmatpush.msra.mxu0 %v470
    %1115 = vmatpush.msra.mxu0 %v466
    %1116 = vmatpush.msra.mxu0 %v462
    %1117 = vmatpush.msra.mxu0 %v458
    %1118 = vmatpush.msra.mxu0 %v454
    %1119 = vmatpush.msra.mxu0 %v450
    %1120 = vmatpush.msra.mxu0 %v446
    %1121 = vmatpush.msra.mxu0 %v442
    %1122 = vmatpush.msra.mxu0 %v438
    %1123 = vmatpush.msra.mxu0 %v434
    %1124 = vmatpush.msra.mxu0 %v430
    %1125 = vmatpush.msra.mxu0 %v426
    %1126 = vmatpush.msra.mxu0 %v422
    %1127 = vmatpush.msra.mxu0 %v418
    %1128 = vmatmul.f32.gmra.mxu0 %v1102
    %v1129 = vpop.f32.mrf.mxu0
    %v1130 = vadd.f32 0.0, %v1129
    %1131 = vdwg.mxu0
    %1132 = vmatpush.msra.mxu0 %v479
    %1133 = vmatpush.msra.mxu0 %v475
    %1134 = vmatpush.msra.mxu0 %v471
    %1135 = vmatpush.msra.mxu0 %v467
    %1136 = vmatpush.msra.mxu0 %v463
    %1137 = vmatpush.msra.mxu0 %v459
    %1138 = vmatpush.msra.mxu0 %v455
    %1139 = vmatpush.msra.mxu0 %v451
    %1140 = vmatpush.msra.mxu0 %v447
    %1141 = vmatpush.msra.mxu0 %v443
    %1142 = vmatpush.msra.mxu0 %v439
    %1143 = vmatpush.msra.mxu0 %v435
    %1144 = vmatpush.msra.mxu0 %v431
    %1145 = vmatpush.msra.mxu0 %v427
    %1146 = vmatpush.msra.mxu0 %v423
    %1147 = vmatpush.msra.mxu0 %v419
    %1148 = vmatmul.f32.gmra.mxu0 %v1102
    %v1149 = vpop.f32.mrf.mxu0
    %v1150 = vadd.f32 0.0, %v1149
    %1151 = vdwg.mxu0
    %1152 = vmatpush.msra.mxu0 %v480
    %1153 = vmatpush.msra.mxu0 %v476
    %1154 = vmatpush.msra.mxu0 %v472
    %1155 = vmatpush.msra.mxu0 %v468
    %1156 = vmatpush.msra.mxu0 %v464
    %1157 = vmatpush.msra.mxu0 %v460
    %1158 = vmatpush.msra.mxu0 %v456
    %1159 = vmatpush.msra.mxu0 %v452
    %1160 = vmatpush.msra.mxu0 %v448
    %1161 = vmatpush.msra.mxu0 %v444
    %1162 = vmatpush.msra.mxu0 %v440
    %1163 = vmatpush.msra.mxu0 %v436
    %1164 = vmatpush.msra.mxu0 %v432
    %1165 = vmatpush.msra.mxu0 %v428
    %1166 = vmatpush.msra.mxu0 %v424
    %1167 = vmatpush.msra.mxu0 %v420
    %1168 = vmatmul.f32.gmra.mxu0 %v1102
    %v1169 = vpop.f32.mrf.mxu0
    %v1170 = vadd.f32 0.0, %v1169
    %1171 = vdwg.mxu0
    %1172 = vmatpush.msra.mxu0 %v481
    %1173 = vmatpush.msra.mxu0 %v477
    %1174 = vmatpush.msra.mxu0 %v473
    %1175 = vmatpush.msra.mxu0 %v469
    %1176 = vmatpush.msra.mxu0 %v465
    %1177 = vmatpush.msra.mxu0 %v461
    %1178 = vmatpush.msra.mxu0 %v457
    %1179 = vmatpush.msra.mxu0 %v453
    %1180 = vmatpush.msra.mxu0 %v449
    %1181 = vmatpush.msra.mxu0 %v445
    %1182 = vmatpush.msra.mxu0 %v441
    %1183 = vmatpush.msra.mxu0 %v437
    %1184 = vmatpush.msra.mxu0 %v433
    %1185 = vmatpush.msra.mxu0 %v429
    %1186 = vmatpush.msra.mxu0 %v425
    %1187 = vmatpush.msra.mxu0 %v421
    %1188 = vmatmul.f32.gmra.mxu0 %v1102
    %v1189 = vpop.f32.mrf.mxu0
    %v1190 = vadd.f32 0.0, %v1189
    %1191 = vdwg.mxu0
    %v1192 = vadd.f32 %v1108, %v1130
    %v1193 = vadd.f32 %v1109, %v1150
    %v1194 = vadd.f32 %v1110, %v1170
    %v1195 = vadd.f32 %v1111, %v1190
    %v1196 = vxor.u32 %v1192, 2147483648
    %v1197 = vmul.f32 %v1196, 1.442695
    %v1198 = vpow.pop %v1197
    %v1199 = vadd.f32 %v1198, 1.0
    %v1200 = vrcp.pop %v1199
    %v1201 = vmul.f32 %v1199, %v1200
    %v1202 = vsub.f32 1.0, %v1201
    %v1203 = vmul.f32 %v1200, %v1202
    %v1204 = vadd.f32 %v1200, %v1203
    %vm1205 = vweird.f32 %v1199
    %vm1206 = vweird.f32 %v1200
    %vm1207 = vmor %vm1205, %vm1206
    %v1208 = vsel %vm1207, %v1200, %v1204
    %v1209 = vand.u32 2147483647, %v1199
    %vm1210 = vcmp.eq.f32.partialorder %v1209, 8.507059e+37
    %v1211 = vand.u32 %v1199, 2147483648
    %v1212 = vor.u32 1.1754944e-38, %v1211
    %v1213 = vsel %vm1210, %v1212, %v1208
    %v1214 = vmul.f32 1.0, %v1213
    %v1215 = vxor.u32 %v1193, 2147483648
    %v1216 = vmul.f32 %v1215, 1.442695
    %v1217 = vpow.pop %v1216
    %v1218 = vadd.f32 %v1217, 1.0
    %v1219 = vrcp.pop %v1218
    %v1220 = vmul.f32 %v1218, %v1219
    %v1221 = vsub.f32 1.0, %v1220
    %v1222 = vmul.f32 %v1219, %v1221
    %v1223 = vadd.f32 %v1219, %v1222
    %vm1224 = vweird.f32 %v1218
    %vm1225 = vweird.f32 %v1219
    %vm1226 = vmor %vm1224, %vm1225
    %v1227 = vsel %vm1226, %v1219, %v1223
    %v1228 = vand.u32 2147483647, %v1218
    %vm1229 = vcmp.eq.f32.partialorder %v1228, 8.507059e+37
    %v1230 = vand.u32 %v1218, 2147483648
    %v1231 = vor.u32 1.1754944e-38, %v1230
    %v1232 = vsel %vm1229, %v1231, %v1227
    %v1233 = vmul.f32 1.0, %v1232
    %v1234 = vtanh.pop %v1194
    %v1235 = vxor.u32 %v1195, 2147483648
    %v1236 = vmul.f32 %v1235, 1.442695
    %v1237 = vpow.pop %v1236
    %v1238 = vadd.f32 %v1237, 1.0
    %v1239 = vrcp.pop %v1238
    %v1240 = vmul.f32 %v1238, %v1239
    %v1241 = vsub.f32 1.0, %v1240
    %v1242 = vmul.f32 %v1239, %v1241
    %v1243 = vadd.f32 %v1239, %v1242
    %vm1244 = vweird.f32 %v1238
    %vm1245 = vweird.f32 %v1239
    %vm1246 = vmor %vm1244, %vm1245
    %v1247 = vsel %vm1246, %v1239, %v1243
    %v1248 = vand.u32 2147483647, %v1238
    %vm1249 = vcmp.eq.f32.partialorder %v1248, 8.507059e+37
    %v1250 = vand.u32 %v1238, 2147483648
    %v1251 = vor.u32 1.1754944e-38, %v1250
    %v1252 = vsel %vm1249, %v1251, %v1247
    %v1253 = vmul.f32 1.0, %v1252
    %v1254 = vmul.f32 %v1233, %v1100
    %v1255 = vmul.f32 %v1214, %v1234
    %v1256 = vadd.f32 %v1254, %v1255
    %v1257 = vtanh.pop %v1256
    %v1258 = vmul.f32 %v1253, %v1257
    %s1259 = scalar_lea.vmem [#allocation2], 32
    %1260 = vst [vmem:[%s1259] sm:$0xff] %v1258
    %s1261 = smul.u32 5, 4
    %s1262 = smul.addr %s1261, 8
    %s1263 = scalar_lea.vmem [#allocation3], %s1262
    %v1264 = vld [vmem:[%s1263] sm:$0xff]
    %v1265 = vld [vmem:[%s1263 + $0x8] sm:$0xff]
    %v1266 = vld [vmem:[%s1263 + $0x10] sm:$0xff]
    %v1267 = vld [vmem:[%s1263 + $0x18] sm:$0xff]
    %1268 = vmatpush.msra.mxu0 %v478
    %1269 = vmatpush.msra.mxu0 %v474
    %1270 = vmatpush.msra.mxu0 %v470
    %1271 = vmatpush.msra.mxu0 %v466
    %1272 = vmatpush.msra.mxu0 %v462
    %1273 = vmatpush.msra.mxu0 %v458
    %1274 = vmatpush.msra.mxu0 %v454
    %1275 = vmatpush.msra.mxu0 %v450
    %1276 = vmatpush.msra.mxu0 %v446
    %1277 = vmatpush.msra.mxu0 %v442
    %1278 = vmatpush.msra.mxu0 %v438
    %1279 = vmatpush.msra.mxu0 %v434
    %1280 = vmatpush.msra.mxu0 %v430
    %1281 = vmatpush.msra.mxu0 %v426
    %1282 = vmatpush.msra.mxu0 %v422
    %1283 = vmatpush.msra.mxu0 %v418
    %1284 = vmatmul.f32.gmra.mxu0 %v1258
    %v1285 = vpop.f32.mrf.mxu0
    %v1286 = vadd.f32 0.0, %v1285
    %1287 = vdwg.mxu0
    %1288 = vmatpush.msra.mxu0 %v479
    %1289 = vmatpush.msra.mxu0 %v475
    %1290 = vmatpush.msra.mxu0 %v471
    %1291 = vmatpush.msra.mxu0 %v467
    %1292 = vmatpush.msra.mxu0 %v463
    %1293 = vmatpush.msra.mxu0 %v459
    %1294 = vmatpush.msra.mxu0 %v455
    %1295 = vmatpush.msra.mxu0 %v451
    %1296 = vmatpush.msra.mxu0 %v447
    %1297 = vmatpush.msra.mxu0 %v443
    %1298 = vmatpush.msra.mxu0 %v439
    %1299 = vmatpush.msra.mxu0 %v435
    %1300 = vmatpush.msra.mxu0 %v431
    %1301 = vmatpush.msra.mxu0 %v427
    %1302 = vmatpush.msra.mxu0 %v423
    %1303 = vmatpush.msra.mxu0 %v419
    %1304 = vmatmul.f32.gmra.mxu0 %v1258
    %v1305 = vpop.f32.mrf.mxu0
    %v1306 = vadd.f32 0.0, %v1305
    %1307 = vdwg.mxu0
    %1308 = vmatpush.msra.mxu0 %v480
    %1309 = vmatpush.msra.mxu0 %v476
    %1310 = vmatpush.msra.mxu0 %v472
    %1311 = vmatpush.msra.mxu0 %v468
    %1312 = vmatpush.msra.mxu0 %v464
    %1313 = vmatpush.msra.mxu0 %v460
    %1314 = vmatpush.msra.mxu0 %v456
    %1315 = vmatpush.msra.mxu0 %v452
    %1316 = vmatpush.msra.mxu0 %v448
    %1317 = vmatpush.msra.mxu0 %v444
    %1318 = vmatpush.msra.mxu0 %v440
    %1319 = vmatpush.msra.mxu0 %v436
    %1320 = vmatpush.msra.mxu0 %v432
    %1321 = vmatpush.msra.mxu0 %v428
    %1322 = vmatpush.msra.mxu0 %v424
    %1323 = vmatpush.msra.mxu0 %v420
    %1324 = vmatmul.f32.gmra.mxu0 %v1258
    %v1325 = vpop.f32.mrf.mxu0
    %v1326 = vadd.f32 0.0, %v1325
    %1327 = vdwg.mxu0
    %1328 = vmatpush.msra.mxu0 %v481
    %1329 = vmatpush.msra.mxu0 %v477
    %1330 = vmatpush.msra.mxu0 %v473
    %1331 = vmatpush.msra.mxu0 %v469
    %1332 = vmatpush.msra.mxu0 %v465
    %1333 = vmatpush.msra.mxu0 %v461
    %1334 = vmatpush.msra.mxu0 %v457
    %1335 = vmatpush.msra.mxu0 %v453
    %1336 = vmatpush.msra.mxu0 %v449
    %1337 = vmatpush.msra.mxu0 %v445
    %1338 = vmatpush.msra.mxu0 %v441
    %1339 = vmatpush.msra.mxu0 %v437
    %1340 = vmatpush.msra.mxu0 %v433
    %1341 = vmatpush.msra.mxu0 %v429
    %1342 = vmatpush.msra.mxu0 %v425
    %1343 = vmatpush.msra.mxu0 %v421
    %1344 = vmatmul.f32.gmra.mxu0 %v1258
    %v1345 = vpop.f32.mrf.mxu0
    %v1346 = vadd.f32 0.0, %v1345
    %1347 = vdwg.mxu0
    %v1348 = vadd.f32 %v1264, %v1286
    %v1349 = vadd.f32 %v1265, %v1306
    %v1350 = vadd.f32 %v1266, %v1326
    %v1351 = vadd.f32 %v1267, %v1346
    %v1352 = vxor.u32 %v1348, 2147483648
    %v1353 = vmul.f32 %v1352, 1.442695
    %v1354 = vpow.pop %v1353
    %v1355 = vadd.f32 %v1354, 1.0
    %v1356 = vrcp.pop %v1355
    %v1357 = vmul.f32 %v1355, %v1356
    %v1358 = vsub.f32 1.0, %v1357
    %v1359 = vmul.f32 %v1356, %v1358
    %v1360 = vadd.f32 %v1356, %v1359
    %vm1361 = vweird.f32 %v1355
    %vm1362 = vweird.f32 %v1356
    %vm1363 = vmor %vm1361, %vm1362
    %v1364 = vsel %vm1363, %v1356, %v1360
    %v1365 = vand.u32 2147483647, %v1355
    %vm1366 = vcmp.eq.f32.partialorder %v1365, 8.507059e+37
    %v1367 = vand.u32 %v1355, 2147483648
    %v1368 = vor.u32 1.1754944e-38, %v1367
    %v1369 = vsel %vm1366, %v1368, %v1364
    %v1370 = vmul.f32 1.0, %v1369
    %v1371 = vxor.u32 %v1349, 2147483648
    %v1372 = vmul.f32 %v1371, 1.442695
    %v1373 = vpow.pop %v1372
    %v1374 = vadd.f32 %v1373, 1.0
    %v1375 = vrcp.pop %v1374
    %v1376 = vmul.f32 %v1374, %v1375
    %v1377 = vsub.f32 1.0, %v1376
    %v1378 = vmul.f32 %v1375, %v1377
    %v1379 = vadd.f32 %v1375, %v1378
    %vm1380 = vweird.f32 %v1374
    %vm1381 = vweird.f32 %v1375
    %vm1382 = vmor %vm1380, %vm1381
    %v1383 = vsel %vm1382, %v1375, %v1379
    %v1384 = vand.u32 2147483647, %v1374
    %vm1385 = vcmp.eq.f32.partialorder %v1384, 8.507059e+37
    %v1386 = vand.u32 %v1374, 2147483648
    %v1387 = vor.u32 1.1754944e-38, %v1386
    %v1388 = vsel %vm1385, %v1387, %v1383
    %v1389 = vmul.f32 1.0, %v1388
    %v1390 = vtanh.pop %v1350
    %v1391 = vxor.u32 %v1351, 2147483648
    %v1392 = vmul.f32 %v1391, 1.442695
    %v1393 = vpow.pop %v1392
    %v1394 = vadd.f32 %v1393, 1.0
    %v1395 = vrcp.pop %v1394
    %v1396 = vmul.f32 %v1394, %v1395
    %v1397 = vsub.f32 1.0, %v1396
    %v1398 = vmul.f32 %v1395, %v1397
    %v1399 = vadd.f32 %v1395, %v1398
    %vm1400 = vweird.f32 %v1394
    %vm1401 = vweird.f32 %v1395
    %vm1402 = vmor %vm1400, %vm1401
    %v1403 = vsel %vm1402, %v1395, %v1399
    %v1404 = vand.u32 2147483647, %v1394
    %vm1405 = vcmp.eq.f32.partialorder %v1404, 8.507059e+37
    %v1406 = vand.u32 %v1394, 2147483648
    %v1407 = vor.u32 1.1754944e-38, %v1406
    %v1408 = vsel %vm1405, %v1407, %v1403
    %v1409 = vmul.f32 1.0, %v1408
    %v1410 = vmul.f32 %v1389, %v1256
    %v1411 = vmul.f32 %v1370, %v1390
    %v1412 = vadd.f32 %v1410, %v1411
    %v1413 = vtanh.pop %v1412
    %v1414 = vmul.f32 %v1409, %v1413
    %s1415 = scalar_lea.vmem [#allocation2], 40
    %1416 = vst [vmem:[%s1415] sm:$0xff] %v1414
    %s1417 = smul.u32 6, 4
    %s1418 = smul.addr %s1417, 8
    %s1419 = scalar_lea.vmem [#allocation3], %s1418
    %v1420 = vld [vmem:[%s1419] sm:$0xff]
    %v1421 = vld [vmem:[%s1419 + $0x8] sm:$0xff]
    %v1422 = vld [vmem:[%s1419 + $0x10] sm:$0xff]
    %v1423 = vld [vmem:[%s1419 + $0x18] sm:$0xff]
    %1424 = vmatpush.msra.mxu0 %v478
    %1425 = vmatpush.msra.mxu0 %v474
    %1426 = vmatpush.msra.mxu0 %v470
    %1427 = vmatpush.msra.mxu0 %v466
    %1428 = vmatpush.msra.mxu0 %v462
    %1429 = vmatpush.msra.mxu0 %v458
    %1430 = vmatpush.msra.mxu0 %v454
    %1431 = vmatpush.msra.mxu0 %v450
    %1432 = vmatpush.msra.mxu0 %v446
    %1433 = vmatpush.msra.mxu0 %v442
    %1434 = vmatpush.msra.mxu0 %v438
    %1435 = vmatpush.msra.mxu0 %v434
    %1436 = vmatpush.msra.mxu0 %v430
    %1437 = vmatpush.msra.mxu0 %v426
    %1438 = vmatpush.msra.mxu0 %v422
    %1439 = vmatpush.msra.mxu0 %v418
    %1440 = vmatmul.f32.gmra.mxu0 %v1414
    %v1441 = vpop.f32.mrf.mxu0
    %v1442 = vadd.f32 0.0, %v1441
    %1443 = vdwg.mxu0
    %1444 = vmatpush.msra.mxu0 %v479
    %1445 = vmatpush.msra.mxu0 %v475
    %1446 = vmatpush.msra.mxu0 %v471
    %1447 = vmatpush.msra.mxu0 %v467
    %1448 = vmatpush.msra.mxu0 %v463
    %1449 = vmatpush.msra.mxu0 %v459
    %1450 = vmatpush.msra.mxu0 %v455
    %1451 = vmatpush.msra.mxu0 %v451
    %1452 = vmatpush.msra.mxu0 %v447
    %1453 = vmatpush.msra.mxu0 %v443
    %1454 = vmatpush.msra.mxu0 %v439
    %1455 = vmatpush.msra.mxu0 %v435
    %1456 = vmatpush.msra.mxu0 %v431
    %1457 = vmatpush.msra.mxu0 %v427
    %1458 = vmatpush.msra.mxu0 %v423
    %1459 = vmatpush.msra.mxu0 %v419
    %1460 = vmatmul.f32.gmra.mxu0 %v1414
    %v1461 = vpop.f32.mrf.mxu0
    %v1462 = vadd.f32 0.0, %v1461
    %1463 = vdwg.mxu0
    %1464 = vmatpush.msra.mxu0 %v480
    %1465 = vmatpush.msra.mxu0 %v476
    %1466 = vmatpush.msra.mxu0 %v472
    %1467 = vmatpush.msra.mxu0 %v468
    %1468 = vmatpush.msra.mxu0 %v464
    %1469 = vmatpush.msra.mxu0 %v460
    %1470 = vmatpush.msra.mxu0 %v456
    %1471 = vmatpush.msra.mxu0 %v452
    %1472 = vmatpush.msra.mxu0 %v448
    %1473 = vmatpush.msra.mxu0 %v444
    %1474 = vmatpush.msra.mxu0 %v440
    %1475 = vmatpush.msra.mxu0 %v436
    %1476 = vmatpush.msra.mxu0 %v432
    %1477 = vmatpush.msra.mxu0 %v428
    %1478 = vmatpush.msra.mxu0 %v424
    %1479 = vmatpush.msra.mxu0 %v420
    %1480 = vmatmul.f32.gmra.mxu0 %v1414
    %v1481 = vpop.f32.mrf.mxu0
    %v1482 = vadd.f32 0.0, %v1481
    %1483 = vdwg.mxu0
    %1484 = vmatpush.msra.mxu0 %v481
    %1485 = vmatpush.msra.mxu0 %v477
    %1486 = vmatpush.msra.mxu0 %v473
    %1487 = vmatpush.msra.mxu0 %v469
    %1488 = vmatpush.msra.mxu0 %v465
    %1489 = vmatpush.msra.mxu0 %v461
    %1490 = vmatpush.msra.mxu0 %v457
    %1491 = vmatpush.msra.mxu0 %v453
    %1492 = vmatpush.msra.mxu0 %v449
    %1493 = vmatpush.msra.mxu0 %v445
    %1494 = vmatpush.msra.mxu0 %v441
    %1495 = vmatpush.msra.mxu0 %v437
    %1496 = vmatpush.msra.mxu0 %v433
    %1497 = vmatpush.msra.mxu0 %v429
    %1498 = vmatpush.msra.mxu0 %v425
    %1499 = vmatpush.msra.mxu0 %v421
    %1500 = vmatmul.f32.gmra.mxu0 %v1414
    %v1501 = vpop.f32.mrf.mxu0
    %v1502 = vadd.f32 0.0, %v1501
    %1503 = vdwg.mxu0
    %v1504 = vadd.f32 %v1420, %v1442
    %v1505 = vadd.f32 %v1421, %v1462
    %v1506 = vadd.f32 %v1422, %v1482
    %v1507 = vadd.f32 %v1423, %v1502
    %v1508 = vxor.u32 %v1504, 2147483648
    %v1509 = vmul.f32 %v1508, 1.442695
    %v1510 = vpow.pop %v1509
    %v1511 = vadd.f32 %v1510, 1.0
    %v1512 = vrcp.pop %v1511
    %v1513 = vmul.f32 %v1511, %v1512
    %v1514 = vsub.f32 1.0, %v1513
    %v1515 = vmul.f32 %v1512, %v1514
    %v1516 = vadd.f32 %v1512, %v1515
    %vm1517 = vweird.f32 %v1511
    %vm1518 = vweird.f32 %v1512
    %vm1519 = vmor %vm1517, %vm1518
    %v1520 = vsel %vm1519, %v1512, %v1516
    %v1521 = vand.u32 2147483647, %v1511
    %vm1522 = vcmp.eq.f32.partialorder %v1521, 8.507059e+37
    %v1523 = vand.u32 %v1511, 2147483648
    %v1524 = vor.u32 1.1754944e-38, %v1523
    %v1525 = vsel %vm1522, %v1524, %v1520
    %v1526 = vmul.f32 1.0, %v1525
    %v1527 = vxor.u32 %v1505, 2147483648
    %v1528 = vmul.f32 %v1527, 1.442695
    %v1529 = vpow.pop %v1528
    %v1530 = vadd.f32 %v1529, 1.0
    %v1531 = vrcp.pop %v1530
    %v1532 = vmul.f32 %v1530, %v1531
    %v1533 = vsub.f32 1.0, %v1532
    %v1534 = vmul.f32 %v1531, %v1533
    %v1535 = vadd.f32 %v1531, %v1534
    %vm1536 = vweird.f32 %v1530
    %vm1537 = vweird.f32 %v1531
    %vm1538 = vmor %vm1536, %vm1537
    %v1539 = vsel %vm1538, %v1531, %v1535
    %v1540 = vand.u32 2147483647, %v1530
    %vm1541 = vcmp.eq.f32.partialorder %v1540, 8.507059e+37
    %v1542 = vand.u32 %v1530, 2147483648
    %v1543 = vor.u32 1.1754944e-38, %v1542
    %v1544 = vsel %vm1541, %v1543, %v1539
    %v1545 = vmul.f32 1.0, %v1544
    %v1546 = vtanh.pop %v1506
    %v1547 = vxor.u32 %v1507, 2147483648
    %v1548 = vmul.f32 %v1547, 1.442695
    %v1549 = vpow.pop %v1548
    %v1550 = vadd.f32 %v1549, 1.0
    %v1551 = vrcp.pop %v1550
    %v1552 = vmul.f32 %v1550, %v1551
    %v1553 = vsub.f32 1.0, %v1552
    %v1554 = vmul.f32 %v1551, %v1553
    %v1555 = vadd.f32 %v1551, %v1554
    %vm1556 = vweird.f32 %v1550
    %vm1557 = vweird.f32 %v1551
    %vm1558 = vmor %vm1556, %vm1557
    %v1559 = vsel %vm1558, %v1551, %v1555
    %v1560 = vand.u32 2147483647, %v1550
    %vm1561 = vcmp.eq.f32.partialorder %v1560, 8.507059e+37
    %v1562 = vand.u32 %v1550, 2147483648
    %v1563 = vor.u32 1.1754944e-38, %v1562
    %v1564 = vsel %vm1561, %v1563, %v1559
    %v1565 = vmul.f32 1.0, %v1564
    %v1566 = vmul.f32 %v1545, %v1412
    %v1567 = vmul.f32 %v1526, %v1546
    %v1568 = vadd.f32 %v1566, %v1567
    %v1569 = vtanh.pop %v1568
    %v1570 = vmul.f32 %v1565, %v1569
    %s1571 = scalar_lea.vmem [#allocation2], 48
    %1572 = vst [vmem:[%s1571] sm:$0xff] %v1570
    %s1573 = smul.u32 7, 4
    %s1574 = smul.addr %s1573, 8
    %s1575 = scalar_lea.vmem [#allocation3], %s1574
    %v1576 = vld [vmem:[%s1575] sm:$0xff]
    %v1577 = vld [vmem:[%s1575 + $0x8] sm:$0xff]
    %v1578 = vld [vmem:[%s1575 + $0x10] sm:$0xff]
    %v1579 = vld [vmem:[%s1575 + $0x18] sm:$0xff]
    %1580 = vmatpush.msra.mxu0 %v478
    %1581 = vmatpush.msra.mxu0 %v474
    %1582 = vmatpush.msra.mxu0 %v470
    %1583 = vmatpush.msra.mxu0 %v466
    %1584 = vmatpush.msra.mxu0 %v462
    %1585 = vmatpush.msra.mxu0 %v458
    %1586 = vmatpush.msra.mxu0 %v454
    %1587 = vmatpush.msra.mxu0 %v450
    %1588 = vmatpush.msra.mxu0 %v446
    %1589 = vmatpush.msra.mxu0 %v442
    %1590 = vmatpush.msra.mxu0 %v438
    %1591 = vmatpush.msra.mxu0 %v434
    %1592 = vmatpush.msra.mxu0 %v430
    %1593 = vmatpush.msra.mxu0 %v426
    %1594 = vmatpush.msra.mxu0 %v422
    %1595 = vmatpush.msra.mxu0 %v418
    %1596 = vmatmul.f32.gmra.mxu0 %v1570
    %v1597 = vpop.f32.mrf.mxu0
    %v1598 = vadd.f32 0.0, %v1597
    %1599 = vdwg.mxu0
    %1600 = vmatpush.msra.mxu0 %v479
    %1601 = vmatpush.msra.mxu0 %v475
    %1602 = vmatpush.msra.mxu0 %v471
    %1603 = vmatpush.msra.mxu0 %v467
    %1604 = vmatpush.msra.mxu0 %v463
    %1605 = vmatpush.msra.mxu0 %v459
    %1606 = vmatpush.msra.mxu0 %v455
    %1607 = vmatpush.msra.mxu0 %v451
    %1608 = vmatpush.msra.mxu0 %v447
    %1609 = vmatpush.msra.mxu0 %v443
    %1610 = vmatpush.msra.mxu0 %v439
    %1611 = vmatpush.msra.mxu0 %v435
    %1612 = vmatpush.msra.mxu0 %v431
    %1613 = vmatpush.msra.mxu0 %v427
    %1614 = vmatpush.msra.mxu0 %v423
    %1615 = vmatpush.msra.mxu0 %v419
    %1616 = vmatmul.f32.gmra.mxu0 %v1570
    %v1617 = vpop.f32.mrf.mxu0
    %v1618 = vadd.f32 0.0, %v1617
    %1619 = vdwg.mxu0
    %1620 = vmatpush.msra.mxu0 %v480
    %1621 = vmatpush.msra.mxu0 %v476
    %1622 = vmatpush.msra.mxu0 %v472
    %1623 = vmatpush.msra.mxu0 %v468
    %1624 = vmatpush.msra.mxu0 %v464
    %1625 = vmatpush.msra.mxu0 %v460
    %1626 = vmatpush.msra.mxu0 %v456
    %1627 = vmatpush.msra.mxu0 %v452
    %1628 = vmatpush.msra.mxu0 %v448
    %1629 = vmatpush.msra.mxu0 %v444
    %1630 = vmatpush.msra.mxu0 %v440
    %1631 = vmatpush.msra.mxu0 %v436
    %1632 = vmatpush.msra.mxu0 %v432
    %1633 = vmatpush.msra.mxu0 %v428
    %1634 = vmatpush.msra.mxu0 %v424
    %1635 = vmatpush.msra.mxu0 %v420
    %1636 = vmatmul.f32.gmra.mxu0 %v1570
    %v1637 = vpop.f32.mrf.mxu0
    %v1638 = vadd.f32 0.0, %v1637
    %1639 = vdwg.mxu0
    %1640 = vmatpush.msra.mxu0 %v481
    %1641 = vmatpush.msra.mxu0 %v477
    %1642 = vmatpush.msra.mxu0 %v473
    %1643 = vmatpush.msra.mxu0 %v469
    %1644 = vmatpush.msra.mxu0 %v465
    %1645 = vmatpush.msra.mxu0 %v461
    %1646 = vmatpush.msra.mxu0 %v457
    %1647 = vmatpush.msra.mxu0 %v453
    %1648 = vmatpush.msra.mxu0 %v449
    %1649 = vmatpush.msra.mxu0 %v445
    %1650 = vmatpush.msra.mxu0 %v441
    %1651 = vmatpush.msra.mxu0 %v437
    %1652 = vmatpush.msra.mxu0 %v433
    %1653 = vmatpush.msra.mxu0 %v429
    %1654 = vmatpush.msra.mxu0 %v425
    %1655 = vmatpush.msra.mxu0 %v421
    %1656 = vmatmul.f32.gmra.mxu0 %v1570
    %v1657 = vpop.f32.mrf.mxu0
    %v1658 = vadd.f32 0.0, %v1657
    %1659 = vdwg.mxu0
    %v1660 = vadd.f32 %v1576, %v1598
    %v1661 = vadd.f32 %v1577, %v1618
    %v1662 = vadd.f32 %v1578, %v1638
    %v1663 = vadd.f32 %v1579, %v1658
    %v1664 = vxor.u32 %v1660, 2147483648
    %v1665 = vmul.f32 %v1664, 1.442695
    %v1666 = vpow.pop %v1665
    %v1667 = vadd.f32 %v1666, 1.0
    %v1668 = vrcp.pop %v1667
    %v1669 = vmul.f32 %v1667, %v1668
    %v1670 = vsub.f32 1.0, %v1669
    %v1671 = vmul.f32 %v1668, %v1670
    %v1672 = vadd.f32 %v1668, %v1671
    %vm1673 = vweird.f32 %v1667
    %vm1674 = vweird.f32 %v1668
    %vm1675 = vmor %vm1673, %vm1674
    %v1676 = vsel %vm1675, %v1668, %v1672
    %v1677 = vand.u32 2147483647, %v1667
    %vm1678 = vcmp.eq.f32.partialorder %v1677, 8.507059e+37
    %v1679 = vand.u32 %v1667, 2147483648
    %v1680 = vor.u32 1.1754944e-38, %v1679
    %v1681 = vsel %vm1678, %v1680, %v1676
    %v1682 = vmul.f32 1.0, %v1681
    %v1683 = vxor.u32 %v1661, 2147483648
    %v1684 = vmul.f32 %v1683, 1.442695
    %v1685 = vpow.pop %v1684
    %v1686 = vadd.f32 %v1685, 1.0
    %v1687 = vrcp.pop %v1686
    %v1688 = vmul.f32 %v1686, %v1687
    %v1689 = vsub.f32 1.0, %v1688
    %v1690 = vmul.f32 %v1687, %v1689
    %v1691 = vadd.f32 %v1687, %v1690
    %vm1692 = vweird.f32 %v1686
    %vm1693 = vweird.f32 %v1687
    %vm1694 = vmor %vm1692, %vm1693
    %v1695 = vsel %vm1694, %v1687, %v1691
    %v1696 = vand.u32 2147483647, %v1686
    %vm1697 = vcmp.eq.f32.partialorder %v1696, 8.507059e+37
    %v1698 = vand.u32 %v1686, 2147483648
    %v1699 = vor.u32 1.1754944e-38, %v1698
    %v1700 = vsel %vm1697, %v1699, %v1695
    %v1701 = vmul.f32 1.0, %v1700
    %v1702 = vtanh.pop %v1662
    %v1703 = vxor.u32 %v1663, 2147483648
    %v1704 = vmul.f32 %v1703, 1.442695
    %v1705 = vpow.pop %v1704
    %v1706 = vadd.f32 %v1705, 1.0
    %v1707 = vrcp.pop %v1706
    %v1708 = vmul.f32 %v1706, %v1707
    %v1709 = vsub.f32 1.0, %v1708
    %v1710 = vmul.f32 %v1707, %v1709
    %v1711 = vadd.f32 %v1707, %v1710
    %vm1712 = vweird.f32 %v1706
    %vm1713 = vweird.f32 %v1707
    %vm1714 = vmor %vm1712, %vm1713
    %v1715 = vsel %vm1714, %v1707, %v1711
    %v1716 = vand.u32 2147483647, %v1706
    %vm1717 = vcmp.eq.f32.partialorder %v1716, 8.507059e+37
    %v1718 = vand.u32 %v1706, 2147483648
    %v1719 = vor.u32 1.1754944e-38, %v1718
    %v1720 = vsel %vm1717, %v1719, %v1715
    %v1721 = vmul.f32 1.0, %v1720
    %v1722 = vmul.f32 %v1701, %v1568
    %v1723 = vmul.f32 %v1682, %v1702
    %v1724 = vadd.f32 %v1722, %v1723
    %v1725 = vtanh.pop %v1724
    %v1726 = vmul.f32 %v1721, %v1725
    %s1727 = scalar_lea.vmem [#allocation2], 56
    %1728 = vst [vmem:[%s1727] sm:$0xff] %v1726
    %v1729 = vld [vmem:[#allocation2] sm:$0xff]
    %v1730 = vld [vmem:[#allocation2 + $0x8] sm:$0xff]
    %v1731 = vld [vmem:[#allocation2 + $0x10] sm:$0xff]
    %v1732 = vld [vmem:[#allocation2 + $0x18] sm:$0xff]
    %v1733 = vld [vmem:[#allocation2 + $0x20] sm:$0xff]
    %v1734 = vld [vmem:[#allocation2 + $0x28] sm:$0xff]
    %v1735 = vld [vmem:[#allocation2 + $0x30] sm:$0xff]
    %v1736 = vld [vmem:[#allocation2 + $0x38] sm:$0xff]
    %v1737 = vld [vmem:[#allocation12] sm:$0xff]
    %v1738 = vld [vmem:[#allocation12 + $0x8] sm:$0xff]
    %v1739 = vld [vmem:[#allocation12 + $0x10] sm:$0xff]
    %v1740 = vld [vmem:[#allocation12 + $0x18] sm:$0xff]
    %v1741 = vld [vmem:[#allocation12 + $0x20] sm:$0xff]
    %v1742 = vld [vmem:[#allocation12 + $0x28] sm:$0xff]
    %v1743 = vld [vmem:[#allocation12 + $0x30] sm:$0xff]
    %v1744 = vld [vmem:[#allocation12 + $0x38] sm:$0xff]
    %v1745 = vld [vmem:[#allocation12 + $0x40] sm:$0xff]
    %v1746 = vld [vmem:[#allocation12 + $0x48] sm:$0xff]
    %v1747 = vld [vmem:[#allocation12 + $0x50] sm:$0xff]
    %v1748 = vld [vmem:[#allocation12 + $0x58] sm:$0xff]
    %v1749 = vld [vmem:[#allocation12 + $0x60] sm:$0xff]
    %v1750 = vld [vmem:[#allocation12 + $0x68] sm:$0xff]
    %v1751 = vld [vmem:[#allocation12 + $0x70] sm:$0xff]
    %v1752 = vld [vmem:[#allocation12 + $0x78] sm:$0xff]
    %v1753 = vld [vmem:[#allocation12 + $0x80] sm:$0xff]
    %v1754 = vld [vmem:[#allocation12 + $0x88] sm:$0xff]
    %v1755 = vld [vmem:[#allocation12 + $0x90] sm:$0xff]
    %v1756 = vld [vmem:[#allocation12 + $0x98] sm:$0xff]
    %v1757 = vld [vmem:[#allocation12 + $0xa0] sm:$0xff]
    %v1758 = vld [vmem:[#allocation12 + $0xa8] sm:$0xff]
    %v1759 = vld [vmem:[#allocation12 + $0xb0] sm:$0xff]
    %v1760 = vld [vmem:[#allocation12 + $0xb8] sm:$0xff]
    %v1761 = vld [vmem:[#allocation12 + $0xc0] sm:$0xff]
    %v1762 = vld [vmem:[#allocation12 + $0xc8] sm:$0xff]
    %v1763 = vld [vmem:[#allocation12 + $0xd0] sm:$0xff]
    %v1764 = vld [vmem:[#allocation12 + $0xd8] sm:$0xff]
    %v1765 = vld [vmem:[#allocation12 + $0xe0] sm:$0xff]
    %v1766 = vld [vmem:[#allocation12 + $0xe8] sm:$0xff]
    %v1767 = vld [vmem:[#allocation12 + $0xf0] sm:$0xff]
    %v1768 = vld [vmem:[#allocation12 + $0xf8] sm:$0xff]
    %v1769 = vld [vmem:[#allocation12 + $0x100] sm:$0xff]
    %v1770 = vld [vmem:[#allocation12 + $0x108] sm:$0xff]
    %v1771 = vld [vmem:[#allocation12 + $0x110] sm:$0xff]
    %v1772 = vld [vmem:[#allocation12 + $0x118] sm:$0xff]
    %v1773 = vld [vmem:[#allocation12 + $0x120] sm:$0xff]
    %v1774 = vld [vmem:[#allocation12 + $0x128] sm:$0xff]
    %v1775 = vld [vmem:[#allocation12 + $0x130] sm:$0xff]
    %v1776 = vld [vmem:[#allocation12 + $0x138] sm:$0xff]
    %v1777 = vld [vmem:[#allocation12 + $0x140] sm:$0xff]
    %v1778 = vld [vmem:[#allocation12 + $0x148] sm:$0xff]
    %v1779 = vld [vmem:[#allocation12 + $0x150] sm:$0xff]
    %v1780 = vld [vmem:[#allocation12 + $0x158] sm:$0xff]
    %v1781 = vld [vmem:[#allocation12 + $0x160] sm:$0xff]
    %v1782 = vld [vmem:[#allocation12 + $0x168] sm:$0xff]
    %v1783 = vld [vmem:[#allocation12 + $0x170] sm:$0xff]
    %v1784 = vld [vmem:[#allocation12 + $0x178] sm:$0xff]
    %v1785 = vld [vmem:[#allocation12 + $0x180] sm:$0xff]
    %v1786 = vld [vmem:[#allocation12 + $0x188] sm:$0xff]
    %v1787 = vld [vmem:[#allocation12 + $0x190] sm:$0xff]
    %v1788 = vld [vmem:[#allocation12 + $0x198] sm:$0xff]
    %v1789 = vld [vmem:[#allocation12 + $0x1a0] sm:$0xff]
    %v1790 = vld [vmem:[#allocation12 + $0x1a8] sm:$0xff]
    %v1791 = vld [vmem:[#allocation12 + $0x1b0] sm:$0xff]
    %v1792 = vld [vmem:[#allocation12 + $0x1b8] sm:$0xff]
    %v1793 = vld [vmem:[#allocation12 + $0x1c0] sm:$0xff]
    %v1794 = vld [vmem:[#allocation12 + $0x1c8] sm:$0xff]
    %v1795 = vld [vmem:[#allocation12 + $0x1d0] sm:$0xff]
    %v1796 = vld [vmem:[#allocation12 + $0x1d8] sm:$0xff]
    %v1797 = vld [vmem:[#allocation12 + $0x1e0] sm:$0xff]
    %v1798 = vld [vmem:[#allocation12 + $0x1e8] sm:$0xff]
    %v1799 = vld [vmem:[#allocation12 + $0x1f0] sm:$0xff]
    %v1800 = vld [vmem:[#allocation12 + $0x1f8] sm:$0xff]
    %v1801 = vld [vmem:[%s6] sm:$0xf]
    %v1803 = vperm.slane %v1801, 0
    %v1804 = vperm.slane %v1801, 1
    %v1805 = vperm.slane %v1801, 2
    %v1806 = vperm.slane %v1801, 3
    %1811 = vmatpush.msra.mxu0 %v1797
    %1812 = vmatpush.msra.mxu0 %v1793
    %1813 = vmatpush.msra.mxu0 %v1789
    %1814 = vmatpush.msra.mxu0 %v1785
    %1815 = vmatpush.msra.mxu0 %v1781
    %1816 = vmatpush.msra.mxu0 %v1777
    %1817 = vmatpush.msra.mxu0 %v1773
    %1818 = vmatpush.msra.mxu0 %v1769
    %1819 = vmatpush.msra.mxu0 %v1765
    %1820 = vmatpush.msra.mxu0 %v1761
    %1821 = vmatpush.msra.mxu0 %v1757
    %1822 = vmatpush.msra.mxu0 %v1753
    %1823 = vmatpush.msra.mxu0 %v1749
    %1824 = vmatpush.msra.mxu0 %v1745
    %1825 = vmatpush.msra.mxu0 %v1741
    %1826 = vmatpush.msra.mxu0 %v1737
    %1827 = vmatmul.f32.gmra.mxu0 %v1729
    %v1828 = vpop.f32.mrf.mxu0
    %v1829 = vadd.f32 %v1803, %v1828
    %1830 = vmatmul.f32.gmra.mxu0 %v1730
    %v1831 = vpop.f32.mrf.mxu0
    %v1832 = vadd.f32 %v1803, %v1831
    %1833 = vmatmul.f32.gmra.mxu0 %v1731
    %v1834 = vpop.f32.mrf.mxu0
    %v1835 = vadd.f32 %v1803, %v1834
    %1836 = vmatmul.f32.gmra.mxu0 %v1732
    %v1837 = vpop.f32.mrf.mxu0
    %v1838 = vadd.f32 %v1803, %v1837
    %1839 = vmatmul.f32.gmra.mxu0 %v1733
    %v1840 = vpop.f32.mrf.mxu0
    %v1841 = vadd.f32 %v1803, %v1840
    %1842 = vmatmul.f32.gmra.mxu0 %v1734
    %v1843 = vpop.f32.mrf.mxu0
    %v1844 = vadd.f32 %v1803, %v1843
    %1845 = vmatmul.f32.gmra.mxu0 %v1735
    %v1846 = vpop.f32.mrf.mxu0
    %v1847 = vadd.f32 %v1803, %v1846
    %1848 = vmatmul.f32.gmra.mxu0 %v1736
    %v1849 = vpop.f32.mrf.mxu0
    %v1850 = vadd.f32 %v1803, %v1849
    %1851 = vdwg.mxu0
    %1852 = vmatpush.msra.mxu0 %v1798
    %1853 = vmatpush.msra.mxu0 %v1794
    %1854 = vmatpush.msra.mxu0 %v1790
    %1855 = vmatpush.msra.mxu0 %v1786
    %1856 = vmatpush.msra.mxu0 %v1782
    %1857 = vmatpush.msra.mxu0 %v1778
    %1858 = vmatpush.msra.mxu0 %v1774
    %1859 = vmatpush.msra.mxu0 %v1770
    %1860 = vmatpush.msra.mxu0 %v1766
    %1861 = vmatpush.msra.mxu0 %v1762
    %1862 = vmatpush.msra.mxu0 %v1758
    %1863 = vmatpush.msra.mxu0 %v1754
    %1864 = vmatpush.msra.mxu0 %v1750
    %1865 = vmatpush.msra.mxu0 %v1746
    %1866 = vmatpush.msra.mxu0 %v1742
    %1867 = vmatpush.msra.mxu0 %v1738
    %1868 = vmatmul.f32.gmra.mxu0 %v1729
    %v1869 = vpop.f32.mrf.mxu0
    %v1870 = vadd.f32 %v1804, %v1869
    %1871 = vmatmul.f32.gmra.mxu0 %v1730
    %v1872 = vpop.f32.mrf.mxu0
    %v1873 = vadd.f32 %v1804, %v1872
    %1874 = vmatmul.f32.gmra.mxu0 %v1731
    %v1875 = vpop.f32.mrf.mxu0
    %v1876 = vadd.f32 %v1804, %v1875
    %1877 = vmatmul.f32.gmra.mxu0 %v1732
    %v1878 = vpop.f32.mrf.mxu0
    %v1879 = vadd.f32 %v1804, %v1878
    %1880 = vmatmul.f32.gmra.mxu0 %v1733
    %v1881 = vpop.f32.mrf.mxu0
    %v1882 = vadd.f32 %v1804, %v1881
    %1883 = vmatmul.f32.gmra.mxu0 %v1734
    %v1884 = vpop.f32.mrf.mxu0
    %v1885 = vadd.f32 %v1804, %v1884
    %1886 = vmatmul.f32.gmra.mxu0 %v1735
    %v1887 = vpop.f32.mrf.mxu0
    %v1888 = vadd.f32 %v1804, %v1887
    %1889 = vmatmul.f32.gmra.mxu0 %v1736
    %v1890 = vpop.f32.mrf.mxu0
    %v1891 = vadd.f32 %v1804, %v1890
    %1892 = vdwg.mxu0
    %1893 = vmatpush.msra.mxu0 %v1799
    %1894 = vmatpush.msra.mxu0 %v1795
    %1895 = vmatpush.msra.mxu0 %v1791
    %1896 = vmatpush.msra.mxu0 %v1787
    %1897 = vmatpush.msra.mxu0 %v1783
    %1898 = vmatpush.msra.mxu0 %v1779
    %1899 = vmatpush.msra.mxu0 %v1775
    %1900 = vmatpush.msra.mxu0 %v1771
    %1901 = vmatpush.msra.mxu0 %v1767
    %1902 = vmatpush.msra.mxu0 %v1763
    %1903 = vmatpush.msra.mxu0 %v1759
    %1904 = vmatpush.msra.mxu0 %v1755
    %1905 = vmatpush.msra.mxu0 %v1751
    %1906 = vmatpush.msra.mxu0 %v1747
    %1907 = vmatpush.msra.mxu0 %v1743
    %1908 = vmatpush.msra.mxu0 %v1739
    %1909 = vmatmul.f32.gmra.mxu0 %v1729
    %v1910 = vpop.f32.mrf.mxu0
    %v1911 = vadd.f32 %v1805, %v1910
    %1912 = vmatmul.f32.gmra.mxu0 %v1730
    %v1913 = vpop.f32.mrf.mxu0
    %v1914 = vadd.f32 %v1805, %v1913
    %1915 = vmatmul.f32.gmra.mxu0 %v1731
    %v1916 = vpop.f32.mrf.mxu0
    %v1917 = vadd.f32 %v1805, %v1916
    %1918 = vmatmul.f32.gmra.mxu0 %v1732
    %v1919 = vpop.f32.mrf.mxu0
    %v1920 = vadd.f32 %v1805, %v1919
    %1921 = vmatmul.f32.gmra.mxu0 %v1733
    %v1922 = vpop.f32.mrf.mxu0
    %v1923 = vadd.f32 %v1805, %v1922
    %1924 = vmatmul.f32.gmra.mxu0 %v1734
    %v1925 = vpop.f32.mrf.mxu0
    %v1926 = vadd.f32 %v1805, %v1925
    %1927 = vmatmul.f32.gmra.mxu0 %v1735
    %v1928 = vpop.f32.mrf.mxu0
    %v1929 = vadd.f32 %v1805, %v1928
    %1930 = vmatmul.f32.gmra.mxu0 %v1736
    %v1931 = vpop.f32.mrf.mxu0
    %v1932 = vadd.f32 %v1805, %v1931
    %1933 = vdwg.mxu0
    %1934 = vmatpush.msra.mxu0 %v1800
    %1935 = vmatpush.msra.mxu0 %v1796
    %1936 = vmatpush.msra.mxu0 %v1792
    %1937 = vmatpush.msra.mxu0 %v1788
    %1938 = vmatpush.msra.mxu0 %v1784
    %1939 = vmatpush.msra.mxu0 %v1780
    %1940 = vmatpush.msra.mxu0 %v1776
    %1941 = vmatpush.msra.mxu0 %v1772
    %1942 = vmatpush.msra.mxu0 %v1768
    %1943 = vmatpush.msra.mxu0 %v1764
    %1944 = vmatpush.msra.mxu0 %v1760
    %1945 = vmatpush.msra.mxu0 %v1756
    %1946 = vmatpush.msra.mxu0 %v1752
    %1947 = vmatpush.msra.mxu0 %v1748
    %1948 = vmatpush.msra.mxu0 %v1744
    %1949 = vmatpush.msra.mxu0 %v1740
    %1950 = vmatmul.f32.gmra.mxu0 %v1729
    %v1951 = vpop.f32.mrf.mxu0
    %v1952 = vadd.f32 %v1806, %v1951
    %1953 = vmatmul.f32.gmra.mxu0 %v1730
    %v1954 = vpop.f32.mrf.mxu0
    %v1955 = vadd.f32 %v1806, %v1954
    %1956 = vmatmul.f32.gmra.mxu0 %v1731
    %v1957 = vpop.f32.mrf.mxu0
    %v1958 = vadd.f32 %v1806, %v1957
    %1959 = vmatmul.f32.gmra.mxu0 %v1732
    %v1960 = vpop.f32.mrf.mxu0
    %v1961 = vadd.f32 %v1806, %v1960
    %1962 = vmatmul.f32.gmra.mxu0 %v1733
    %v1963 = vpop.f32.mrf.mxu0
    %v1964 = vadd.f32 %v1806, %v1963
    %1965 = vmatmul.f32.gmra.mxu0 %v1734
    %v1966 = vpop.f32.mrf.mxu0
    %v1967 = vadd.f32 %v1806, %v1966
    %1968 = vmatmul.f32.gmra.mxu0 %v1735
    %v1969 = vpop.f32.mrf.mxu0
    %v1970 = vadd.f32 %v1806, %v1969
    %1971 = vmatmul.f32.gmra.mxu0 %v1736
    %v1972 = vpop.f32.mrf.mxu0
    %v1973 = vadd.f32 %v1806, %v1972
    %1974 = vdwg.mxu0
    %1975 = vst [vmem:[#allocation3] sm:$0xff] %v1829
    %1976 = vst [vmem:[#allocation3 + $0x8] sm:$0xff] %v1870
    %1977 = vst [vmem:[#allocation3 + $0x10] sm:$0xff] %v1911
    %1978 = vst [vmem:[#allocation3 + $0x18] sm:$0xff] %v1952
    %1979 = vst [vmem:[#allocation3 + $0x20] sm:$0xff] %v1832
    %1980 = vst [vmem:[#allocation3 + $0x28] sm:$0xff] %v1873
    %1981 = vst [vmem:[#allocation3 + $0x30] sm:$0xff] %v1914
    %1982 = vst [vmem:[#allocation3 + $0x38] sm:$0xff] %v1955
    %1983 = vst [vmem:[#allocation3 + $0x40] sm:$0xff] %v1835
    %1984 = vst [vmem:[#allocation3 + $0x48] sm:$0xff] %v1876
    %1985 = vst [vmem:[#allocation3 + $0x50] sm:$0xff] %v1917
    %1986 = vst [vmem:[#allocation3 + $0x58] sm:$0xff] %v1958
    %1987 = vst [vmem:[#allocation3 + $0x60] sm:$0xff] %v1838
    %1988 = vst [vmem:[#allocation3 + $0x68] sm:$0xff] %v1879
    %1989 = vst [vmem:[#allocation3 + $0x70] sm:$0xff] %v1920
    %1990 = vst [vmem:[#allocation3 + $0x78] sm:$0xff] %v1961
    %1991 = vst [vmem:[#allocation3 + $0x80] sm:$0xff] %v1841
    %1992 = vst [vmem:[#allocation3 + $0x88] sm:$0xff] %v1882
    %1993 = vst [vmem:[#allocation3 + $0x90] sm:$0xff] %v1923
    %1994 = vst [vmem:[#allocation3 + $0x98] sm:$0xff] %v1964
    %1995 = vst [vmem:[#allocation3 + $0xa0] sm:$0xff] %v1844
    %1996 = vst [vmem:[#allocation3 + $0xa8] sm:$0xff] %v1885
    %1997 = vst [vmem:[#allocation3 + $0xb0] sm:$0xff] %v1926
    %1998 = vst [vmem:[#allocation3 + $0xb8] sm:$0xff] %v1967
    %1999 = vst [vmem:[#allocation3 + $0xc0] sm:$0xff] %v1847
    %2000 = vst [vmem:[#allocation3 + $0xc8] sm:$0xff] %v1888
    %2001 = vst [vmem:[#allocation3 + $0xd0] sm:$0xff] %v1929
    %2002 = vst [vmem:[#allocation3 + $0xd8] sm:$0xff] %v1970
    %2003 = vst [vmem:[#allocation3 + $0xe0] sm:$0xff] %v1850
    %2004 = vst [vmem:[#allocation3 + $0xe8] sm:$0xff] %v1891
    %2005 = vst [vmem:[#allocation3 + $0xf0] sm:$0xff] %v1932
    %2006 = vst [vmem:[#allocation3 + $0xf8] sm:$0xff] %v1973
    %v2007 = vld [vmem:[#allocation13] sm:$0xff]
    %v2008 = vld [vmem:[#allocation13 + $0x8] sm:$0xff]
    %v2009 = vld [vmem:[#allocation13 + $0x10] sm:$0xff]
    %v2010 = vld [vmem:[#allocation13 + $0x18] sm:$0xff]
    %v2011 = vld [vmem:[#allocation13 + $0x20] sm:$0xff]
    %v2012 = vld [vmem:[#allocation13 + $0x28] sm:$0xff]
    %v2013 = vld [vmem:[#allocation13 + $0x30] sm:$0xff]
    %v2014 = vld [vmem:[#allocation13 + $0x38] sm:$0xff]
    %v2015 = vld [vmem:[#allocation13 + $0x40] sm:$0xff]
    %v2016 = vld [vmem:[#allocation13 + $0x48] sm:$0xff]
    %v2017 = vld [vmem:[#allocation13 + $0x50] sm:$0xff]
    %v2018 = vld [vmem:[#allocation13 + $0x58] sm:$0xff]
    %v2019 = vld [vmem:[#allocation13 + $0x60] sm:$0xff]
    %v2020 = vld [vmem:[#allocation13 + $0x68] sm:$0xff]
    %v2021 = vld [vmem:[#allocation13 + $0x70] sm:$0xff]
    %v2022 = vld [vmem:[#allocation13 + $0x78] sm:$0xff]
    %v2023 = vld [vmem:[#allocation13 + $0x80] sm:$0xff]
    %v2024 = vld [vmem:[#allocation13 + $0x88] sm:$0xff]
    %v2025 = vld [vmem:[#allocation13 + $0x90] sm:$0xff]
    %v2026 = vld [vmem:[#allocation13 + $0x98] sm:$0xff]
    %v2027 = vld [vmem:[#allocation13 + $0xa0] sm:$0xff]
    %v2028 = vld [vmem:[#allocation13 + $0xa8] sm:$0xff]
    %v2029 = vld [vmem:[#allocation13 + $0xb0] sm:$0xff]
    %v2030 = vld [vmem:[#allocation13 + $0xb8] sm:$0xff]
    %v2031 = vld [vmem:[#allocation13 + $0xc0] sm:$0xff]
    %v2032 = vld [vmem:[#allocation13 + $0xc8] sm:$0xff]
    %v2033 = vld [vmem:[#allocation13 + $0xd0] sm:$0xff]
    %v2034 = vld [vmem:[#allocation13 + $0xd8] sm:$0xff]
    %v2035 = vld [vmem:[#allocation13 + $0xe0] sm:$0xff]
    %v2036 = vld [vmem:[#allocation13 + $0xe8] sm:$0xff]
    %v2037 = vld [vmem:[#allocation13 + $0xf0] sm:$0xff]
    %v2038 = vld [vmem:[#allocation13 + $0xf8] sm:$0xff]
    %v2039 = vld [vmem:[#allocation13 + $0x100] sm:$0xff]
    %v2040 = vld [vmem:[#allocation13 + $0x108] sm:$0xff]
    %v2041 = vld [vmem:[#allocation13 + $0x110] sm:$0xff]
    %v2042 = vld [vmem:[#allocation13 + $0x118] sm:$0xff]
    %v2043 = vld [vmem:[#allocation13 + $0x120] sm:$0xff]
    %v2044 = vld [vmem:[#allocation13 + $0x128] sm:$0xff]
    %v2045 = vld [vmem:[#allocation13 + $0x130] sm:$0xff]
    %v2046 = vld [vmem:[#allocation13 + $0x138] sm:$0xff]
    %v2047 = vld [vmem:[#allocation13 + $0x140] sm:$0xff]
    %v2048 = vld [vmem:[#allocation13 + $0x148] sm:$0xff]
    %v2049 = vld [vmem:[#allocation13 + $0x150] sm:$0xff]
    %v2050 = vld [vmem:[#allocation13 + $0x158] sm:$0xff]
    %v2051 = vld [vmem:[#allocation13 + $0x160] sm:$0xff]
    %v2052 = vld [vmem:[#allocation13 + $0x168] sm:$0xff]
    %v2053 = vld [vmem:[#allocation13 + $0x170] sm:$0xff]
    %v2054 = vld [vmem:[#allocation13 + $0x178] sm:$0xff]
    %v2055 = vld [vmem:[#allocation13 + $0x180] sm:$0xff]
    %v2056 = vld [vmem:[#allocation13 + $0x188] sm:$0xff]
    %v2057 = vld [vmem:[#allocation13 + $0x190] sm:$0xff]
    %v2058 = vld [vmem:[#allocation13 + $0x198] sm:$0xff]
    %v2059 = vld [vmem:[#allocation13 + $0x1a0] sm:$0xff]
    %v2060 = vld [vmem:[#allocation13 + $0x1a8] sm:$0xff]
    %v2061 = vld [vmem:[#allocation13 + $0x1b0] sm:$0xff]
    %v2062 = vld [vmem:[#allocation13 + $0x1b8] sm:$0xff]
    %v2063 = vld [vmem:[#allocation13 + $0x1c0] sm:$0xff]
    %v2064 = vld [vmem:[#allocation13 + $0x1c8] sm:$0xff]
    %v2065 = vld [vmem:[#allocation13 + $0x1d0] sm:$0xff]
    %v2066 = vld [vmem:[#allocation13 + $0x1d8] sm:$0xff]
    %v2067 = vld [vmem:[#allocation13 + $0x1e0] sm:$0xff]
    %v2068 = vld [vmem:[#allocation13 + $0x1e8] sm:$0xff]
    %v2069 = vld [vmem:[#allocation13 + $0x1f0] sm:$0xff]
    %v2070 = vld [vmem:[#allocation13 + $0x1f8] sm:$0xff]
    %v2071 = vld [vmem:[%s484] sm:$0xff]
    %v2072 = vld [vmem:[%s484 + $0x8] sm:$0xff]
    %v2073 = vld [vmem:[%s484 + $0x10] sm:$0xff]
    %v2074 = vld [vmem:[%s484 + $0x18] sm:$0xff]
    %2075 = vmatpush.msra.mxu0 %v2067
    %2076 = vmatpush.msra.mxu0 %v2063
    %2077 = vmatpush.msra.mxu0 %v2059
    %2078 = vmatpush.msra.mxu0 %v2055
    %2079 = vmatpush.msra.mxu0 %v2051
    %2080 = vmatpush.msra.mxu0 %v2047
    %2081 = vmatpush.msra.mxu0 %v2043
    %2082 = vmatpush.msra.mxu0 %v2039
    %2083 = vmatpush.msra.mxu0 %v2035
    %2084 = vmatpush.msra.mxu0 %v2031
    %2085 = vmatpush.msra.mxu0 %v2027
    %2086 = vmatpush.msra.mxu0 %v2023
    %2087 = vmatpush.msra.mxu0 %v2019
    %2088 = vmatpush.msra.mxu0 %v2015
    %2089 = vmatpush.msra.mxu0 %v2011
    %2090 = vmatpush.msra.mxu0 %v2007
    %2091 = vmatmul.f32.gmra.mxu0 0.0
    %v2092 = vpop.f32.mrf.mxu0
    %v2093 = vadd.f32 0.0, %v2092
    %2094 = vdwg.mxu0
    %2095 = vmatpush.msra.mxu0 %v2068
    %2096 = vmatpush.msra.mxu0 %v2064
    %2097 = vmatpush.msra.mxu0 %v2060
    %2098 = vmatpush.msra.mxu0 %v2056
    %2099 = vmatpush.msra.mxu0 %v2052
    %2100 = vmatpush.msra.mxu0 %v2048
    %2101 = vmatpush.msra.mxu0 %v2044
    %2102 = vmatpush.msra.mxu0 %v2040
    %2103 = vmatpush.msra.mxu0 %v2036
    %2104 = vmatpush.msra.mxu0 %v2032
    %2105 = vmatpush.msra.mxu0 %v2028
    %2106 = vmatpush.msra.mxu0 %v2024
    %2107 = vmatpush.msra.mxu0 %v2020
    %2108 = vmatpush.msra.mxu0 %v2016
    %2109 = vmatpush.msra.mxu0 %v2012
    %2110 = vmatpush.msra.mxu0 %v2008
    %2111 = vmatmul.f32.gmra.mxu0 0.0
    %v2112 = vpop.f32.mrf.mxu0
    %v2113 = vadd.f32 0.0, %v2112
    %2114 = vdwg.mxu0
    %2115 = vmatpush.msra.mxu0 %v2069
    %2116 = vmatpush.msra.mxu0 %v2065
    %2117 = vmatpush.msra.mxu0 %v2061
    %2118 = vmatpush.msra.mxu0 %v2057
    %2119 = vmatpush.msra.mxu0 %v2053
    %2120 = vmatpush.msra.mxu0 %v2049
    %2121 = vmatpush.msra.mxu0 %v2045
    %2122 = vmatpush.msra.mxu0 %v2041
    %2123 = vmatpush.msra.mxu0 %v2037
    %2124 = vmatpush.msra.mxu0 %v2033
    %2125 = vmatpush.msra.mxu0 %v2029
    %2126 = vmatpush.msra.mxu0 %v2025
    %2127 = vmatpush.msra.mxu0 %v2021
    %2128 = vmatpush.msra.mxu0 %v2017
    %2129 = vmatpush.msra.mxu0 %v2013
    %2130 = vmatpush.msra.mxu0 %v2009
    %2131 = vmatmul.f32.gmra.mxu0 0.0
    %v2132 = vpop.f32.mrf.mxu0
    %v2133 = vadd.f32 0.0, %v2132
    %2134 = vdwg.mxu0
    %2135 = vmatpush.msra.mxu0 %v2070
    %2136 = vmatpush.msra.mxu0 %v2066
    %2137 = vmatpush.msra.mxu0 %v2062
    %2138 = vmatpush.msra.mxu0 %v2058
    %2139 = vmatpush.msra.mxu0 %v2054
    %2140 = vmatpush.msra.mxu0 %v2050
    %2141 = vmatpush.msra.mxu0 %v2046
    %2142 = vmatpush.msra.mxu0 %v2042
    %2143 = vmatpush.msra.mxu0 %v2038
    %2144 = vmatpush.msra.mxu0 %v2034
    %2145 = vmatpush.msra.mxu0 %v2030
    %2146 = vmatpush.msra.mxu0 %v2026
    %2147 = vmatpush.msra.mxu0 %v2022
    %2148 = vmatpush.msra.mxu0 %v2018
    %2149 = vmatpush.msra.mxu0 %v2014
    %2150 = vmatpush.msra.mxu0 %v2010
    %2151 = vmatmul.f32.gmra.mxu0 0.0
    %v2152 = vpop.f32.mrf.mxu0
    %v2153 = vadd.f32 0.0, %v2152
    %2154 = vdwg.mxu0
    %v2155 = vadd.f32 %v2071, %v2093
    %v2156 = vadd.f32 %v2072, %v2113
    %v2157 = vadd.f32 %v2073, %v2133
    %v2158 = vadd.f32 %v2074, %v2153
    %v2159 = vxor.u32 %v2155, 2147483648
    %v2160 = vmul.f32 %v2159, 1.442695
    %v2161 = vpow.pop %v2160
    %v2162 = vadd.f32 %v2161, 1.0
    %v2163 = vrcp.pop %v2162
    %v2164 = vmul.f32 %v2162, %v2163
    %v2165 = vsub.f32 1.0, %v2164
    %v2166 = vmul.f32 %v2163, %v2165
    %v2167 = vadd.f32 %v2163, %v2166
    %vm2168 = vweird.f32 %v2162
    %vm2169 = vweird.f32 %v2163
    %vm2170 = vmor %vm2168, %vm2169
    %v2171 = vsel %vm2170, %v2163, %v2167
    %v2172 = vand.u32 2147483647, %v2162
    %vm2173 = vcmp.eq.f32.partialorder %v2172, 8.507059e+37
    %v2174 = vand.u32 %v2162, 2147483648
    %v2175 = vor.u32 1.1754944e-38, %v2174
    %v2176 = vsel %vm2173, %v2175, %v2171
    %v2177 = vmul.f32 1.0, %v2176
    %v2178 = vxor.u32 %v2156, 2147483648
    %v2179 = vmul.f32 %v2178, 1.442695
    %v2180 = vpow.pop %v2179
    %v2181 = vadd.f32 %v2180, 1.0
    %v2182 = vrcp.pop %v2181
    %v2183 = vmul.f32 %v2181, %v2182
    %v2184 = vsub.f32 1.0, %v2183
    %v2185 = vmul.f32 %v2182, %v2184
    %v2186 = vadd.f32 %v2182, %v2185
    %vm2187 = vweird.f32 %v2181
    %vm2188 = vweird.f32 %v2182
    %vm2189 = vmor %vm2187, %vm2188
    %v2190 = vsel %vm2189, %v2182, %v2186
    %v2191 = vand.u32 2147483647, %v2181
    %vm2192 = vcmp.eq.f32.partialorder %v2191, 8.507059e+37
    %v2193 = vand.u32 %v2181, 2147483648
    %v2194 = vor.u32 1.1754944e-38, %v2193
    %v2195 = vsel %vm2192, %v2194, %v2190
    %v2196 = vmul.f32 1.0, %v2195
    %v2197 = vtanh.pop %v2157
    %v2198 = vxor.u32 %v2158, 2147483648
    %v2199 = vmul.f32 %v2198, 1.442695
    %v2200 = vpow.pop %v2199
    %v2201 = vadd.f32 %v2200, 1.0
    %v2202 = vrcp.pop %v2201
    %v2203 = vmul.f32 %v2201, %v2202
    %v2204 = vsub.f32 1.0, %v2203
    %v2205 = vmul.f32 %v2202, %v2204
    %v2206 = vadd.f32 %v2202, %v2205
    %vm2207 = vweird.f32 %v2201
    %vm2208 = vweird.f32 %v2202
    %vm2209 = vmor %vm2207, %vm2208
    %v2210 = vsel %vm2209, %v2202, %v2206
    %v2211 = vand.u32 2147483647, %v2201
    %vm2212 = vcmp.eq.f32.partialorder %v2211, 8.507059e+37
    %v2213 = vand.u32 %v2201, 2147483648
    %v2214 = vor.u32 1.1754944e-38, %v2213
    %v2215 = vsel %vm2212, %v2214, %v2210
    %v2216 = vmul.f32 1.0, %v2215
    %v2217 = vmul.f32 %v2196, 0.0
    %v2218 = vmul.f32 %v2177, %v2197
    %v2219 = vadd.f32 %v2217, %v2218
    %v2220 = vtanh.pop %v2219
    %v2221 = vmul.f32 %v2216, %v2220
    %2222 = vst [vmem:[#allocation2] sm:$0xff] %v2221
    %v2223 = vld [vmem:[%s639] sm:$0xff]
    %v2224 = vld [vmem:[%s639 + $0x8] sm:$0xff]
    %v2225 = vld [vmem:[%s639 + $0x10] sm:$0xff]
    %v2226 = vld [vmem:[%s639 + $0x18] sm:$0xff]
    %2227 = vmatpush.msra.mxu0 %v2067
    %2228 = vmatpush.msra.mxu0 %v2063
    %2229 = vmatpush.msra.mxu0 %v2059
    %2230 = vmatpush.msra.mxu0 %v2055
    %2231 = vmatpush.msra.mxu0 %v2051
    %2232 = vmatpush.msra.mxu0 %v2047
    %2233 = vmatpush.msra.mxu0 %v2043
    %2234 = vmatpush.msra.mxu0 %v2039
    %2235 = vmatpush.msra.mxu0 %v2035
    %2236 = vmatpush.msra.mxu0 %v2031
    %2237 = vmatpush.msra.mxu0 %v2027
    %2238 = vmatpush.msra.mxu0 %v2023
    %2239 = vmatpush.msra.mxu0 %v2019
    %2240 = vmatpush.msra.mxu0 %v2015
    %2241 = vmatpush.msra.mxu0 %v2011
    %2242 = vmatpush.msra.mxu0 %v2007
    %2243 = vmatmul.f32.gmra.mxu0 %v2221
    %v2244 = vpop.f32.mrf.mxu0
    %v2245 = vadd.f32 0.0, %v2244
    %2246 = vdwg.mxu0
    %2247 = vmatpush.msra.mxu0 %v2068
    %2248 = vmatpush.msra.mxu0 %v2064
    %2249 = vmatpush.msra.mxu0 %v2060
    %2250 = vmatpush.msra.mxu0 %v2056
    %2251 = vmatpush.msra.mxu0 %v2052
    %2252 = vmatpush.msra.mxu0 %v2048
    %2253 = vmatpush.msra.mxu0 %v2044
    %2254 = vmatpush.msra.mxu0 %v2040
    %2255 = vmatpush.msra.mxu0 %v2036
    %2256 = vmatpush.msra.mxu0 %v2032
    %2257 = vmatpush.msra.mxu0 %v2028
    %2258 = vmatpush.msra.mxu0 %v2024
    %2259 = vmatpush.msra.mxu0 %v2020
    %2260 = vmatpush.msra.mxu0 %v2016
    %2261 = vmatpush.msra.mxu0 %v2012
    %2262 = vmatpush.msra.mxu0 %v2008
    %2263 = vmatmul.f32.gmra.mxu0 %v2221
    %v2264 = vpop.f32.mrf.mxu0
    %v2265 = vadd.f32 0.0, %v2264
    %2266 = vdwg.mxu0
    %2267 = vmatpush.msra.mxu0 %v2069
    %2268 = vmatpush.msra.mxu0 %v2065
    %2269 = vmatpush.msra.mxu0 %v2061
    %2270 = vmatpush.msra.mxu0 %v2057
    %2271 = vmatpush.msra.mxu0 %v2053
    %2272 = vmatpush.msra.mxu0 %v2049
    %2273 = vmatpush.msra.mxu0 %v2045
    %2274 = vmatpush.msra.mxu0 %v2041
    %2275 = vmatpush.msra.mxu0 %v2037
    %2276 = vmatpush.msra.mxu0 %v2033
    %2277 = vmatpush.msra.mxu0 %v2029
    %2278 = vmatpush.msra.mxu0 %v2025
    %2279 = vmatpush.msra.mxu0 %v2021
    %2280 = vmatpush.msra.mxu0 %v2017
    %2281 = vmatpush.msra.mxu0 %v2013
    %2282 = vmatpush.msra.mxu0 %v2009
    %2283 = vmatmul.f32.gmra.mxu0 %v2221
    %v2284 = vpop.f32.mrf.mxu0
    %v2285 = vadd.f32 0.0, %v2284
    %2286 = vdwg.mxu0
    %2287 = vmatpush.msra.mxu0 %v2070
    %2288 = vmatpush.msra.mxu0 %v2066
    %2289 = vmatpush.msra.mxu0 %v2062
    %2290 = vmatpush.msra.mxu0 %v2058
    %2291 = vmatpush.msra.mxu0 %v2054
    %2292 = vmatpush.msra.mxu0 %v2050
    %2293 = vmatpush.msra.mxu0 %v2046
    %2294 = vmatpush.msra.mxu0 %v2042
    %2295 = vmatpush.msra.mxu0 %v2038
    %2296 = vmatpush.msra.mxu0 %v2034
    %2297 = vmatpush.msra.mxu0 %v2030
    %2298 = vmatpush.msra.mxu0 %v2026
    %2299 = vmatpush.msra.mxu0 %v2022
    %2300 = vmatpush.msra.mxu0 %v2018
    %2301 = vmatpush.msra.mxu0 %v2014
    %2302 = vmatpush.msra.mxu0 %v2010
    %2303 = vmatmul.f32.gmra.mxu0 %v2221
    %v2304 = vpop.f32.mrf.mxu0
    %v2305 = vadd.f32 0.0, %v2304
    %2306 = vdwg.mxu0
    %v2307 = vadd.f32 %v2223, %v2245
    %v2308 = vadd.f32 %v2224, %v2265
    %v2309 = vadd.f32 %v2225, %v2285
    %v2310 = vadd.f32 %v2226, %v2305
    %v2311 = vxor.u32 %v2307, 2147483648
    %v2312 = vmul.f32 %v2311, 1.442695
    %v2313 = vpow.pop %v2312
    %v2314 = vadd.f32 %v2313, 1.0
    %v2315 = vrcp.pop %v2314
    %v2316 = vmul.f32 %v2314, %v2315
    %v2317 = vsub.f32 1.0, %v2316
    %v2318 = vmul.f32 %v2315, %v2317
    %v2319 = vadd.f32 %v2315, %v2318
    %vm2320 = vweird.f32 %v2314
    %vm2321 = vweird.f32 %v2315
    %vm2322 = vmor %vm2320, %vm2321
    %v2323 = vsel %vm2322, %v2315, %v2319
    %v2324 = vand.u32 2147483647, %v2314
    %vm2325 = vcmp.eq.f32.partialorder %v2324, 8.507059e+37
    %v2326 = vand.u32 %v2314, 2147483648
    %v2327 = vor.u32 1.1754944e-38, %v2326
    %v2328 = vsel %vm2325, %v2327, %v2323
    %v2329 = vmul.f32 1.0, %v2328
    %v2330 = vxor.u32 %v2308, 2147483648
    %v2331 = vmul.f32 %v2330, 1.442695
    %v2332 = vpow.pop %v2331
    %v2333 = vadd.f32 %v2332, 1.0
    %v2334 = vrcp.pop %v2333
    %v2335 = vmul.f32 %v2333, %v2334
    %v2336 = vsub.f32 1.0, %v2335
    %v2337 = vmul.f32 %v2334, %v2336
    %v2338 = vadd.f32 %v2334, %v2337
    %vm2339 = vweird.f32 %v2333
    %vm2340 = vweird.f32 %v2334
    %vm2341 = vmor %vm2339, %vm2340
    %v2342 = vsel %vm2341, %v2334, %v2338
    %v2343 = vand.u32 2147483647, %v2333
    %vm2344 = vcmp.eq.f32.partialorder %v2343, 8.507059e+37
    %v2345 = vand.u32 %v2333, 2147483648
    %v2346 = vor.u32 1.1754944e-38, %v2345
    %v2347 = vsel %vm2344, %v2346, %v2342
    %v2348 = vmul.f32 1.0, %v2347
    %v2349 = vtanh.pop %v2309
    %v2350 = vxor.u32 %v2310, 2147483648
    %v2351 = vmul.f32 %v2350, 1.442695
    %v2352 = vpow.pop %v2351
    %v2353 = vadd.f32 %v2352, 1.0
    %v2354 = vrcp.pop %v2353
    %v2355 = vmul.f32 %v2353, %v2354
    %v2356 = vsub.f32 1.0, %v2355
    %v2357 = vmul.f32 %v2354, %v2356
    %v2358 = vadd.f32 %v2354, %v2357
    %vm2359 = vweird.f32 %v2353
    %vm2360 = vweird.f32 %v2354
    %vm2361 = vmor %vm2359, %vm2360
    %v2362 = vsel %vm2361, %v2354, %v2358
    %v2363 = vand.u32 2147483647, %v2353
    %vm2364 = vcmp.eq.f32.partialorder %v2363, 8.507059e+37
    %v2365 = vand.u32 %v2353, 2147483648
    %v2366 = vor.u32 1.1754944e-38, %v2365
    %v2367 = vsel %vm2364, %v2366, %v2362
    %v2368 = vmul.f32 1.0, %v2367
    %v2369 = vmul.f32 %v2348, %v2219
    %v2370 = vmul.f32 %v2329, %v2349
    %v2371 = vadd.f32 %v2369, %v2370
    %v2372 = vtanh.pop %v2371
    %v2373 = vmul.f32 %v2368, %v2372
    %2374 = vst [vmem:[%s791] sm:$0xff] %v2373
    %v2375 = vld [vmem:[%s795] sm:$0xff]
    %v2376 = vld [vmem:[%s795 + $0x8] sm:$0xff]
    %v2377 = vld [vmem:[%s795 + $0x10] sm:$0xff]
    %v2378 = vld [vmem:[%s795 + $0x18] sm:$0xff]
    %2379 = vmatpush.msra.mxu0 %v2067
    %2380 = vmatpush.msra.mxu0 %v2063
    %2381 = vmatpush.msra.mxu0 %v2059
    %2382 = vmatpush.msra.mxu0 %v2055
    %2383 = vmatpush.msra.mxu0 %v2051
    %2384 = vmatpush.msra.mxu0 %v2047
    %2385 = vmatpush.msra.mxu0 %v2043
    %2386 = vmatpush.msra.mxu0 %v2039
    %2387 = vmatpush.msra.mxu0 %v2035
    %2388 = vmatpush.msra.mxu0 %v2031
    %2389 = vmatpush.msra.mxu0 %v2027
    %2390 = vmatpush.msra.mxu0 %v2023
    %2391 = vmatpush.msra.mxu0 %v2019
    %2392 = vmatpush.msra.mxu0 %v2015
    %2393 = vmatpush.msra.mxu0 %v2011
    %2394 = vmatpush.msra.mxu0 %v2007
    %2395 = vmatmul.f32.gmra.mxu0 %v2373
    %v2396 = vpop.f32.mrf.mxu0
    %v2397 = vadd.f32 0.0, %v2396
    %2398 = vdwg.mxu0
    %2399 = vmatpush.msra.mxu0 %v2068
    %2400 = vmatpush.msra.mxu0 %v2064
    %2401 = vmatpush.msra.mxu0 %v2060
    %2402 = vmatpush.msra.mxu0 %v2056
    %2403 = vmatpush.msra.mxu0 %v2052
    %2404 = vmatpush.msra.mxu0 %v2048
    %2405 = vmatpush.msra.mxu0 %v2044
    %2406 = vmatpush.msra.mxu0 %v2040
    %2407 = vmatpush.msra.mxu0 %v2036
    %2408 = vmatpush.msra.mxu0 %v2032
    %2409 = vmatpush.msra.mxu0 %v2028
    %2410 = vmatpush.msra.mxu0 %v2024
    %2411 = vmatpush.msra.mxu0 %v2020
    %2412 = vmatpush.msra.mxu0 %v2016
    %2413 = vmatpush.msra.mxu0 %v2012
    %2414 = vmatpush.msra.mxu0 %v2008
    %2415 = vmatmul.f32.gmra.mxu0 %v2373
    %v2416 = vpop.f32.mrf.mxu0
    %v2417 = vadd.f32 0.0, %v2416
    %2418 = vdwg.mxu0
    %2419 = vmatpush.msra.mxu0 %v2069
    %2420 = vmatpush.msra.mxu0 %v2065
    %2421 = vmatpush.msra.mxu0 %v2061
    %2422 = vmatpush.msra.mxu0 %v2057
    %2423 = vmatpush.msra.mxu0 %v2053
    %2424 = vmatpush.msra.mxu0 %v2049
    %2425 = vmatpush.msra.mxu0 %v2045
    %2426 = vmatpush.msra.mxu0 %v2041
    %2427 = vmatpush.msra.mxu0 %v2037
    %2428 = vmatpush.msra.mxu0 %v2033
    %2429 = vmatpush.msra.mxu0 %v2029
    %2430 = vmatpush.msra.mxu0 %v2025
    %2431 = vmatpush.msra.mxu0 %v2021
    %2432 = vmatpush.msra.mxu0 %v2017
    %2433 = vmatpush.msra.mxu0 %v2013
    %2434 = vmatpush.msra.mxu0 %v2009
    %2435 = vmatmul.f32.gmra.mxu0 %v2373
    %v2436 = vpop.f32.mrf.mxu0
    %v2437 = vadd.f32 0.0, %v2436
    %2438 = vdwg.mxu0
    %2439 = vmatpush.msra.mxu0 %v2070
    %2440 = vmatpush.msra.mxu0 %v2066
    %2441 = vmatpush.msra.mxu0 %v2062
    %2442 = vmatpush.msra.mxu0 %v2058
    %2443 = vmatpush.msra.mxu0 %v2054
    %2444 = vmatpush.msra.mxu0 %v2050
    %2445 = vmatpush.msra.mxu0 %v2046
    %2446 = vmatpush.msra.mxu0 %v2042
    %2447 = vmatpush.msra.mxu0 %v2038
    %2448 = vmatpush.msra.mxu0 %v2034
    %2449 = vmatpush.msra.mxu0 %v2030
    %2450 = vmatpush.msra.mxu0 %v2026
    %2451 = vmatpush.msra.mxu0 %v2022
    %2452 = vmatpush.msra.mxu0 %v2018
    %2453 = vmatpush.msra.mxu0 %v2014
    %2454 = vmatpush.msra.mxu0 %v2010
    %2455 = vmatmul.f32.gmra.mxu0 %v2373
    %v2456 = vpop.f32.mrf.mxu0
    %v2457 = vadd.f32 0.0, %v2456
    %2458 = vdwg.mxu0
    %v2459 = vadd.f32 %v2375, %v2397
    %v2460 = vadd.f32 %v2376, %v2417
    %v2461 = vadd.f32 %v2377, %v2437
    %v2462 = vadd.f32 %v2378, %v2457
    %v2463 = vxor.u32 %v2459, 2147483648
    %v2464 = vmul.f32 %v2463, 1.442695
    %v2465 = vpow.pop %v2464
    %v2466 = vadd.f32 %v2465, 1.0
    %v2467 = vrcp.pop %v2466
    %v2468 = vmul.f32 %v2466, %v2467
    %v2469 = vsub.f32 1.0, %v2468
    %v2470 = vmul.f32 %v2467, %v2469
    %v2471 = vadd.f32 %v2467, %v2470
    %vm2472 = vweird.f32 %v2466
    %vm2473 = vweird.f32 %v2467
    %vm2474 = vmor %vm2472, %vm2473
    %v2475 = vsel %vm2474, %v2467, %v2471
    %v2476 = vand.u32 2147483647, %v2466
    %vm2477 = vcmp.eq.f32.partialorder %v2476, 8.507059e+37
    %v2478 = vand.u32 %v2466, 2147483648
    %v2479 = vor.u32 1.1754944e-38, %v2478
    %v2480 = vsel %vm2477, %v2479, %v2475
    %v2481 = vmul.f32 1.0, %v2480
    %v2482 = vxor.u32 %v2460, 2147483648
    %v2483 = vmul.f32 %v2482, 1.442695
    %v2484 = vpow.pop %v2483
    %v2485 = vadd.f32 %v2484, 1.0
    %v2486 = vrcp.pop %v2485
    %v2487 = vmul.f32 %v2485, %v2486
    %v2488 = vsub.f32 1.0, %v2487
    %v2489 = vmul.f32 %v2486, %v2488
    %v2490 = vadd.f32 %v2486, %v2489
    %vm2491 = vweird.f32 %v2485
    %vm2492 = vweird.f32 %v2486
    %vm2493 = vmor %vm2491, %vm2492
    %v2494 = vsel %vm2493, %v2486, %v2490
    %v2495 = vand.u32 2147483647, %v2485
    %vm2496 = vcmp.eq.f32.partialorder %v2495, 8.507059e+37
    %v2497 = vand.u32 %v2485, 2147483648
    %v2498 = vor.u32 1.1754944e-38, %v2497
    %v2499 = vsel %vm2496, %v2498, %v2494
    %v2500 = vmul.f32 1.0, %v2499
    %v2501 = vtanh.pop %v2461
    %v2502 = vxor.u32 %v2462, 2147483648
    %v2503 = vmul.f32 %v2502, 1.442695
    %v2504 = vpow.pop %v2503
    %v2505 = vadd.f32 %v2504, 1.0
    %v2506 = vrcp.pop %v2505
    %v2507 = vmul.f32 %v2505, %v2506
    %v2508 = vsub.f32 1.0, %v2507
    %v2509 = vmul.f32 %v2506, %v2508
    %v2510 = vadd.f32 %v2506, %v2509
    %vm2511 = vweird.f32 %v2505
    %vm2512 = vweird.f32 %v2506
    %vm2513 = vmor %vm2511, %vm2512
    %v2514 = vsel %vm2513, %v2506, %v2510
    %v2515 = vand.u32 2147483647, %v2505
    %vm2516 = vcmp.eq.f32.partialorder %v2515, 8.507059e+37
    %v2517 = vand.u32 %v2505, 2147483648
    %v2518 = vor.u32 1.1754944e-38, %v2517
    %v2519 = vsel %vm2516, %v2518, %v2514
    %v2520 = vmul.f32 1.0, %v2519
    %v2521 = vmul.f32 %v2500, %v2371
    %v2522 = vmul.f32 %v2481, %v2501
    %v2523 = vadd.f32 %v2521, %v2522
    %v2524 = vtanh.pop %v2523
    %v2525 = vmul.f32 %v2520, %v2524
    %2526 = vst [vmem:[%s947] sm:$0xff] %v2525
    %v2527 = vld [vmem:[%s951] sm:$0xff]
    %v2528 = vld [vmem:[%s951 + $0x8] sm:$0xff]
    %v2529 = vld [vmem:[%s951 + $0x10] sm:$0xff]
    %v2530 = vld [vmem:[%s951 + $0x18] sm:$0xff]
    %2531 = vmatpush.msra.mxu0 %v2067
    %2532 = vmatpush.msra.mxu0 %v2063
    %2533 = vmatpush.msra.mxu0 %v2059
    %2534 = vmatpush.msra.mxu0 %v2055
    %2535 = vmatpush.msra.mxu0 %v2051
    %2536 = vmatpush.msra.mxu0 %v2047
    %2537 = vmatpush.msra.mxu0 %v2043
    %2538 = vmatpush.msra.mxu0 %v2039
    %2539 = vmatpush.msra.mxu0 %v2035
    %2540 = vmatpush.msra.mxu0 %v2031
    %2541 = vmatpush.msra.mxu0 %v2027
    %2542 = vmatpush.msra.mxu0 %v2023
    %2543 = vmatpush.msra.mxu0 %v2019
    %2544 = vmatpush.msra.mxu0 %v2015
    %2545 = vmatpush.msra.mxu0 %v2011
    %2546 = vmatpush.msra.mxu0 %v2007
    %2547 = vmatmul.f32.gmra.mxu0 %v2525
    %v2548 = vpop.f32.mrf.mxu0
    %v2549 = vadd.f32 0.0, %v2548
    %2550 = vdwg.mxu0
    %2551 = vmatpush.msra.mxu0 %v2068
    %2552 = vmatpush.msra.mxu0 %v2064
    %2553 = vmatpush.msra.mxu0 %v2060
    %2554 = vmatpush.msra.mxu0 %v2056
    %2555 = vmatpush.msra.mxu0 %v2052
    %2556 = vmatpush.msra.mxu0 %v2048
    %2557 = vmatpush.msra.mxu0 %v2044
    %2558 = vmatpush.msra.mxu0 %v2040
    %2559 = vmatpush.msra.mxu0 %v2036
    %2560 = vmatpush.msra.mxu0 %v2032
    %2561 = vmatpush.msra.mxu0 %v2028
    %2562 = vmatpush.msra.mxu0 %v2024
    %2563 = vmatpush.msra.mxu0 %v2020
    %2564 = vmatpush.msra.mxu0 %v2016
    %2565 = vmatpush.msra.mxu0 %v2012
    %2566 = vmatpush.msra.mxu0 %v2008
    %2567 = vmatmul.f32.gmra.mxu0 %v2525
    %v2568 = vpop.f32.mrf.mxu0
    %v2569 = vadd.f32 0.0, %v2568
    %2570 = vdwg.mxu0
    %2571 = vmatpush.msra.mxu0 %v2069
    %2572 = vmatpush.msra.mxu0 %v2065
    %2573 = vmatpush.msra.mxu0 %v2061
    %2574 = vmatpush.msra.mxu0 %v2057
    %2575 = vmatpush.msra.mxu0 %v2053
    %2576 = vmatpush.msra.mxu0 %v2049
    %2577 = vmatpush.msra.mxu0 %v2045
    %2578 = vmatpush.msra.mxu0 %v2041
    %2579 = vmatpush.msra.mxu0 %v2037
    %2580 = vmatpush.msra.mxu0 %v2033
    %2581 = vmatpush.msra.mxu0 %v2029
    %2582 = vmatpush.msra.mxu0 %v2025
    %2583 = vmatpush.msra.mxu0 %v2021
    %2584 = vmatpush.msra.mxu0 %v2017
    %2585 = vmatpush.msra.mxu0 %v2013
    %2586 = vmatpush.msra.mxu0 %v2009
    %2587 = vmatmul.f32.gmra.mxu0 %v2525
    %v2588 = vpop.f32.mrf.mxu0
    %v2589 = vadd.f32 0.0, %v2588
    %2590 = vdwg.mxu0
    %2591 = vmatpush.msra.mxu0 %v2070
    %2592 = vmatpush.msra.mxu0 %v2066
    %2593 = vmatpush.msra.mxu0 %v2062
    %2594 = vmatpush.msra.mxu0 %v2058
    %2595 = vmatpush.msra.mxu0 %v2054
    %2596 = vmatpush.msra.mxu0 %v2050
    %2597 = vmatpush.msra.mxu0 %v2046
    %2598 = vmatpush.msra.mxu0 %v2042
    %2599 = vmatpush.msra.mxu0 %v2038
    %2600 = vmatpush.msra.mxu0 %v2034
    %2601 = vmatpush.msra.mxu0 %v2030
    %2602 = vmatpush.msra.mxu0 %v2026
    %2603 = vmatpush.msra.mxu0 %v2022
    %2604 = vmatpush.msra.mxu0 %v2018
    %2605 = vmatpush.msra.mxu0 %v2014
    %2606 = vmatpush.msra.mxu0 %v2010
    %2607 = vmatmul.f32.gmra.mxu0 %v2525
    %v2608 = vpop.f32.mrf.mxu0
    %v2609 = vadd.f32 0.0, %v2608
    %2610 = vdwg.mxu0
    %v2611 = vadd.f32 %v2527, %v2549
    %v2612 = vadd.f32 %v2528, %v2569
    %v2613 = vadd.f32 %v2529, %v2589
    %v2614 = vadd.f32 %v2530, %v2609
    %v2615 = vxor.u32 %v2611, 2147483648
    %v2616 = vmul.f32 %v2615, 1.442695
    %v2617 = vpow.pop %v2616
    %v2618 = vadd.f32 %v2617, 1.0
    %v2619 = vrcp.pop %v2618
    %v2620 = vmul.f32 %v2618, %v2619
    %v2621 = vsub.f32 1.0, %v2620
    %v2622 = vmul.f32 %v2619, %v2621
    %v2623 = vadd.f32 %v2619, %v2622
    %vm2624 = vweird.f32 %v2618
    %vm2625 = vweird.f32 %v2619
    %vm2626 = vmor %vm2624, %vm2625
    %v2627 = vsel %vm2626, %v2619, %v2623
    %v2628 = vand.u32 2147483647, %v2618
    %vm2629 = vcmp.eq.f32.partialorder %v2628, 8.507059e+37
    %v2630 = vand.u32 %v2618, 2147483648
    %v2631 = vor.u32 1.1754944e-38, %v2630
    %v2632 = vsel %vm2629, %v2631, %v2627
    %v2633 = vmul.f32 1.0, %v2632
    %v2634 = vxor.u32 %v2612, 2147483648
    %v2635 = vmul.f32 %v2634, 1.442695
    %v2636 = vpow.pop %v2635
    %v2637 = vadd.f32 %v2636, 1.0
    %v2638 = vrcp.pop %v2637
    %v2639 = vmul.f32 %v2637, %v2638
    %v2640 = vsub.f32 1.0, %v2639
    %v2641 = vmul.f32 %v2638, %v2640
    %v2642 = vadd.f32 %v2638, %v2641
    %vm2643 = vweird.f32 %v2637
    %vm2644 = vweird.f32 %v2638
    %vm2645 = vmor %vm2643, %vm2644
    %v2646 = vsel %vm2645, %v2638, %v2642
    %v2647 = vand.u32 2147483647, %v2637
    %vm2648 = vcmp.eq.f32.partialorder %v2647, 8.507059e+37
    %v2649 = vand.u32 %v2637, 2147483648
    %v2650 = vor.u32 1.1754944e-38, %v2649
    %v2651 = vsel %vm2648, %v2650, %v2646
    %v2652 = vmul.f32 1.0, %v2651
    %v2653 = vtanh.pop %v2613
    %v2654 = vxor.u32 %v2614, 2147483648
    %v2655 = vmul.f32 %v2654, 1.442695
    %v2656 = vpow.pop %v2655
    %v2657 = vadd.f32 %v2656, 1.0
    %v2658 = vrcp.pop %v2657
    %v2659 = vmul.f32 %v2657, %v2658
    %v2660 = vsub.f32 1.0, %v2659
    %v2661 = vmul.f32 %v2658, %v2660
    %v2662 = vadd.f32 %v2658, %v2661
    %vm2663 = vweird.f32 %v2657
    %vm2664 = vweird.f32 %v2658
    %vm2665 = vmor %vm2663, %vm2664
    %v2666 = vsel %vm2665, %v2658, %v2662
    %v2667 = vand.u32 2147483647, %v2657
    %vm2668 = vcmp.eq.f32.partialorder %v2667, 8.507059e+37
    %v2669 = vand.u32 %v2657, 2147483648
    %v2670 = vor.u32 1.1754944e-38, %v2669
    %v2671 = vsel %vm2668, %v2670, %v2666
    %v2672 = vmul.f32 1.0, %v2671
    %v2673 = vmul.f32 %v2652, %v2523
    %v2674 = vmul.f32 %v2633, %v2653
    %v2675 = vadd.f32 %v2673, %v2674
    %v2676 = vtanh.pop %v2675
    %v2677 = vmul.f32 %v2672, %v2676
    %2678 = vst [vmem:[%s1103] sm:$0xff] %v2677
    %v2679 = vld [vmem:[%s1107] sm:$0xff]
    %v2680 = vld [vmem:[%s1107 + $0x8] sm:$0xff]
    %v2681 = vld [vmem:[%s1107 + $0x10] sm:$0xff]
    %v2682 = vld [vmem:[%s1107 + $0x18] sm:$0xff]
    %2683 = vmatpush.msra.mxu0 %v2067
    %2684 = vmatpush.msra.mxu0 %v2063
    %2685 = vmatpush.msra.mxu0 %v2059
    %2686 = vmatpush.msra.mxu0 %v2055
    %2687 = vmatpush.msra.mxu0 %v2051
    %2688 = vmatpush.msra.mxu0 %v2047
    %2689 = vmatpush.msra.mxu0 %v2043
    %2690 = vmatpush.msra.mxu0 %v2039
    %2691 = vmatpush.msra.mxu0 %v2035
    %2692 = vmatpush.msra.mxu0 %v2031
    %2693 = vmatpush.msra.mxu0 %v2027
    %2694 = vmatpush.msra.mxu0 %v2023
    %2695 = vmatpush.msra.mxu0 %v2019
    %2696 = vmatpush.msra.mxu0 %v2015
    %2697 = vmatpush.msra.mxu0 %v2011
    %2698 = vmatpush.msra.mxu0 %v2007
    %2699 = vmatmul.f32.gmra.mxu0 %v2677
    %v2700 = vpop.f32.mrf.mxu0
    %v2701 = vadd.f32 0.0, %v2700
    %2702 = vdwg.mxu0
    %2703 = vmatpush.msra.mxu0 %v2068
    %2704 = vmatpush.msra.mxu0 %v2064
    %2705 = vmatpush.msra.mxu0 %v2060
    %2706 = vmatpush.msra.mxu0 %v2056
    %2707 = vmatpush.msra.mxu0 %v2052
    %2708 = vmatpush.msra.mxu0 %v2048
    %2709 = vmatpush.msra.mxu0 %v2044
    %2710 = vmatpush.msra.mxu0 %v2040
    %2711 = vmatpush.msra.mxu0 %v2036
    %2712 = vmatpush.msra.mxu0 %v2032
    %2713 = vmatpush.msra.mxu0 %v2028
    %2714 = vmatpush.msra.mxu0 %v2024
    %2715 = vmatpush.msra.mxu0 %v2020
    %2716 = vmatpush.msra.mxu0 %v2016
    %2717 = vmatpush.msra.mxu0 %v2012
    %2718 = vmatpush.msra.mxu0 %v2008
    %2719 = vmatmul.f32.gmra.mxu0 %v2677
    %v2720 = vpop.f32.mrf.mxu0
    %v2721 = vadd.f32 0.0, %v2720
    %2722 = vdwg.mxu0
    %2723 = vmatpush.msra.mxu0 %v2069
    %2724 = vmatpush.msra.mxu0 %v2065
    %2725 = vmatpush.msra.mxu0 %v2061
    %2726 = vmatpush.msra.mxu0 %v2057
    %2727 = vmatpush.msra.mxu0 %v2053
    %2728 = vmatpush.msra.mxu0 %v2049
    %2729 = vmatpush.msra.mxu0 %v2045
    %2730 = vmatpush.msra.mxu0 %v2041
    %2731 = vmatpush.msra.mxu0 %v2037
    %2732 = vmatpush.msra.mxu0 %v2033
    %2733 = vmatpush.msra.mxu0 %v2029
    %2734 = vmatpush.msra.mxu0 %v2025
    %2735 = vmatpush.msra.mxu0 %v2021
    %2736 = vmatpush.msra.mxu0 %v2017
    %2737 = vmatpush.msra.mxu0 %v2013
    %2738 = vmatpush.msra.mxu0 %v2009
    %2739 = vmatmul.f32.gmra.mxu0 %v2677
    %v2740 = vpop.f32.mrf.mxu0
    %v2741 = vadd.f32 0.0, %v2740
    %2742 = vdwg.mxu0
    %2743 = vmatpush.msra.mxu0 %v2070
    %2744 = vmatpush.msra.mxu0 %v2066
    %2745 = vmatpush.msra.mxu0 %v2062
    %2746 = vmatpush.msra.mxu0 %v2058
    %2747 = vmatpush.msra.mxu0 %v2054
    %2748 = vmatpush.msra.mxu0 %v2050
    %2749 = vmatpush.msra.mxu0 %v2046
    %2750 = vmatpush.msra.mxu0 %v2042
    %2751 = vmatpush.msra.mxu0 %v2038
    %2752 = vmatpush.msra.mxu0 %v2034
    %2753 = vmatpush.msra.mxu0 %v2030
    %2754 = vmatpush.msra.mxu0 %v2026
    %2755 = vmatpush.msra.mxu0 %v2022
    %2756 = vmatpush.msra.mxu0 %v2018
    %2757 = vmatpush.msra.mxu0 %v2014
    %2758 = vmatpush.msra.mxu0 %v2010
    %2759 = vmatmul.f32.gmra.mxu0 %v2677
    %v2760 = vpop.f32.mrf.mxu0
    %v2761 = vadd.f32 0.0, %v2760
    %2762 = vdwg.mxu0
    %v2763 = vadd.f32 %v2679, %v2701
    %v2764 = vadd.f32 %v2680, %v2721
    %v2765 = vadd.f32 %v2681, %v2741
    %v2766 = vadd.f32 %v2682, %v2761
    %v2767 = vxor.u32 %v2763, 2147483648
    %v2768 = vmul.f32 %v2767, 1.442695
    %v2769 = vpow.pop %v2768
    %v2770 = vadd.f32 %v2769, 1.0
    %v2771 = vrcp.pop %v2770
    %v2772 = vmul.f32 %v2770, %v2771
    %v2773 = vsub.f32 1.0, %v2772
    %v2774 = vmul.f32 %v2771, %v2773
    %v2775 = vadd.f32 %v2771, %v2774
    %vm2776 = vweird.f32 %v2770
    %vm2777 = vweird.f32 %v2771
    %vm2778 = vmor %vm2776, %vm2777
    %v2779 = vsel %vm2778, %v2771, %v2775
    %v2780 = vand.u32 2147483647, %v2770
    %vm2781 = vcmp.eq.f32.partialorder %v2780, 8.507059e+37
    %v2782 = vand.u32 %v2770, 2147483648
    %v2783 = vor.u32 1.1754944e-38, %v2782
    %v2784 = vsel %vm2781, %v2783, %v2779
    %v2785 = vmul.f32 1.0, %v2784
    %v2786 = vxor.u32 %v2764, 2147483648
    %v2787 = vmul.f32 %v2786, 1.442695
    %v2788 = vpow.pop %v2787
    %v2789 = vadd.f32 %v2788, 1.0
    %v2790 = vrcp.pop %v2789
    %v2791 = vmul.f32 %v2789, %v2790
    %v2792 = vsub.f32 1.0, %v2791
    %v2793 = vmul.f32 %v2790, %v2792
    %v2794 = vadd.f32 %v2790, %v2793
    %vm2795 = vweird.f32 %v2789
    %vm2796 = vweird.f32 %v2790
    %vm2797 = vmor %vm2795, %vm2796
    %v2798 = vsel %vm2797, %v2790, %v2794
    %v2799 = vand.u32 2147483647, %v2789
    %vm2800 = vcmp.eq.f32.partialorder %v2799, 8.507059e+37
    %v2801 = vand.u32 %v2789, 2147483648
    %v2802 = vor.u32 1.1754944e-38, %v2801
    %v2803 = vsel %vm2800, %v2802, %v2798
    %v2804 = vmul.f32 1.0, %v2803
    %v2805 = vtanh.pop %v2765
    %v2806 = vxor.u32 %v2766, 2147483648
    %v2807 = vmul.f32 %v2806, 1.442695
    %v2808 = vpow.pop %v2807
    %v2809 = vadd.f32 %v2808, 1.0
    %v2810 = vrcp.pop %v2809
    %v2811 = vmul.f32 %v2809, %v2810
    %v2812 = vsub.f32 1.0, %v2811
    %v2813 = vmul.f32 %v2810, %v2812
    %v2814 = vadd.f32 %v2810, %v2813
    %vm2815 = vweird.f32 %v2809
    %vm2816 = vweird.f32 %v2810
    %vm2817 = vmor %vm2815, %vm2816
    %v2818 = vsel %vm2817, %v2810, %v2814
    %v2819 = vand.u32 2147483647, %v2809
    %vm2820 = vcmp.eq.f32.partialorder %v2819, 8.507059e+37
    %v2821 = vand.u32 %v2809, 2147483648
    %v2822 = vor.u32 1.1754944e-38, %v2821
    %v2823 = vsel %vm2820, %v2822, %v2818
    %v2824 = vmul.f32 1.0, %v2823
    %v2825 = vmul.f32 %v2804, %v2675
    %v2826 = vmul.f32 %v2785, %v2805
    %v2827 = vadd.f32 %v2825, %v2826
    %v2828 = vtanh.pop %v2827
    %v2829 = vmul.f32 %v2824, %v2828
    %2830 = vst [vmem:[%s1259] sm:$0xff] %v2829
    %v2831 = vld [vmem:[%s1263] sm:$0xff]
    %v2832 = vld [vmem:[%s1263 + $0x8] sm:$0xff]
    %v2833 = vld [vmem:[%s1263 + $0x10] sm:$0xff]
    %v2834 = vld [vmem:[%s1263 + $0x18] sm:$0xff]
    %2835 = vmatpush.msra.mxu0 %v2067
    %2836 = vmatpush.msra.mxu0 %v2063
    %2837 = vmatpush.msra.mxu0 %v2059
    %2838 = vmatpush.msra.mxu0 %v2055
    %2839 = vmatpush.msra.mxu0 %v2051
    %2840 = vmatpush.msra.mxu0 %v2047
    %2841 = vmatpush.msra.mxu0 %v2043
    %2842 = vmatpush.msra.mxu0 %v2039
    %2843 = vmatpush.msra.mxu0 %v2035
    %2844 = vmatpush.msra.mxu0 %v2031
    %2845 = vmatpush.msra.mxu0 %v2027
    %2846 = vmatpush.msra.mxu0 %v2023
    %2847 = vmatpush.msra.mxu0 %v2019
    %2848 = vmatpush.msra.mxu0 %v2015
    %2849 = vmatpush.msra.mxu0 %v2011
    %2850 = vmatpush.msra.mxu0 %v2007
    %2851 = vmatmul.f32.gmra.mxu0 %v2829
    %v2852 = vpop.f32.mrf.mxu0
    %v2853 = vadd.f32 0.0, %v2852
    %2854 = vdwg.mxu0
    %2855 = vmatpush.msra.mxu0 %v2068
    %2856 = vmatpush.msra.mxu0 %v2064
    %2857 = vmatpush.msra.mxu0 %v2060
    %2858 = vmatpush.msra.mxu0 %v2056
    %2859 = vmatpush.msra.mxu0 %v2052
    %2860 = vmatpush.msra.mxu0 %v2048
    %2861 = vmatpush.msra.mxu0 %v2044
    %2862 = vmatpush.msra.mxu0 %v2040
    %2863 = vmatpush.msra.mxu0 %v2036
    %2864 = vmatpush.msra.mxu0 %v2032
    %2865 = vmatpush.msra.mxu0 %v2028
    %2866 = vmatpush.msra.mxu0 %v2024
    %2867 = vmatpush.msra.mxu0 %v2020
    %2868 = vmatpush.msra.mxu0 %v2016
    %2869 = vmatpush.msra.mxu0 %v2012
    %2870 = vmatpush.msra.mxu0 %v2008
    %2871 = vmatmul.f32.gmra.mxu0 %v2829
    %v2872 = vpop.f32.mrf.mxu0
    %v2873 = vadd.f32 0.0, %v2872
    %2874 = vdwg.mxu0
    %2875 = vmatpush.msra.mxu0 %v2069
    %2876 = vmatpush.msra.mxu0 %v2065
    %2877 = vmatpush.msra.mxu0 %v2061
    %2878 = vmatpush.msra.mxu0 %v2057
    %2879 = vmatpush.msra.mxu0 %v2053
    %2880 = vmatpush.msra.mxu0 %v2049
    %2881 = vmatpush.msra.mxu0 %v2045
    %2882 = vmatpush.msra.mxu0 %v2041
    %2883 = vmatpush.msra.mxu0 %v2037
    %2884 = vmatpush.msra.mxu0 %v2033
    %2885 = vmatpush.msra.mxu0 %v2029
    %2886 = vmatpush.msra.mxu0 %v2025
    %2887 = vmatpush.msra.mxu0 %v2021
    %2888 = vmatpush.msra.mxu0 %v2017
    %2889 = vmatpush.msra.mxu0 %v2013
    %2890 = vmatpush.msra.mxu0 %v2009
    %2891 = vmatmul.f32.gmra.mxu0 %v2829
    %v2892 = vpop.f32.mrf.mxu0
    %v2893 = vadd.f32 0.0, %v2892
    %2894 = vdwg.mxu0
    %2895 = vmatpush.msra.mxu0 %v2070
    %2896 = vmatpush.msra.mxu0 %v2066
    %2897 = vmatpush.msra.mxu0 %v2062
    %2898 = vmatpush.msra.mxu0 %v2058
    %2899 = vmatpush.msra.mxu0 %v2054
    %2900 = vmatpush.msra.mxu0 %v2050
    %2901 = vmatpush.msra.mxu0 %v2046
    %2902 = vmatpush.msra.mxu0 %v2042
    %2903 = vmatpush.msra.mxu0 %v2038
    %2904 = vmatpush.msra.mxu0 %v2034
    %2905 = vmatpush.msra.mxu0 %v2030
    %2906 = vmatpush.msra.mxu0 %v2026
    %2907 = vmatpush.msra.mxu0 %v2022
    %2908 = vmatpush.msra.mxu0 %v2018
    %2909 = vmatpush.msra.mxu0 %v2014
    %2910 = vmatpush.msra.mxu0 %v2010
    %2911 = vmatmul.f32.gmra.mxu0 %v2829
    %v2912 = vpop.f32.mrf.mxu0
    %v2913 = vadd.f32 0.0, %v2912
    %2914 = vdwg.mxu0
    %v2915 = vadd.f32 %v2831, %v2853
    %v2916 = vadd.f32 %v2832, %v2873
    %v2917 = vadd.f32 %v2833, %v2893
    %v2918 = vadd.f32 %v2834, %v2913
    %v2919 = vxor.u32 %v2915, 2147483648
    %v2920 = vmul.f32 %v2919, 1.442695
    %v2921 = vpow.pop %v2920
    %v2922 = vadd.f32 %v2921, 1.0
    %v2923 = vrcp.pop %v2922
    %v2924 = vmul.f32 %v2922, %v2923
    %v2925 = vsub.f32 1.0, %v2924
    %v2926 = vmul.f32 %v2923, %v2925
    %v2927 = vadd.f32 %v2923, %v2926
    %vm2928 = vweird.f32 %v2922
    %vm2929 = vweird.f32 %v2923
    %vm2930 = vmor %vm2928, %vm2929
    %v2931 = vsel %vm2930, %v2923, %v2927
    %v2932 = vand.u32 2147483647, %v2922
    %vm2933 = vcmp.eq.f32.partialorder %v2932, 8.507059e+37
    %v2934 = vand.u32 %v2922, 2147483648
    %v2935 = vor.u32 1.1754944e-38, %v2934
    %v2936 = vsel %vm2933, %v2935, %v2931
    %v2937 = vmul.f32 1.0, %v2936
    %v2938 = vxor.u32 %v2916, 2147483648
    %v2939 = vmul.f32 %v2938, 1.442695
    %v2940 = vpow.pop %v2939
    %v2941 = vadd.f32 %v2940, 1.0
    %v2942 = vrcp.pop %v2941
    %v2943 = vmul.f32 %v2941, %v2942
    %v2944 = vsub.f32 1.0, %v2943
    %v2945 = vmul.f32 %v2942, %v2944
    %v2946 = vadd.f32 %v2942, %v2945
    %vm2947 = vweird.f32 %v2941
    %vm2948 = vweird.f32 %v2942
    %vm2949 = vmor %vm2947, %vm2948
    %v2950 = vsel %vm2949, %v2942, %v2946
    %v2951 = vand.u32 2147483647, %v2941
    %vm2952 = vcmp.eq.f32.partialorder %v2951, 8.507059e+37
    %v2953 = vand.u32 %v2941, 2147483648
    %v2954 = vor.u32 1.1754944e-38, %v2953
    %v2955 = vsel %vm2952, %v2954, %v2950
    %v2956 = vmul.f32 1.0, %v2955
    %v2957 = vtanh.pop %v2917
    %v2958 = vxor.u32 %v2918, 2147483648
    %v2959 = vmul.f32 %v2958, 1.442695
    %v2960 = vpow.pop %v2959
    %v2961 = vadd.f32 %v2960, 1.0
    %v2962 = vrcp.pop %v2961
    %v2963 = vmul.f32 %v2961, %v2962
    %v2964 = vsub.f32 1.0, %v2963
    %v2965 = vmul.f32 %v2962, %v2964
    %v2966 = vadd.f32 %v2962, %v2965
    %vm2967 = vweird.f32 %v2961
    %vm2968 = vweird.f32 %v2962
    %vm2969 = vmor %vm2967, %vm2968
    %v2970 = vsel %vm2969, %v2962, %v2966
    %v2971 = vand.u32 2147483647, %v2961
    %vm2972 = vcmp.eq.f32.partialorder %v2971, 8.507059e+37
    %v2973 = vand.u32 %v2961, 2147483648
    %v2974 = vor.u32 1.1754944e-38, %v2973
    %v2975 = vsel %vm2972, %v2974, %v2970
    %v2976 = vmul.f32 1.0, %v2975
    %v2977 = vmul.f32 %v2956, %v2827
    %v2978 = vmul.f32 %v2937, %v2957
    %v2979 = vadd.f32 %v2977, %v2978
    %v2980 = vtanh.pop %v2979
    %v2981 = vmul.f32 %v2976, %v2980
    %2982 = vst [vmem:[%s1415] sm:$0xff] %v2981
    %v2983 = vld [vmem:[%s1419] sm:$0xff]
    %v2984 = vld [vmem:[%s1419 + $0x8] sm:$0xff]
    %v2985 = vld [vmem:[%s1419 + $0x10] sm:$0xff]
    %v2986 = vld [vmem:[%s1419 + $0x18] sm:$0xff]
    %2987 = vmatpush.msra.mxu0 %v2067
    %2988 = vmatpush.msra.mxu0 %v2063
    %2989 = vmatpush.msra.mxu0 %v2059
    %2990 = vmatpush.msra.mxu0 %v2055
    %2991 = vmatpush.msra.mxu0 %v2051
    %2992 = vmatpush.msra.mxu0 %v2047
    %2993 = vmatpush.msra.mxu0 %v2043
    %2994 = vmatpush.msra.mxu0 %v2039
    %2995 = vmatpush.msra.mxu0 %v2035
    %2996 = vmatpush.msra.mxu0 %v2031
    %2997 = vmatpush.msra.mxu0 %v2027
    %2998 = vmatpush.msra.mxu0 %v2023
    %2999 = vmatpush.msra.mxu0 %v2019
    %3000 = vmatpush.msra.mxu0 %v2015
    %3001 = vmatpush.msra.mxu0 %v2011
    %3002 = vmatpush.msra.mxu0 %v2007
    %3003 = vmatmul.f32.gmra.mxu0 %v2981
    %v3004 = vpop.f32.mrf.mxu0
    %v3005 = vadd.f32 0.0, %v3004
    %3006 = vdwg.mxu0
    %3007 = vmatpush.msra.mxu0 %v2068
    %3008 = vmatpush.msra.mxu0 %v2064
    %3009 = vmatpush.msra.mxu0 %v2060
    %3010 = vmatpush.msra.mxu0 %v2056
    %3011 = vmatpush.msra.mxu0 %v2052
    %3012 = vmatpush.msra.mxu0 %v2048
    %3013 = vmatpush.msra.mxu0 %v2044
    %3014 = vmatpush.msra.mxu0 %v2040
    %3015 = vmatpush.msra.mxu0 %v2036
    %3016 = vmatpush.msra.mxu0 %v2032
    %3017 = vmatpush.msra.mxu0 %v2028
    %3018 = vmatpush.msra.mxu0 %v2024
    %3019 = vmatpush.msra.mxu0 %v2020
    %3020 = vmatpush.msra.mxu0 %v2016
    %3021 = vmatpush.msra.mxu0 %v2012
    %3022 = vmatpush.msra.mxu0 %v2008
    %3023 = vmatmul.f32.gmra.mxu0 %v2981
    %v3024 = vpop.f32.mrf.mxu0
    %v3025 = vadd.f32 0.0, %v3024
    %3026 = vdwg.mxu0
    %3027 = vmatpush.msra.mxu0 %v2069
    %3028 = vmatpush.msra.mxu0 %v2065
    %3029 = vmatpush.msra.mxu0 %v2061
    %3030 = vmatpush.msra.mxu0 %v2057
    %3031 = vmatpush.msra.mxu0 %v2053
    %3032 = vmatpush.msra.mxu0 %v2049
    %3033 = vmatpush.msra.mxu0 %v2045
    %3034 = vmatpush.msra.mxu0 %v2041
    %3035 = vmatpush.msra.mxu0 %v2037
    %3036 = vmatpush.msra.mxu0 %v2033
    %3037 = vmatpush.msra.mxu0 %v2029
    %3038 = vmatpush.msra.mxu0 %v2025
    %3039 = vmatpush.msra.mxu0 %v2021
    %3040 = vmatpush.msra.mxu0 %v2017
    %3041 = vmatpush.msra.mxu0 %v2013
    %3042 = vmatpush.msra.mxu0 %v2009
    %3043 = vmatmul.f32.gmra.mxu0 %v2981
    %v3044 = vpop.f32.mrf.mxu0
    %v3045 = vadd.f32 0.0, %v3044
    %3046 = vdwg.mxu0
    %3047 = vmatpush.msra.mxu0 %v2070
    %3048 = vmatpush.msra.mxu0 %v2066
    %3049 = vmatpush.msra.mxu0 %v2062
    %3050 = vmatpush.msra.mxu0 %v2058
    %3051 = vmatpush.msra.mxu0 %v2054
    %3052 = vmatpush.msra.mxu0 %v2050
    %3053 = vmatpush.msra.mxu0 %v2046
    %3054 = vmatpush.msra.mxu0 %v2042
    %3055 = vmatpush.msra.mxu0 %v2038
    %3056 = vmatpush.msra.mxu0 %v2034
    %3057 = vmatpush.msra.mxu0 %v2030
    %3058 = vmatpush.msra.mxu0 %v2026
    %3059 = vmatpush.msra.mxu0 %v2022
    %3060 = vmatpush.msra.mxu0 %v2018
    %3061 = vmatpush.msra.mxu0 %v2014
    %3062 = vmatpush.msra.mxu0 %v2010
    %3063 = vmatmul.f32.gmra.mxu0 %v2981
    %v3064 = vpop.f32.mrf.mxu0
    %v3065 = vadd.f32 0.0, %v3064
    %3066 = vdwg.mxu0
    %v3067 = vadd.f32 %v2983, %v3005
    %v3068 = vadd.f32 %v2984, %v3025
    %v3069 = vadd.f32 %v2985, %v3045
    %v3070 = vadd.f32 %v2986, %v3065
    %v3071 = vxor.u32 %v3067, 2147483648
    %v3072 = vmul.f32 %v3071, 1.442695
    %v3073 = vpow.pop %v3072
    %v3074 = vadd.f32 %v3073, 1.0
    %v3075 = vrcp.pop %v3074
    %v3076 = vmul.f32 %v3074, %v3075
    %v3077 = vsub.f32 1.0, %v3076
    %v3078 = vmul.f32 %v3075, %v3077
    %v3079 = vadd.f32 %v3075, %v3078
    %vm3080 = vweird.f32 %v3074
    %vm3081 = vweird.f32 %v3075
    %vm3082 = vmor %vm3080, %vm3081
    %v3083 = vsel %vm3082, %v3075, %v3079
    %v3084 = vand.u32 2147483647, %v3074
    %vm3085 = vcmp.eq.f32.partialorder %v3084, 8.507059e+37
    %v3086 = vand.u32 %v3074, 2147483648
    %v3087 = vor.u32 1.1754944e-38, %v3086
    %v3088 = vsel %vm3085, %v3087, %v3083
    %v3089 = vmul.f32 1.0, %v3088
    %v3090 = vxor.u32 %v3068, 2147483648
    %v3091 = vmul.f32 %v3090, 1.442695
    %v3092 = vpow.pop %v3091
    %v3093 = vadd.f32 %v3092, 1.0
    %v3094 = vrcp.pop %v3093
    %v3095 = vmul.f32 %v3093, %v3094
    %v3096 = vsub.f32 1.0, %v3095
    %v3097 = vmul.f32 %v3094, %v3096
    %v3098 = vadd.f32 %v3094, %v3097
    %vm3099 = vweird.f32 %v3093
    %vm3100 = vweird.f32 %v3094
    %vm3101 = vmor %vm3099, %vm3100
    %v3102 = vsel %vm3101, %v3094, %v3098
    %v3103 = vand.u32 2147483647, %v3093
    %vm3104 = vcmp.eq.f32.partialorder %v3103, 8.507059e+37
    %v3105 = vand.u32 %v3093, 2147483648
    %v3106 = vor.u32 1.1754944e-38, %v3105
    %v3107 = vsel %vm3104, %v3106, %v3102
    %v3108 = vmul.f32 1.0, %v3107
    %v3109 = vtanh.pop %v3069
    %v3110 = vxor.u32 %v3070, 2147483648
    %v3111 = vmul.f32 %v3110, 1.442695
    %v3112 = vpow.pop %v3111
    %v3113 = vadd.f32 %v3112, 1.0
    %v3114 = vrcp.pop %v3113
    %v3115 = vmul.f32 %v3113, %v3114
    %v3116 = vsub.f32 1.0, %v3115
    %v3117 = vmul.f32 %v3114, %v3116
    %v3118 = vadd.f32 %v3114, %v3117
    %vm3119 = vweird.f32 %v3113
    %vm3120 = vweird.f32 %v3114
    %vm3121 = vmor %vm3119, %vm3120
    %v3122 = vsel %vm3121, %v3114, %v3118
    %v3123 = vand.u32 2147483647, %v3113
    %vm3124 = vcmp.eq.f32.partialorder %v3123, 8.507059e+37
    %v3125 = vand.u32 %v3113, 2147483648
    %v3126 = vor.u32 1.1754944e-38, %v3125
    %v3127 = vsel %vm3124, %v3126, %v3122
    %v3128 = vmul.f32 1.0, %v3127
    %v3129 = vmul.f32 %v3108, %v2979
    %v3130 = vmul.f32 %v3089, %v3109
    %v3131 = vadd.f32 %v3129, %v3130
    %v3132 = vtanh.pop %v3131
    %v3133 = vmul.f32 %v3128, %v3132
    %3134 = vst [vmem:[%s1571] sm:$0xff] %v3133
    %v3135 = vld [vmem:[%s1575] sm:$0xff]
    %v3136 = vld [vmem:[%s1575 + $0x8] sm:$0xff]
    %v3137 = vld [vmem:[%s1575 + $0x10] sm:$0xff]
    %v3138 = vld [vmem:[%s1575 + $0x18] sm:$0xff]
    %3139 = vmatpush.msra.mxu0 %v2067
    %3140 = vmatpush.msra.mxu0 %v2063
    %3141 = vmatpush.msra.mxu0 %v2059
    %3142 = vmatpush.msra.mxu0 %v2055
    %3143 = vmatpush.msra.mxu0 %v2051
    %3144 = vmatpush.msra.mxu0 %v2047
    %3145 = vmatpush.msra.mxu0 %v2043
    %3146 = vmatpush.msra.mxu0 %v2039
    %3147 = vmatpush.msra.mxu0 %v2035
    %3148 = vmatpush.msra.mxu0 %v2031
    %3149 = vmatpush.msra.mxu0 %v2027
    %3150 = vmatpush.msra.mxu0 %v2023
    %3151 = vmatpush.msra.mxu0 %v2019
    %3152 = vmatpush.msra.mxu0 %v2015
    %3153 = vmatpush.msra.mxu0 %v2011
    %3154 = vmatpush.msra.mxu0 %v2007
    %3155 = vmatmul.f32.gmra.mxu0 %v3133
    %v3156 = vpop.f32.mrf.mxu0
    %v3157 = vadd.f32 0.0, %v3156
    %3158 = vdwg.mxu0
    %3159 = vmatpush.msra.mxu0 %v2068
    %3160 = vmatpush.msra.mxu0 %v2064
    %3161 = vmatpush.msra.mxu0 %v2060
    %3162 = vmatpush.msra.mxu0 %v2056
    %3163 = vmatpush.msra.mxu0 %v2052
    %3164 = vmatpush.msra.mxu0 %v2048
    %3165 = vmatpush.msra.mxu0 %v2044
    %3166 = vmatpush.msra.mxu0 %v2040
    %3167 = vmatpush.msra.mxu0 %v2036
    %3168 = vmatpush.msra.mxu0 %v2032
    %3169 = vmatpush.msra.mxu0 %v2028
    %3170 = vmatpush.msra.mxu0 %v2024
    %3171 = vmatpush.msra.mxu0 %v2020
    %3172 = vmatpush.msra.mxu0 %v2016
    %3173 = vmatpush.msra.mxu0 %v2012
    %3174 = vmatpush.msra.mxu0 %v2008
    %3175 = vmatmul.f32.gmra.mxu0 %v3133
    %v3176 = vpop.f32.mrf.mxu0
    %v3177 = vadd.f32 0.0, %v3176
    %3178 = vdwg.mxu0
    %3179 = vmatpush.msra.mxu0 %v2069
    %3180 = vmatpush.msra.mxu0 %v2065
    %3181 = vmatpush.msra.mxu0 %v2061
    %3182 = vmatpush.msra.mxu0 %v2057
    %3183 = vmatpush.msra.mxu0 %v2053
    %3184 = vmatpush.msra.mxu0 %v2049
    %3185 = vmatpush.msra.mxu0 %v2045
    %3186 = vmatpush.msra.mxu0 %v2041
    %3187 = vmatpush.msra.mxu0 %v2037
    %3188 = vmatpush.msra.mxu0 %v2033
    %3189 = vmatpush.msra.mxu0 %v2029
    %3190 = vmatpush.msra.mxu0 %v2025
    %3191 = vmatpush.msra.mxu0 %v2021
    %3192 = vmatpush.msra.mxu0 %v2017
    %3193 = vmatpush.msra.mxu0 %v2013
    %3194 = vmatpush.msra.mxu0 %v2009
    %3195 = vmatmul.f32.gmra.mxu0 %v3133
    %v3196 = vpop.f32.mrf.mxu0
    %v3197 = vadd.f32 0.0, %v3196
    %3198 = vdwg.mxu0
    %3199 = vmatpush.msra.mxu0 %v2070
    %3200 = vmatpush.msra.mxu0 %v2066
    %3201 = vmatpush.msra.mxu0 %v2062
    %3202 = vmatpush.msra.mxu0 %v2058
    %3203 = vmatpush.msra.mxu0 %v2054
    %3204 = vmatpush.msra.mxu0 %v2050
    %3205 = vmatpush.msra.mxu0 %v2046
    %3206 = vmatpush.msra.mxu0 %v2042
    %3207 = vmatpush.msra.mxu0 %v2038
    %3208 = vmatpush.msra.mxu0 %v2034
    %3209 = vmatpush.msra.mxu0 %v2030
    %3210 = vmatpush.msra.mxu0 %v2026
    %3211 = vmatpush.msra.mxu0 %v2022
    %3212 = vmatpush.msra.mxu0 %v2018
    %3213 = vmatpush.msra.mxu0 %v2014
    %3214 = vmatpush.msra.mxu0 %v2010
    %3215 = vmatmul.f32.gmra.mxu0 %v3133
    %v3216 = vpop.f32.mrf.mxu0
    %v3217 = vadd.f32 0.0, %v3216
    %3218 = vdwg.mxu0
    %v3219 = vadd.f32 %v3135, %v3157
    %v3220 = vadd.f32 %v3136, %v3177
    %v3221 = vadd.f32 %v3137, %v3197
    %v3222 = vadd.f32 %v3138, %v3217
    %v3223 = vxor.u32 %v3219, 2147483648
    %v3224 = vmul.f32 %v3223, 1.442695
    %v3225 = vpow.pop %v3224
    %v3226 = vadd.f32 %v3225, 1.0
    %v3227 = vrcp.pop %v3226
    %v3228 = vmul.f32 %v3226, %v3227
    %v3229 = vsub.f32 1.0, %v3228
    %v3230 = vmul.f32 %v3227, %v3229
    %v3231 = vadd.f32 %v3227, %v3230
    %vm3232 = vweird.f32 %v3226
    %vm3233 = vweird.f32 %v3227
    %vm3234 = vmor %vm3232, %vm3233
    %v3235 = vsel %vm3234, %v3227, %v3231
    %v3236 = vand.u32 2147483647, %v3226
    %vm3237 = vcmp.eq.f32.partialorder %v3236, 8.507059e+37
    %v3238 = vand.u32 %v3226, 2147483648
    %v3239 = vor.u32 1.1754944e-38, %v3238
    %v3240 = vsel %vm3237, %v3239, %v3235
    %v3241 = vmul.f32 1.0, %v3240
    %v3242 = vxor.u32 %v3220, 2147483648
    %v3243 = vmul.f32 %v3242, 1.442695
    %v3244 = vpow.pop %v3243
    %v3245 = vadd.f32 %v3244, 1.0
    %v3246 = vrcp.pop %v3245
    %v3247 = vmul.f32 %v3245, %v3246
    %v3248 = vsub.f32 1.0, %v3247
    %v3249 = vmul.f32 %v3246, %v3248
    %v3250 = vadd.f32 %v3246, %v3249
    %vm3251 = vweird.f32 %v3245
    %vm3252 = vweird.f32 %v3246
    %vm3253 = vmor %vm3251, %vm3252
    %v3254 = vsel %vm3253, %v3246, %v3250
    %v3255 = vand.u32 2147483647, %v3245
    %vm3256 = vcmp.eq.f32.partialorder %v3255, 8.507059e+37
    %v3257 = vand.u32 %v3245, 2147483648
    %v3258 = vor.u32 1.1754944e-38, %v3257
    %v3259 = vsel %vm3256, %v3258, %v3254
    %v3260 = vmul.f32 1.0, %v3259
    %v3261 = vtanh.pop %v3221
    %v3262 = vxor.u32 %v3222, 2147483648
    %v3263 = vmul.f32 %v3262, 1.442695
    %v3264 = vpow.pop %v3263
    %v3265 = vadd.f32 %v3264, 1.0
    %v3266 = vrcp.pop %v3265
    %v3267 = vmul.f32 %v3265, %v3266
    %v3268 = vsub.f32 1.0, %v3267
    %v3269 = vmul.f32 %v3266, %v3268
    %v3270 = vadd.f32 %v3266, %v3269
    %vm3271 = vweird.f32 %v3265
    %vm3272 = vweird.f32 %v3266
    %vm3273 = vmor %vm3271, %vm3272
    %v3274 = vsel %vm3273, %v3266, %v3270
    %v3275 = vand.u32 2147483647, %v3265
    %vm3276 = vcmp.eq.f32.partialorder %v3275, 8.507059e+37
    %v3277 = vand.u32 %v3265, 2147483648
    %v3278 = vor.u32 1.1754944e-38, %v3277
    %v3279 = vsel %vm3276, %v3278, %v3274
    %v3280 = vmul.f32 1.0, %v3279
    %v3281 = vmul.f32 %v3260, %v3131
    %v3282 = vmul.f32 %v3241, %v3261
    %v3283 = vadd.f32 %v3281, %v3282
    %v3284 = vtanh.pop %v3283
    %v3285 = vmul.f32 %v3280, %v3284
    %3286 = vst [vmem:[%s1727] sm:$0xff] %v3285
    %v3287 = vld [vmem:[#allocation2] sm:$0xff]
    %v3288 = vld [vmem:[#allocation2 + $0x8] sm:$0xff]
    %v3289 = vld [vmem:[#allocation2 + $0x10] sm:$0xff]
    %v3290 = vld [vmem:[#allocation2 + $0x18] sm:$0xff]
    %v3291 = vld [vmem:[#allocation2 + $0x20] sm:$0xff]
    %v3292 = vld [vmem:[#allocation2 + $0x28] sm:$0xff]
    %v3293 = vld [vmem:[#allocation2 + $0x30] sm:$0xff]
    %v3294 = vld [vmem:[#allocation2 + $0x38] sm:$0xff]
    %v3295 = vld [vmem:[#allocation15] sm:$0xff]
    %v3296 = vld [vmem:[#allocation15 + $0x8] sm:$0xff]
    %v3297 = vld [vmem:[#allocation15 + $0x10] sm:$0xff]
    %v3298 = vld [vmem:[#allocation15 + $0x18] sm:$0xff]
    %v3299 = vld [vmem:[#allocation15 + $0x20] sm:$0xff]
    %v3300 = vld [vmem:[#allocation15 + $0x28] sm:$0xff]
    %v3301 = vld [vmem:[#allocation15 + $0x30] sm:$0xff]
    %v3302 = vld [vmem:[#allocation15 + $0x38] sm:$0xff]
    %v3303 = vld [vmem:[#allocation15 + $0x40] sm:$0xff]
    %v3304 = vld [vmem:[#allocation15 + $0x48] sm:$0xff]
    %v3305 = vld [vmem:[#allocation15 + $0x50] sm:$0xff]
    %v3306 = vld [vmem:[#allocation15 + $0x58] sm:$0xff]
    %v3307 = vld [vmem:[#allocation15 + $0x60] sm:$0xff]
    %v3308 = vld [vmem:[#allocation15 + $0x68] sm:$0xff]
    %v3309 = vld [vmem:[#allocation15 + $0x70] sm:$0xff]
    %v3310 = vld [vmem:[#allocation15 + $0x78] sm:$0xff]
    %v3311 = vld [vmem:[%s8] sm:$0x1]
    %v3313 = vperm.slane %v3311, 0
    %3315 = vmatpush.msra.mxu0 %v3310
    %3316 = vmatpush.msra.mxu0 %v3309
    %3317 = vmatpush.msra.mxu0 %v3308
    %3318 = vmatpush.msra.mxu0 %v3307
    %3319 = vmatpush.msra.mxu0 %v3306
    %3320 = vmatpush.msra.mxu0 %v3305
    %3321 = vmatpush.msra.mxu0 %v3304
    %3322 = vmatpush.msra.mxu0 %v3303
    %3323 = vmatpush.msra.mxu0 %v3302
    %3324 = vmatpush.msra.mxu0 %v3301
    %3325 = vmatpush.msra.mxu0 %v3300
    %3326 = vmatpush.msra.mxu0 %v3299
    %3327 = vmatpush.msra.mxu0 %v3298
    %3328 = vmatpush.msra.mxu0 %v3297
    %3329 = vmatpush.msra.mxu0 %v3296
    %3330 = vmatpush.msra.mxu0 %v3295
    %3331 = vmatmul.f32.gmra.mxu0 %v3287
    %v3332 = vpop.f32.mrf.mxu0
    %v3333 = vadd.f32 %v3313, %v3332
    %3334 = vmatmul.f32.gmra.mxu0 %v3288
    %v3335 = vpop.f32.mrf.mxu0
    %v3336 = vadd.f32 %v3313, %v3335
    %3337 = vmatmul.f32.gmra.mxu0 %v3289
    %v3338 = vpop.f32.mrf.mxu0
    %v3339 = vadd.f32 %v3313, %v3338
    %3340 = vmatmul.f32.gmra.mxu0 %v3290
    %v3341 = vpop.f32.mrf.mxu0
    %v3342 = vadd.f32 %v3313, %v3341
    %3343 = vmatmul.f32.gmra.mxu0 %v3291
    %v3344 = vpop.f32.mrf.mxu0
    %v3345 = vadd.f32 %v3313, %v3344
    %3346 = vmatmul.f32.gmra.mxu0 %v3292
    %v3347 = vpop.f32.mrf.mxu0
    %v3348 = vadd.f32 %v3313, %v3347
    %3349 = vmatmul.f32.gmra.mxu0 %v3293
    %v3350 = vpop.f32.mrf.mxu0
    %v3351 = vadd.f32 %v3313, %v3350
    %3352 = vmatmul.f32.gmra.mxu0 %v3294
    %v3353 = vpop.f32.mrf.mxu0
    %v3354 = vadd.f32 %v3313, %v3353
    %3355 = vdwg.mxu0
    %3356 = vst [vmem:[#allocation16] sm:$0xff] %v3333
    %3357 = vst [vmem:[#allocation16 + $0x8] sm:$0xff] %v3336
    %3358 = vst [vmem:[#allocation16 + $0x10] sm:$0xff] %v3339
    %3359 = vst [vmem:[#allocation16 + $0x18] sm:$0xff] %v3342
    %3360 = vst [vmem:[#allocation16 + $0x20] sm:$0xff] %v3345
    %3361 = vst [vmem:[#allocation16 + $0x28] sm:$0xff] %v3348
    %3362 = vst [vmem:[#allocation16 + $0x30] sm:$0xff] %v3351
    %3363 = vst [vmem:[#allocation16 + $0x38] sm:$0xff] %v3354
    // Predicated region
    $region66: #{tpu_custom_call.1} parent=1 // pred_check
      _
    $region67: #{tpu_custom_call.1} parent=1 // pred_check_branch
      %3365 = sbr.rel (0) target = $region69
    $region68: #{tpu_custom_call.1} parent=1 // pred_region
      %3367 = vsyncadd [#allocation6], 0
      %s3368 = sshll.u32 [#allocation16], 4
      %s3369 = int_to_ptr.vmem [resolvable:$true] %s3368
      %s3370 = sshll.u32 %s9, 4
      %s3371 = int_to_ptr.hbm [resolvable:$true] %s3370
      %3376 = dma.vmem_to_hbm [thread:$0]  %s3369, 1024, %s3371, [#allocation6], 128, 128, 8
    $region69: #{tpu_custom_call.1} parent=1 // pred_fallthru
      _
    // Predicated region
    $region70: #{tpu_custom_call.1} parent=1 // pred_check
      _
    $region71: #{tpu_custom_call.1} parent=1 // pred_check_branch
      %3378 = sbr.rel (0) target = $region73
    $region72: #{tpu_custom_call.1} parent=1 // pred_region
      %3380 = dma.done [#allocation6], 1024
    $region73: #{tpu_custom_call.1} parent=1 // pred_fallthru
      _
    %3381 = vsyncpa [#allocation5], 1
    %3382 = vsyncpa [#allocation8], 1
    %3383 = vsyncpa [#allocation11], 1
    %3384 = vsyncpa [#allocation14], 1
    %3385 = vsyncpa [#allocation6], 1

</llo_original>
